<compile_context>
chip_gen: v7x
topology: tpu7x:2x2x1
jax: 0.10.0
libtpu: 0.0.40
codegen_flags: <defaults>
</compile_context>

<pallas_src>
import jax
import jax.numpy as jnp
import numpy as np
from jax.experimental import pallas as pl
from jax.experimental.pallas import tpu as pltpu

SPARSITY = 0.9
BN_EPS = 1e-3            # scvi FCLayers uses nn.BatchNorm1d(..., eps=0.001)
HNORM_EPS = 1e-5
# softplus(-(1 - sparsity) * 10) computed in float32 (matches the torch module)
SOFTPLUS_THRESHOLD = float(np.log1p(np.exp(np.float32(-(1.0 - SPARSITY) * 10.0))))


def _round_up(x, m):
    return (x + m - 1) // m * m


def _softplus(x):
    # numerically-stable softplus, matches torch.nn.functional.softplus
    return jnp.maximum(x, 0.0) + jnp.log1p(jnp.exp(-jnp.abs(x)))


# -----------------------------------------------------------------------------
# Kernel.  Grid = (batch_tiles, 2 passes, gene_tiles).
#   pass 0: accumulate hnormalization row sum of the softplus_sp activation
#   pass 1: recompute the gene tile, normalize, emit px_scale / px_rate / px_dropout
# The hidden MLP (BN folded) runs once per batch tile and lives in VMEM scratch.
# -----------------------------------------------------------------------------
def decoder_scar_kernel(
    z_ref, lib_ref,
    w1_ref, b1_ref, w2_ref, b2_ref,
    ws_ref, bs_ref, wd_ref, bd_ref, wn_ref, bn_ref,
    scale_ref, noise_ref, rate_ref, drop_ref,
    h_sc, rsum_sc,
):
    p = pl.program_id(1)   # 0 = row-sum pass, 1 = normalize/emit pass
    n = pl.program_id(2)   # gene tile index

    cdt = w1_ref.dtype     # MXU operand dtype (f32 or bf16); accumulation is f32

    # ---- once per batch tile: hidden MLP, noise head, zero the row-sum ----
    @pl.when(jnp.logical_and(p == 0, n == 0))
    def _():
        z = z_ref[...].astype(cdt)
        h = jnp.dot(z, w1_ref[...], preferred_element_type=jnp.float32) + b1_ref[...]
        h = jnp.maximum(h, 0.0)
        h = jnp.dot(h.astype(cdt), w2_ref[...],
                    preferred_element_type=jnp.float32) + b2_ref[...]
        h = jnp.maximum(h, 0.0)
        h_sc[...] = h
        rsum_sc[...] = jnp.zeros_like(rsum_sc)

        # px_noise head (n_hidden -> 1): row reduction on VPU/XLU, then (1+tanh)/2
        n_lin = jnp.sum(h * wn_ref[...], axis=-1, keepdims=True) + bn_ref[...]
        noise_ref[...] = ((1.0 + jnp.tanh(n_lin)) * 0.5).astype(noise_ref.dtype)

    h = h_sc[...]

    # ---- scale head for this gene tile (recomputed in both passes) ----
    s_lin = jnp.dot(h.astype(cdt), ws_ref[...],
                    preferred_element_type=jnp.float32) + bs_ref[...]
    var_sp = _softplus(s_lin) - SOFTPLUS_THRESHOLD
    act = jnp.where(var_sp <= 0.0, 0.0, var_sp)     # padded cols (bias=-1e9) -> exactly 0

    @pl.when(p == 0)
    def _():
        rsum_sc[...] += jnp.sum(act, axis=-1, keepdims=True)

    @pl.when(p == 1)
    def _():
        inv = pl.reciprocal(rsum_sc[...] + HNORM_EPS, approx=False)
        px_scale = act * inv
        px_dropout = jnp.dot(h.astype(cdt), wd_ref[...],
                             preferred_element_type=jnp.float32) + bd_ref[...]
        px_rate = jnp.exp(lib_ref[...].astype(jnp.float32)) * px_scale
        scale_ref[...] = px_scale.astype(scale_ref.dtype)
        rate_ref[...] = px_rate.astype(rate_ref.dtype)
        drop_ref[...] = px_dropout.astype(drop_ref.dtype)


# -----------------------------------------------------------------------------
# Host-side one-time parameter transform: fold eval-mode BatchNorm into the
# linear layers, pad the gene axis to a multiple of tile_n (lane-aligned), and
# optionally cast the big weight matrices to bf16.
# -----------------------------------------------------------------------------
def fold_and_pack_params(p, *, tile_n=128, weight_dtype=jnp.float32):
    n_output = p["ws"].shape[1]
    n_out_p = _round_up(n_output, tile_n)
    pad = n_out_p - n_output

    s1 = p["g1"] * jax.lax.rsqrt(p["v1"] + BN_EPS)   # (1, n_hidden)
    s2 = p["g2"] * jax.lax.rsqrt(p["v2"] + BN_EPS)

    def pad_cols(w, value):
        if pad == 0:
            return w
        return jnp.pad(w, ((0, 0), (0, pad)), constant_values=value)

    return {
        "w1": (p["w1"] * s1).astype(weight_dtype),
        "b1": ((p["b1"] - p["m1"]) * s1 + p["be1"]).astype(jnp.float32),
        "w2": (p["w2"] * s2).astype(weight_dtype),
        "b2": ((p["b2"] - p["m2"]) * s2 + p["be2"]).astype(jnp.float32),
        # padded scale-head bias columns = -1e9 so softplus_sp clamps them to 0
        "ws": pad_cols(p["ws"], 0.0).astype(weight_dtype),
        "bs": pad_cols(p["bs"], -1e9).astype(jnp.float32),
        "wd": pad_cols(p["wd"], 0.0).astype(weight_dtype),
        "bd": pad_cols(p["bd"], 0.0).astype(jnp.float32),
        "wn_row": p["wn"].T.astype(jnp.float32),     # (1, n_hidden)
        "bn": p["bn"].astype(jnp.float32),           # (1, 1)
        "n_output": n_output,                        # host-side metadata
    }


def decoder_scar(z, library, folded, *, tile_b=None, tile_n=128,
                 single_buffer_weights=True, core_parallel_batch=False):
    B, n_input = z.shape
    n_hidden = folded["w1"].shape[1]
    n_out_p = folded["ws"].shape[1]
    n_output = folded["n_output"]
    wdt = folded["w1"].dtype

    tile_b = B if tile_b is None else min(tile_b, B)
    assert B % tile_b == 0
    assert tile_n % 128 == 0 and n_out_p % tile_n == 0
    n_btiles = B // tile_b
    n_ntiles = n_out_p // tile_n
    grid = (n_btiles, 2, n_ntiles)

    # Constant-index weights: fetched exactly once -> single-buffer them.
    wkw = {"pipeline_mode": pl.Buffered(1)} if single_buffer_weights else {}
    const = lambda shape: pl.BlockSpec(shape, lambda i, p, n: (0, 0), **wkw)
    batch = lambda cols: pl.BlockSpec((tile_b, cols), lambda i, p, n: (i, 0))
    gene_out = lambda: pl.BlockSpec((tile_b, tile_n), lambda i, p, n: (i, n * p))

    in_specs = [
        batch(n_input),                                               # z
        batch(1),                                                     # library
        const((n_input, n_hidden)),                                   # w1 (BN folded)
        const((1, n_hidden)),                                         # b1
        const((n_hidden, n_hidden)),                                  # w2 (BN folded)
        const((1, n_hidden)),                                         # b2
        pl.BlockSpec((n_hidden, tile_n), lambda i, p, n: (0, n)),     # ws tile (both passes)
        pl.BlockSpec((1, tile_n), lambda i, p, n: (0, n)),            # bs tile
        pl.BlockSpec((n_hidden, tile_n), lambda i, p, n: (0, n * p)), # wd tile (pass 1 only)
        pl.BlockSpec((1, tile_n), lambda i, p, n: (0, n * p)),        # bd tile
        const((1, n_hidden)),                                         # wn as a row vector
        const((1, 1)),                                                # bn
    ]
    out_specs = (
        gene_out(),                                                   # px_scale
        pl.BlockSpec((tile_b, 1), lambda i, p, n: (i, 0)),            # px_noise_ratio
        gene_out(),                                                   # px_rate
        gene_out(),                                                   # px_dropout
    )
    out_shape = (
        jax.ShapeDtypeStruct((B, n_out_p), jnp.float32),
        jax.ShapeDtypeStruct((B, 1), jnp.float32),
        jax.ShapeDtypeStruct((B, n_out_p), jnp.float32),
        jax.ShapeDtypeStruct((B, n_out_p), jnp.float32),
    )
    scratch_shapes = [
        pltpu.VMEM((tile_b, n_hidden), jnp.float32),   # hidden activation (per batch tile)
        pltpu.VMEM((tile_b, 1), jnp.float32),          # hnorm row-sum accumulator
    ]

    # ---- explicit scoped-VMEM limit from the actual block footprints ----
    def blk_bytes(shape, dtype, nbuf):
        r = shape[-2] if len(shape) > 1 else 1
        return nbuf * _round_up(r, 8) * _round_up(shape[-1], 128) * np.dtype(dtype).itemsize

    nb_w = 1 if single_buffer_weights else 2
    need = 0
    need += blk_bytes((tile_b, n_input), jnp.float32, 2)
    need += blk_bytes((tile_b, 1), jnp.float32, 2)
    need += blk_bytes((n_input, n_hidden), wdt, nb_w)
    need += blk_bytes((n_hidden, n_hidden), wdt, nb_w)
    need += 2 * blk_bytes((1, n_hidden), jnp.float32, nb_w)           # b1, b2
    need += 2 * blk_bytes((n_hidden, tile_n), wdt, 2)                 # ws, wd tiles
    need += 2 * blk_bytes((1, tile_n), jnp.float32, 2)                # bs, bd tiles
    need += blk_bytes((1, n_hidden), jnp.float32, nb_w)               # wn
    need += blk_bytes((1, 1), jnp.float32, nb_w)                      # bn
    need += 3 * blk_bytes((tile_b, tile_n), jnp.float32, 2)           # scale, rate, dropout
    need += blk_bytes((tile_b, 1), jnp.float32, 2)                    # noise
    need += blk_bytes((tile_b, n_hidden), jnp.float32, 1)             # h scratch
    need += blk_bytes((tile_b, 1), jnp.float32, 1)                    # row-sum scratch
    vmem_limit = int(min(max(1.25 * need + (2 << 20), 16 << 20), 64 << 20))

    # ---- advisory cost estimate ----
    wbytes = np.dtype(wdt).itemsize
    flops = 2 * B * (n_input * n_hidden + n_hidden * n_hidden        # hidden MLP (once)
                     + 3 * n_hidden * n_out_p                        # scale head x2 + dropout head
                     + n_hidden)                                     # noise head
    transcendentals = B * (4 * n_out_p + 1 + n_ntiles)               # softplus x2, tanh, exp(lib)
    bytes_accessed = (
        4 * (int(z.size) + int(library.size) + B * (3 * n_out_p + 1))
        + n_btiles * wbytes * (n_input * n_hidden + n_hidden * n_hidden
                               + 3 * n_hidden * n_out_p))            # ws read twice, wd once

    batch_sem = pltpu.CORE_PARALLEL if core_parallel_batch else "parallel"
    fn = pl.pallas_call(
        decoder_scar_kernel,
        grid_spec=pltpu.PrefetchScalarGridSpec(
            num_scalar_prefetch=0,
            grid=grid,
            in_specs=in_specs,
            out_specs=out_specs,
            scratch_shapes=scratch_shapes,
        ),
        out_shape=out_shape,
        compiler_params=pltpu.CompilerParams(
            dimension_semantics=(batch_sem, "arbitrary", "arbitrary"),
            vmem_limit_bytes=vmem_limit,
        ),
        cost_estimate=pl.CostEstimate(
            flops=int(flops),
            transcendentals=int(transcendentals),
            bytes_accessed=int(bytes_accessed),
        ),
    )
    px_scale, px_noise, px_rate, px_dropout = fn(
        z, library,
        folded["w1"], folded["b1"], folded["w2"], folded["b2"],
        folded["ws"], folded["bs"], folded["wd"], folded["bd"],
        folded["wn_row"], folded["bn"],
    )
    if n_out_p != n_output:   # drop the lane padding
        px_scale = px_scale[:, :n_output]
        px_rate = px_rate[:, :n_output]
        px_dropout = px_dropout[:, :n_output]
    return px_scale, px_noise, px_rate, px_dropout


# -----------------------------------------------------------------------------
# Pure-JAX reference (un-folded eval-mode BatchNorm) for correctness checks.
# -----------------------------------------------------------------------------
def reference_decoder_scar(z, library, p):
    h = z @ p["w1"] + p["b1"]
    h = (h - p["m1"]) / jnp.sqrt(p["v1"] + BN_EPS) * p["g1"] + p["be1"]
    h = jnp.maximum(h, 0.0)
    h = h @ p["w2"] + p["b2"]
    h = (h - p["m2"]) / jnp.sqrt(p["v2"] + BN_EPS) * p["g2"] + p["be2"]
    h = jnp.maximum(h, 0.0)

    s_lin = h @ p["ws"] + p["bs"]
    var_sp = jax.nn.softplus(s_lin) - SOFTPLUS_THRESHOLD
    act = jnp.where(var_sp <= 0.0, 0.0, var_sp)
    px_scale = act / (jnp.sum(act, axis=-1, keepdims=True) + HNORM_EPS)

    px_dropout = h @ p["wd"] + p["bd"]
    px_noise = (1.0 + jnp.tanh(h @ p["wn"] + p["bn"])) * 0.5
    px_rate = jnp.exp(library) * px_scale
    return px_scale, px_noise, px_rate, px_dropout


def make_params(key, n_input, n_hidden, n_output):
    ks = jax.random.split(key, 16)
    u = lambda k, shape, s: (jax.random.normal(k, shape, jnp.float32) * s)
    return {
        "w1": u(ks[0], (n_input, n_hidden), 0.2),
        "b1": u(ks[1], (1, n_hidden), 0.05),
        "g1": 1.0 + u(ks[2], (1, n_hidden), 0.1),
        "be1": u(ks[3], (1, n_hidden), 0.05),
        "m1": u(ks[4], (1, n_hidden), 0.05),
        "v1": 0.8 + jax.random.uniform(ks[5], (1, n_hidden), jnp.float32, 0.0, 0.4),
        "w2": u(ks[6], (n_hidden, n_hidden), 0.15),
        "b2": u(ks[7], (1, n_hidden), 0.05),
        "g2": 1.0 + u(ks[8], (1, n_hidden), 0.1),
        "be2": u(ks[9], (1, n_hidden), 0.05),
        "m2": u(ks[10], (1, n_hidden), 0.05),
        "v2": 0.8 + jax.random.uniform(ks[11], (1, n_hidden), jnp.float32, 0.0, 0.4),
        "ws": u(ks[12], (n_hidden, n_output), 0.2),
        "bs": u(ks[13], (1, n_output), 0.05),
        "wd": u(ks[14], (n_hidden, n_output), 0.2),
        "bd": u(ks[15], (1, n_output), 0.05),
        "wn": u(jax.random.fold_in(key, 100), (n_hidden, 1), 0.2),
        "bn": u(jax.random.fold_in(key, 101), (1, 1), 0.05),
    }


if __name__ == "__main__":
    # Small shapes consistent with the module: latent 16, hidden 128, 200 genes
    # (pads to 256 -> 2 gene tiles of 128, exercising gene tiling, padding and
    # the two-pass hnormalization), batch 256.
    B, n_input, n_hidden, n_output = 256, 16, 128, 200

    key = jax.random.PRNGKey(0)
    kz, kl_, kp = jax.random.split(key, 3)
    z = jax.random.normal(kz, (B, n_input), jnp.float32)
    library = jax.random.normal(kl_, (B, 1), jnp.float32) * 0.5 + 2.0
    params = make_params(kp, n_input, n_hidden, n_output)
    ref = reference_decoder_scar(z, library, params)

    # ---- config 1: f32 weights, batch + gene tiling (grid = (2, 2, 2)) ----
    folded_f32 = fold_and_pack_params(params, tile_n=128, weight_dtype=jnp.float32)
    outs = jax.block_until_ready(
        decoder_scar(z, library, folded_f32, tile_b=128, tile_n=128))
    for got, exp in zip(outs, ref):
        np.testing.assert_allclose(np.asarray(got), np.asarray(exp),
                                   rtol=1e-4, atol=1e-4)

    # ---- config 2: bf16 weights (halved weight DMA/VMEM), whole batch in one
    # grid step (best on single-TensorCore v5e/v6e at these shapes) ----
    folded_bf16 = fold_and_pack_params(params, tile_n=128, weight_dtype=jnp.bfloat16)
    outs_bf16 = jax.block_until_ready(
        decoder_scar(z, library, folded_bf16, tile_b=None, tile_n=128))
    for got, exp in zip(outs_bf16, ref):
        np.testing.assert_allclose(np.asarray(got), np.asarray(exp),
                                   rtol=1e-1, atol=1e-1)

    px_scale, px_noise, px_rate, px_dropout = outs
    assert px_scale.shape == (B, n_output)
    assert px_noise.shape == (B, 1)
    assert px_rate.shape == (B, n_output)
    assert px_dropout.shape == (B, n_output)

    print("KERNEL_OK")
</pallas_src>

<mosaic_0001>
module attributes {stable_mosaic.version = 11 : i64} {
  func.func @decoder_scar_kernel(%arg0: i32, %arg1: i32, %arg2: i32, %arg3: memref<128x16xf32, #tpu.memory_space<vmem>>, %arg4: memref<128x1xf32, #tpu.memory_space<vmem>>, %arg5: memref<16x128xf32, #tpu.memory_space<vmem>>, %arg6: memref<1x128xf32, #tpu.memory_space<vmem>>, %arg7: memref<128x128xf32, #tpu.memory_space<vmem>>, %arg8: memref<1x128xf32, #tpu.memory_space<vmem>>, %arg9: memref<128x128xf32, #tpu.memory_space<vmem>>, %arg10: memref<1x128xf32, #tpu.memory_space<vmem>>, %arg11: memref<128x128xf32, #tpu.memory_space<vmem>>, %arg12: memref<1x128xf32, #tpu.memory_space<vmem>>, %arg13: memref<1x128xf32, #tpu.memory_space<vmem>>, %arg14: memref<1x1xf32, #tpu.memory_space<vmem>>, %arg15: memref<128x128xf32, #tpu.memory_space<vmem>>, %arg16: memref<128x1xf32, #tpu.memory_space<vmem>>, %arg17: memref<128x128xf32, #tpu.memory_space<vmem>>, %arg18: memref<128x128xf32, #tpu.memory_space<vmem>>, %arg19: memref<128x128xf32, #tpu.memory_space<vmem>>, %arg20: memref<128x1xf32, #tpu.memory_space<vmem>>) attributes {dimension_semantics = [#tpu.dimension_semantics<parallel>, #tpu.dimension_semantics<arbitrary>, #tpu.dimension_semantics<arbitrary>], iteration_bounds = array<i64: 2, 2, 2>, scalar_prefetch = 0 : i64, scratch_operands = 2 : i64, tpu.core_type = #tpu.core_type<tc>, window_params = [{transform_indices = @transform_0, window_bounds = array<i64: 128, 16>}, {transform_indices = @transform_1, window_bounds = array<i64: 128, 1>}, {pipeline_mode = #tpu.pipeline_mode<synchronous>, transform_indices = @transform_2, window_bounds = array<i64: 16, 128>}, {pipeline_mode = #tpu.pipeline_mode<synchronous>, transform_indices = @transform_3, window_bounds = array<i64: 1, 128>}, {pipeline_mode = #tpu.pipeline_mode<synchronous>, transform_indices = @transform_4, window_bounds = array<i64: 128, 128>}, {pipeline_mode = #tpu.pipeline_mode<synchronous>, transform_indices = @transform_5, window_bounds = array<i64: 1, 128>}, {transform_indices = @transform_6, window_bounds = array<i64: 128, 128>}, {transform_indices = @transform_7, window_bounds = array<i64: 1, 128>}, {transform_indices = @transform_8, window_bounds = array<i64: 128, 128>}, {transform_indices = @transform_9, window_bounds = array<i64: 1, 128>}, {pipeline_mode = #tpu.pipeline_mode<synchronous>, transform_indices = @transform_10, window_bounds = array<i64: 1, 128>}, {pipeline_mode = #tpu.pipeline_mode<synchronous>, transform_indices = @transform_11, window_bounds = array<i64: 1, 1>}, {transform_indices = @transform_12, window_bounds = array<i64: 128, 128>}, {transform_indices = @transform_13, window_bounds = array<i64: 128, 1>}, {transform_indices = @transform_14, window_bounds = array<i64: 128, 128>}, {transform_indices = @transform_15, window_bounds = array<i64: 128, 128>}]} {
    %c0_i32 = arith.constant 0 : i32
    %0 = arith.cmpi eq, %arg1, %c0_i32 : i32
    %c0_i32_0 = arith.constant 0 : i32
    %1 = arith.cmpi eq, %arg2, %c0_i32_0 : i32
    %2 = arith.andi %0, %1 : i1
    %3 = arith.extui %2 : i1 to i32
    %c0_i32_1 = arith.constant 0 : i32
    %4 = arith.cmpi ne, %3, %c0_i32_1 : i32
    scf.if %4 {
      %c0_15 = arith.constant 0 : index
      %c0_16 = arith.constant 0 : index
      %31 = vector.load %arg3[%c0_15, %c0_16] : memref<128x16xf32, #tpu.memory_space<vmem>>, vector<128x16xf32>
      %c0_17 = arith.constant 0 : index
      %c0_18 = arith.constant 0 : index
      %32 = vector.load %arg5[%c0_17, %c0_18] : memref<16x128xf32, #tpu.memory_space<vmem>>, vector<16x128xf32>
      %cst_19 = arith.constant dense<0.000000e+00> : vector<128x128xf32>
      %33 = tpu.matmul %31, %32, %cst_19 {dimension_numbers = #tpu.dot_dimension_numbers<[1], [0], [0], [1], [0, 0, 1, 1], [], []>} : vector<128x16xf32>, vector<16x128xf32>, vector<128x128xf32> -> vector<128x128xf32>
      %c0_20 = arith.constant 0 : index
      %c0_21 = arith.constant 0 : index
      %34 = vector.load %arg6[%c0_20, %c0_21] : memref<1x128xf32, #tpu.memory_space<vmem>>, vector<1x128xf32>
      %35 = vector.broadcast %34 : vector<1x128xf32> to vector<128x128xf32>
      %36 = arith.addf %33, %35 : vector<128x128xf32>
      %cst_22 = arith.constant 0.000000e+00 : f32
      %37 = vector.broadcast %cst_22 : f32 to vector<128x128xf32>
      %38 = arith.maximumf %36, %37 : vector<128x128xf32>
      %c0_23 = arith.constant 0 : index
      %c0_24 = arith.constant 0 : index
      %39 = vector.load %arg7[%c0_23, %c0_24] : memref<128x128xf32, #tpu.memory_space<vmem>>, vector<128x128xf32>
      %cst_25 = arith.constant dense<0.000000e+00> : vector<128x128xf32>
      %40 = tpu.matmul %38, %39, %cst_25 {dimension_numbers = #tpu.dot_dimension_numbers<[1], [0], [0], [1], [0, 0, 1, 1], [], []>} : vector<128x128xf32>, vector<128x128xf32>, vector<128x128xf32> -> vector<128x128xf32>
      %c0_26 = arith.constant 0 : index
      %c0_27 = arith.constant 0 : index
      %41 = vector.load %arg8[%c0_26, %c0_27] : memref<1x128xf32, #tpu.memory_space<vmem>>, vector<1x128xf32>
      %42 = vector.broadcast %41 : vector<1x128xf32> to vector<128x128xf32>
      %43 = arith.addf %40, %42 : vector<128x128xf32>
      %cst_28 = arith.constant 0.000000e+00 : f32
      %44 = vector.broadcast %cst_28 : f32 to vector<128x128xf32>
      %45 = arith.maximumf %43, %44 : vector<128x128xf32>
      %c0_29 = arith.constant 0 : index
      %c0_30 = arith.constant 0 : index
      %46 = vector.load %arg19[%c0_29, %c0_30] : memref<128x128xf32, #tpu.memory_space<vmem>>, vector<128x128xf32>
      tpu.vector_store %arg19[%c0_29, %c0_30], %45 {strides = array<i32>} : memref<128x128xf32, #tpu.memory_space<vmem>>, vector<128x128xf32>,
      %cst_31 = arith.constant 0.000000e+00 : f32
      %47 = vector.broadcast %cst_31 : f32 to vector<128x1xf32>
      %c0_32 = arith.constant 0 : index
      %c0_33 = arith.constant 0 : index
      %48 = vector.load %arg20[%c0_32, %c0_33] : memref<128x1xf32, #tpu.memory_space<vmem>>, vector<128x1xf32>
      tpu.vector_store %arg20[%c0_32, %c0_33], %47 {strides = array<i32>} : memref<128x1xf32, #tpu.memory_space<vmem>>, vector<128x1xf32>,
      %c0_34 = arith.constant 0 : index
      %c0_35 = arith.constant 0 : index
      %49 = vector.load %arg13[%c0_34, %c0_35] : memref<1x128xf32, #tpu.memory_space<vmem>>, vector<1x128xf32>
      %50 = vector.broadcast %49 : vector<1x128xf32> to vector<128x128xf32>
      %51 = arith.mulf %45, %50 : vector<128x128xf32>
      %cst_36 = arith.constant dense<0.000000e+00> : vector<128xf32>
      %52 = vector.multi_reduction <add>, %51, %cst_36 [1] : vector<128x128xf32> to vector<128xf32>
      %53 = vector.shape_cast %52 : vector<128xf32> to vector<128x1xf32>
      %c0_37 = arith.constant 0 : index
      %c0_38 = arith.constant 0 : index
      %54 = vector.load %arg14[%c0_37, %c0_38] : memref<1x1xf32, #tpu.memory_space<vmem>>, vector<1x1xf32>
      %55 = vector.broadcast %54 : vector<1x1xf32> to vector<128x1xf32>
      %56 = arith.addf %53, %55 : vector<128x1xf32>
      %57 = math.tanh %56 : vector<128x1xf32>
      %cst_39 = arith.constant 1.000000e+00 : f32
      %58 = vector.broadcast %cst_39 : f32 to vector<128x1xf32>
      %59 = arith.addf %58, %57 : vector<128x1xf32>
      %cst_40 = arith.constant 5.000000e-01 : f32
      %60 = vector.broadcast %cst_40 : f32 to vector<128x1xf32>
      %61 = arith.mulf %59, %60 : vector<128x1xf32>
      %c0_41 = arith.constant 0 : index
      %c0_42 = arith.constant 0 : index
      %62 = vector.load %arg16[%c0_41, %c0_42] : memref<128x1xf32, #tpu.memory_space<vmem>>, vector<128x1xf32>
      tpu.vector_store %arg16[%c0_41, %c0_42], %61 {strides = array<i32>} : memref<128x1xf32, #tpu.memory_space<vmem>>, vector<128x1xf32>,
    } else {
    }
    %c0 = arith.constant 0 : index
    %c0_2 = arith.constant 0 : index
    %5 = vector.load %arg19[%c0, %c0_2] : memref<128x128xf32, #tpu.memory_space<vmem>>, vector<128x128xf32>
    %c0_3 = arith.constant 0 : index
    %c0_4 = arith.constant 0 : index
    %6 = vector.load %arg9[%c0_3, %c0_4] : memref<128x128xf32, #tpu.memory_space<vmem>>, vector<128x128xf32>
    %cst = arith.constant dense<0.000000e+00> : vector<128x128xf32>
    %7 = tpu.matmul %5, %6, %cst {dimension_numbers = #tpu.dot_dimension_numbers<[1], [0], [0], [1], [0, 0, 1, 1], [], []>} : vector<128x128xf32>, vector<128x128xf32>, vector<128x128xf32> -> vector<128x128xf32>
    %c0_5 = arith.constant 0 : index
    %c0_6 = arith.constant 0 : index
    %8 = vector.load %arg10[%c0_5, %c0_6] : memref<1x128xf32, #tpu.memory_space<vmem>>, vector<1x128xf32>
    %9 = vector.broadcast %8 : vector<1x128xf32> to vector<128x128xf32>
    %10 = arith.addf %7, %9 : vector<128x128xf32>
    %cst_7 = arith.constant 0.000000e+00 : f32
    %11 = vector.broadcast %cst_7 : f32 to vector<128x128xf32>
    %12 = arith.maximumf %10, %11 : vector<128x128xf32>
    %13 = math.absf %10 : vector<128x128xf32>
    %cst_8 = arith.constant 0.000000e+00 : f32
    %14 = vector.broadcast %cst_8 : f32 to vector<128x128xf32>
    %15 = arith.subf %14, %13 : vector<128x128xf32>
    %16 = math.exp %15 : vector<128x128xf32>
    %17 = math.log1p %16 : vector<128x128xf32>
    %18 = arith.addf %12, %17 : vector<128x128xf32>
    %cst_9 = arith.constant 0.313261628 : f32
    %19 = vector.broadcast %cst_9 : f32 to vector<128x128xf32>
    %20 = arith.subf %18, %19 : vector<128x128xf32>
    %cst_10 = arith.constant 0.000000e+00 : f32
    %21 = vector.broadcast %cst_10 : f32 to vector<128x128xf32>
    %22 = arith.cmpf ole, %20, %21 : vector<128x128xf32>
    %cst_11 = arith.constant 0.000000e+00 : f32
    %23 = vector.broadcast %cst_11 : f32 to vector<128x128xf32>
    %24 = arith.select %22, %23, %20 : vector<128x128xi1>, vector<128x128xf32>
    %c0_i32_12 = arith.constant 0 : i32
    %25 = arith.cmpi eq, %arg1, %c0_i32_12 : i32
    %26 = arith.extui %25 : i1 to i32
    %c0_i32_13 = arith.constant 0 : i32
    %27 = arith.cmpi ne, %26, %c0_i32_13 : i32
    scf.if %27 {
      %c0_15 = arith.constant 0 : index
      %c0_16 = arith.constant 0 : index
      %31 = vector.load %arg20[%c0_15, %c0_16] : memref<128x1xf32, #tpu.memory_space<vmem>>, vector<128x1xf32>
      %cst_17 = arith.constant dense<0.000000e+00> : vector<128xf32>
      %32 = vector.multi_reduction <add>, %24, %cst_17 [1] : vector<128x128xf32> to vector<128xf32>
      %33 = vector.shape_cast %32 : vector<128xf32> to vector<128x1xf32>
      %34 = arith.addf %31, %33 : vector<128x1xf32>
      %c0_18 = arith.constant 0 : index
      %c0_19 = arith.constant 0 : index
      %35 = vector.load %arg20[%c0_18, %c0_19] : memref<128x1xf32, #tpu.memory_space<vmem>>, vector<128x1xf32>
      tpu.vector_store %arg20[%c0_18, %c0_19], %34 {strides = array<i32>} : memref<128x1xf32, #tpu.memory_space<vmem>>, vector<128x1xf32>,
    } else {
    }
    %c1_i32 = arith.constant 1 : i32
    %28 = arith.cmpi eq, %arg1, %c1_i32 : i32
    %29 = arith.extui %28 : i1 to i32
    %c0_i32_14 = arith.constant 0 : i32
    %30 = arith.cmpi ne, %29, %c0_i32_14 : i32
    scf.if %30 {
      %c0_15 = arith.constant 0 : index
      %c0_16 = arith.constant 0 : index
      %31 = vector.load %arg20[%c0_15, %c0_16] : memref<128x1xf32, #tpu.memory_space<vmem>>, vector<128x1xf32>
      %cst_17 = arith.constant 9.99999974E-6 : f32
      %32 = vector.broadcast %cst_17 : f32 to vector<128x1xf32>
      %33 = arith.addf %31, %32 : vector<128x1xf32>
      %34 = tpu.reciprocal %33 : vector<128x1xf32> -> vector<128x1xf32>
      %35 = vector.broadcast %34 : vector<128x1xf32> to vector<128x128xf32>
      %36 = arith.mulf %24, %35 : vector<128x128xf32>
      %c0_18 = arith.constant 0 : index
      %c0_19 = arith.constant 0 : index
      %37 = vector.load %arg11[%c0_18, %c0_19] : memref<128x128xf32, #tpu.memory_space<vmem>>, vector<128x128xf32>
      %cst_20 = arith.constant dense<0.000000e+00> : vector<128x128xf32>
      %38 = tpu.matmul %5, %37, %cst_20 {dimension_numbers = #tpu.dot_dimension_numbers<[1], [0], [0], [1], [0, 0, 1, 1], [], []>} : vector<128x128xf32>, vector<128x128xf32>, vector<128x128xf32> -> vector<128x128xf32>
      %c0_21 = arith.constant 0 : index
      %c0_22 = arith.constant 0 : index
      %39 = vector.load %arg12[%c0_21, %c0_22] : memref<1x128xf32, #tpu.memory_space<vmem>>, vector<1x128xf32>
      %40 = vector.broadcast %39 : vector<1x128xf32> to vector<128x128xf32>
      %41 = arith.addf %38, %40 : vector<128x128xf32>
      %c0_23 = arith.constant 0 : index
      %c0_24 = arith.constant 0 : index
      %42 = vector.load %arg4[%c0_23, %c0_24] : memref<128x1xf32, #tpu.memory_space<vmem>>, vector<128x1xf32>
      %43 = math.exp %42 : vector<128x1xf32>
      %44 = vector.broadcast %43 : vector<128x1xf32> to vector<128x128xf32>
      %45 = arith.mulf %44, %36 : vector<128x128xf32>
      %c0_25 = arith.constant 0 : index
      %c0_26 = arith.constant 0 : index
      %46 = vector.load %arg15[%c0_25, %c0_26] : memref<128x128xf32, #tpu.memory_space<vmem>>, vector<128x128xf32>
      tpu.vector_store %arg15[%c0_25, %c0_26], %36 {strides = array<i32>} : memref<128x128xf32, #tpu.memory_space<vmem>>, vector<128x128xf32>,
      %c0_27 = arith.constant 0 : index
      %c0_28 = arith.constant 0 : index
      %47 = vector.load %arg17[%c0_27, %c0_28] : memref<128x128xf32, #tpu.memory_space<vmem>>, vector<128x128xf32>
      tpu.vector_store %arg17[%c0_27, %c0_28], %45 {strides = array<i32>} : memref<128x128xf32, #tpu.memory_space<vmem>>, vector<128x128xf32>,
      %c0_29 = arith.constant 0 : index
      %c0_30 = arith.constant 0 : index
      %48 = vector.load %arg18[%c0_29, %c0_30] : memref<128x128xf32, #tpu.memory_space<vmem>>, vector<128x128xf32>
      tpu.vector_store %arg18[%c0_29, %c0_30], %41 {strides = array<i32>} : memref<128x128xf32, #tpu.memory_space<vmem>>, vector<128x128xf32>,
    } else {
    }
    return
  }
  func.func @transform_0(%arg0: i32, %arg1: i32, %arg2: i32) -> (i32, i32) {
    %c0_i32 = arith.constant 0 : i32
    %c0_i32_0 = arith.constant 0 : i32
    return %arg0, %c0_i32 : i32, i32
  }
  func.func @transform_1(%arg0: i32, %arg1: i32, %arg2: i32) -> (i32, i32) {
    %c0_i32 = arith.constant 0 : i32
    %c0_i32_0 = arith.constant 0 : i32
    return %arg0, %c0_i32 : i32, i32
  }
  func.func @transform_2(%arg0: i32, %arg1: i32, %arg2: i32) -> (i32, i32) {
    %c0_i32 = arith.constant 0 : i32
    %c0_i32_0 = arith.constant 0 : i32
    %c0_i32_1 = arith.constant 0 : i32
    return %c0_i32, %c0_i32_0 : i32, i32
  }
  func.func @transform_3(%arg0: i32, %arg1: i32, %arg2: i32) -> (i32, i32) {
    %c0_i32 = arith.constant 0 : i32
    %c0_i32_0 = arith.constant 0 : i32
    %c0_i32_1 = arith.constant 0 : i32
    return %c0_i32, %c0_i32_0 : i32, i32
  }
  func.func @transform_4(%arg0: i32, %arg1: i32, %arg2: i32) -> (i32, i32) {
    %c0_i32 = arith.constant 0 : i32
    %c0_i32_0 = arith.constant 0 : i32
    %c0_i32_1 = arith.constant 0 : i32
    return %c0_i32, %c0_i32_0 : i32, i32
  }
  func.func @transform_5(%arg0: i32, %arg1: i32, %arg2: i32) -> (i32, i32) {
    %c0_i32 = arith.constant 0 : i32
    %c0_i32_0 = arith.constant 0 : i32
    %c0_i32_1 = arith.constant 0 : i32
    return %c0_i32, %c0_i32_0 : i32, i32
  }
  func.func @transform_6(%arg0: i32, %arg1: i32, %arg2: i32) -> (i32, i32) {
    %c0_i32 = arith.constant 0 : i32
    %c0_i32_0 = arith.constant 0 : i32
    return %c0_i32, %arg2 : i32, i32
  }
  func.func @transform_7(%arg0: i32, %arg1: i32, %arg2: i32) -> (i32, i32) {
    %c0_i32 = arith.constant 0 : i32
    %c0_i32_0 = arith.constant 0 : i32
    return %c0_i32, %arg2 : i32, i32
  }
  func.func @transform_8(%arg0: i32, %arg1: i32, %arg2: i32) -> (i32, i32) {
    %0 = arith.muli %arg2, %arg1 : i32
    %c0_i32 = arith.constant 0 : i32
    %c0_i32_0 = arith.constant 0 : i32
    return %c0_i32, %0 : i32, i32
  }
  func.func @transform_9(%arg0: i32, %arg1: i32, %arg2: i32) -> (i32, i32) {
    %0 = arith.muli %arg2, %arg1 : i32
    %c0_i32 = arith.constant 0 : i32
    %c0_i32_0 = arith.constant 0 : i32
    return %c0_i32, %0 : i32, i32
  }
  func.func @transform_10(%arg0: i32, %arg1: i32, %arg2: i32) -> (i32, i32) {
    %c0_i32 = arith.constant 0 : i32
    %c0_i32_0 = arith.constant 0 : i32
    %c0_i32_1 = arith.constant 0 : i32
    return %c0_i32, %c0_i32_0 : i32, i32
  }
  func.func @transform_11(%arg0: i32, %arg1: i32, %arg2: i32) -> (i32, i32) {
    %c0_i32 = arith.constant 0 : i32
    %c0_i32_0 = arith.constant 0 : i32
    %c0_i32_1 = arith.constant 0 : i32
    return %c0_i32, %c0_i32_0 : i32, i32
  }
  func.func @transform_12(%arg0: i32, %arg1: i32, %arg2: i32) -> (i32, i32) {
    %0 = arith.muli %arg2, %arg1 : i32
    %c0_i32 = arith.constant 0 : i32
    return %arg0, %0 : i32, i32
  }
  func.func @transform_13(%arg0: i32, %arg1: i32, %arg2: i32) -> (i32, i32) {
    %c0_i32 = arith.constant 0 : i32
    %c0_i32_0 = arith.constant 0 : i32
    return %arg0, %c0_i32 : i32, i32
  }
  func.func @transform_14(%arg0: i32, %arg1: i32, %arg2: i32) -> (i32, i32) {
    %0 = arith.muli %arg2, %arg1 : i32
    %c0_i32 = arith.constant 0 : i32
    return %arg0, %0 : i32, i32
  }
  func.func @transform_15(%arg0: i32, %arg1: i32, %arg2: i32) -> (i32, i32) {
    %0 = arith.muli %arg2, %arg1 : i32
    %c0_i32 = arith.constant 0 : i32
    return %arg0, %0 : i32, i32
  }
}

</mosaic_0001>

<llo_original>
// kernel: tpu_custom_call.1
$region0: #{tpu_custom_call.1}
  #allocation0 [shape = 'u32[]', space=smem, size = 0x4, offset = 0x4, fixed_abs, tag = 'smem constant byte address 0x4 - core index']
  #allocation1 [shape = 'u32[144,128]{1,0:T(1,128)}', space=vmem, size = 0x12000, scoped, tag = 'internal scratch']
  #allocation2 [shape = 'f32[128,128]{1,0:T(8,128)}', space=vmem, size = 0x10000, scoped, tag = 'scratch operand']
  #allocation3 [shape = 'f32[128,1]{1,0:T(8,128)}', space=vmem, size = 0x10000, scoped, tag = 'scratch operand']
  #allocation4 [shape = 'f32[1,1]{1,0:T(1,128)S(1)}', space=vmem, size = 0x200, scoped, tag = 'scoped memory for tpu_custom_call.1']
  %s0 = inlined_call_operand.vmem [shape: f32[256,16], index: 0, kind: input, shape index: {}]
  %s1 = inlined_call_operand.vmem [shape: f32[256,1], index: 1, kind: input, shape index: {}]
  %s2 = inlined_call_operand.vmem [shape: f32[16,128], index: 2, kind: input, shape index: {}]
  %s3 = inlined_call_operand.vmem [shape: f32[1,128], index: 3, kind: input, shape index: {}]
  %s4 = inlined_call_operand.hbm [shape: f32[128,128], index: 4, kind: input, shape index: {}]
  %s5 = inlined_call_operand.vmem [shape: f32[1,128], index: 5, kind: input, shape index: {}]
  %s6 = inlined_call_operand.vmem [shape: f32[128,256], index: 6, kind: input, shape index: {}]
  %s7 = inlined_call_operand.vmem [shape: f32[1,256], index: 7, kind: input, shape index: {}]
  %s8 = inlined_call_operand.vmem [shape: f32[128,256], index: 8, kind: input, shape index: {}]
  %s9 = inlined_call_operand.vmem [shape: f32[1,256], index: 9, kind: input, shape index: {}]
  %s10 = inlined_call_operand.vmem [shape: f32[1,128], index: 10, kind: input, shape index: {}]
  %s11 = inlined_call_operand.<no memory space> [shape: f32[1,1], index: 11, kind: input, shape index: {}]
  %s12 = inlined_call_operand.hbm [shape: f32[256,256], index: 12, kind: output, shape index: {0}]
  %s13 = inlined_call_operand.vmem [shape: f32[256,1], index: 13, kind: output, shape index: {1}]
  %s14 = inlined_call_operand.hbm [shape: f32[256,256], index: 14, kind: output, shape index: {2}]
  %s15 = inlined_call_operand.hbm [shape: f32[256,256], index: 15, kind: output, shape index: {3}]
  %16 = xla_tuple %s12, %s13, %s14, %s15
  %s17 = sld [smem:[#allocation0]]
  $region197: #{tpu_custom_call.1} parent=0
    _
  %s19 = ssub.s32 1, %s17
  %s20 = scalar_select 0, %s19, %s17
  %v21 = vstv %s11
  %22 = vst [vmem:[#allocation4] sm:$0x1] %v21
  $region1: #{tpu_custom_call.1} parent=0
    #allocation5 [shape = 'u8[65536]{0}', space=vmem, size = 0x10000, scoped, tag = 'input window, operand 4, single buffered']
    #allocation6 [shape = 's32[2]{0}', space=sflag, size = 0x8, scoped, tag = 'scoped memory for tpu_custom_call.1']
    #allocation7 [shape = 's32[2]{0}', space=sflag, size = 0x8, scoped, tag = 'scoped memory for tpu_custom_call.1']
    #allocation8 [shape = 'u8[131072]{0}', space=vmem, size = 0x20000, scoped, tag = 'input window, operand 6']
    #allocation9 [shape = 'u8[131072]{0}', space=vmem, size = 0x20000, scoped, tag = 'input window, operand 8']
    #allocation10 [shape = 'u8[131072]{0}', space=vmem, size = 0x20000, scoped, tag = 'output window, operand 0']
    #allocation11 [shape = 'u8[131072]{0}', space=vmem, size = 0x20000, scoped, tag = 'output window, operand 2']
    #allocation12 [shape = 's32[2]{0}', space=sflag, size = 0x8, scoped, tag = 'scoped memory for tpu_custom_call.1']
    #allocation13 [shape = 'u8[131072]{0}', space=vmem, size = 0x20000, scoped, tag = 'output window, operand 3']
    %23 = vsyncpa [#allocation6], 0
    %24 = vsyncpa [#allocation7], 0
    %s25 = scalar_lea.sflag [#allocation7], 1
    %26 = vsyncpa %s25, 0
    %27 = vsyncpa [#allocation12], 0
    %s28 = scalar_lea.sflag [#allocation12], 1
    %29 = vsyncpa %s28, 0
    loop: start=0, step=1, limit=10
    $region2: #{tpu_custom_call.1} parent=1 // loop_pre_header
      _
    $region3: #{tpu_custom_call.1} parent=1 // loop_header
      %s31 = sphi 0, %s35
      %p32 = scmp.ge.s32.totalorder %s31, 10
      %s38 = sphi 0, %s57
      %s39 = sphi 0, %s53
      %s40 = sphi 0, %s49
      %s41 = sphi 0, %s38
      %s42 = sphi 0, %s39
      %s43 = sphi 0, %s40
      %s44 = sphi 0, %s41
      %s45 = sphi 0, %s42
      %s46 = sphi 0, %s43
      %s60 = sphi 0, %s62
      %s63 = sphi 0, %s60
      %s64 = sphi 0, %s63
      %s80 = sphi 0, %s64
      %s86 = sphi 0, %s88
      %s89 = sphi 0, %s86
      %s90 = sphi 0, %s89
      %s106 = sphi 0, %s90
      %s110 = sphi 0, %s110
      %s112 = sphi 0, %s110
      %s113 = sphi 0, %s112
      %s127 = sphi 0, %s113
      %s131 = sphi 0, %s131
      %s133 = sphi 0, %s131
      %s134 = sphi 0, %s133
      %s148 = sphi 0, %s134
      %s152 = sphi 0, %s152
      %s154 = sphi 0, %s152
      %s155 = sphi 0, %s154
      %s169 = sphi 0, %s155
      %s173 = sphi 0, %s173
      %s175 = sphi 0, %s173
      %s176 = sphi 0, %s175
      %s190 = sphi 0, %s176
      %s196 = sphi 0, %s198
      %s199 = sphi 0, %s196
      %s200 = sphi 0, %s199
      %s216 = sphi 0, %s200
      %s222 = sphi 0, %s224
      %s225 = sphi 0, %s222
      %s226 = sphi 0, %s225
      %s242 = sphi 0, %s226
      %s250 = sphi 0, %s252
      %s253 = sphi 0, %s250
      %s254 = sphi 0, %s253
      %s270 = sphi 0, %s254
      %s278 = sphi 0, %s280
      %s281 = sphi 0, %s278
      %s282 = sphi 0, %s281
      %s298 = sphi 0, %s282
      %s302 = sphi 0, %s302
      %s304 = sphi 0, %s302
      %s305 = sphi 0, %s304
      %s319 = sphi 0, %s305
      %s323 = sphi 0, %s323
      %s325 = sphi 0, %s323
      %s326 = sphi 0, %s325
      %s340 = sphi 0, %s326
      %s350 = sphi 0, %s352
      %s353 = sphi 0, %s350
      %s354 = sphi 0, %s353
      %s370 = sphi 0, %s354
      %s376 = sphi 0, %s378
      %s379 = sphi 0, %s376
      %s380 = sphi 0, %s379
      %s396 = sphi 0, %s380
      %s406 = sphi 0, %s408
      %s409 = sphi 0, %s406
      %s410 = sphi 0, %s409
      %s426 = sphi 0, %s410
      %s436 = sphi 0, %s438
      %s439 = sphi 0, %s436
      %s440 = sphi 0, %s439
      %s456 = sphi 0, %s440
    $region4: #{tpu_custom_call.1} parent=1 // loop_header_branch
      %34 = sbr.rel (%p32) target = $region8
    $region5: #{tpu_custom_call.1} parent=1 // loop_body
      %s36 = ssub.s32 %s31, 1
      %s37 = ssub.s32 %s31, 2
      %s47 = sadd.s32 1, %s40
      %p48 = scmp.ge.s32.totalorder %s47, 2
      %s49 = scalar_select %p48, 0, %s47
      %s50 = sadd.s32 1, %s39
      %s51 = scalar_select %p48, %s50, %s39
      %p52 = scmp.ge.s32.totalorder %s51, 2
      %s53 = scalar_select %p52, 0, %s51
      %s54 = sadd.s32 1, %s38
      %s55 = scalar_select %p52, %s54, %s38
      %p56 = scmp.ge.s32.totalorder %s55, 2
      %s57 = scalar_select %p56, 0, %s55
      %s58 = ssub.s32 %s38, %s57
      %p59 = scmp.eq.s32.totalorder %s58, 0
      %s61 = sadd.s32 %s60, 1
      %s62 = scalar_select %p59, %s60, %s61
      %p65 = pneg %p59
      %p66 = scmp.eq.s32.totalorder %s31, 7
      %p67 = por %p65, %p66
      %p68 = scmp.ne.s32.totalorder %s60, %s63
      %p69 = scmp.eq.s32.totalorder %s31, 0
      %p70 = por %p68, %p69
      %p71 = scmp.ne.s32.totalorder %s60, %s63
      %p72 = scmp.eq.s32.totalorder %s36, 7
      %p73 = por %p71, %p72
      %p74 = scmp.ne.s32.totalorder %s63, %s64
      %p75 = scmp.eq.s32.totalorder %s36, 0
      %p76 = por %p74, %p75
      %p77 = scmp.ne.s32.totalorder %s63, %s64
      %p78 = scmp.eq.s32.totalorder %s37, 7
      %p79 = por %p77, %p78
      %p81 = scmp.ne.s32.totalorder %s64, %s80
      %p82 = scmp.eq.s32.totalorder %s37, 0
      %p83 = por %p81, %p82
      %s84 = ssub.s32 %s38, %s57
      %p85 = scmp.eq.s32.totalorder %s84, 0
      %s87 = sadd.s32 %s86, 1
      %s88 = scalar_select %p85, %s86, %s87
      %p91 = pneg %p85
      %p92 = scmp.eq.s32.totalorder %s31, 7
      %p93 = por %p91, %p92
      %p94 = scmp.ne.s32.totalorder %s86, %s89
      %p95 = scmp.eq.s32.totalorder %s31, 0
      %p96 = por %p94, %p95
      %p97 = scmp.ne.s32.totalorder %s86, %s89
      %p98 = scmp.eq.s32.totalorder %s36, 7
      %p99 = por %p97, %p98
      %p100 = scmp.ne.s32.totalorder %s89, %s90
      %p101 = scmp.eq.s32.totalorder %s36, 0
      %p102 = por %p100, %p101
      %p103 = scmp.ne.s32.totalorder %s89, %s90
      %p104 = scmp.eq.s32.totalorder %s37, 7
      %p105 = por %p103, %p104
      %p107 = scmp.ne.s32.totalorder %s90, %s106
      %p108 = scmp.eq.s32.totalorder %s37, 0
      %p109 = por %p107, %p108
      %s111 = sadd.s32 %s110, 1
      %p114 = scmp.eq.s32.totalorder %s31, 7
      %p115 = scmp.ne.s32.totalorder %s110, %s112
      %p116 = scmp.eq.s32.totalorder %s31, 0
      %p117 = por %p115, %p116
      %p118 = scmp.ne.s32.totalorder %s110, %s112
      %p119 = scmp.eq.s32.totalorder %s36, 7
      %p120 = por %p118, %p119
      %p121 = scmp.ne.s32.totalorder %s112, %s113
      %p122 = scmp.eq.s32.totalorder %s36, 0
      %p123 = por %p121, %p122
      %p124 = scmp.ne.s32.totalorder %s112, %s113
      %p125 = scmp.eq.s32.totalorder %s37, 7
      %p126 = por %p124, %p125
      %p128 = scmp.ne.s32.totalorder %s113, %s127
      %p129 = scmp.eq.s32.totalorder %s37, 0
      %p130 = por %p128, %p129
      %s132 = sadd.s32 %s131, 1
      %p135 = scmp.eq.s32.totalorder %s31, 7
      %p136 = scmp.ne.s32.totalorder %s131, %s133
      %p137 = scmp.eq.s32.totalorder %s31, 0
      %p138 = por %p136, %p137
      %p139 = scmp.ne.s32.totalorder %s131, %s133
      %p140 = scmp.eq.s32.totalorder %s36, 7
      %p141 = por %p139, %p140
      %p142 = scmp.ne.s32.totalorder %s133, %s134
      %p143 = scmp.eq.s32.totalorder %s36, 0
      %p144 = por %p142, %p143
      %p145 = scmp.ne.s32.totalorder %s133, %s134
      %p146 = scmp.eq.s32.totalorder %s37, 7
      %p147 = por %p145, %p146
      %p149 = scmp.ne.s32.totalorder %s134, %s148
      %p150 = scmp.eq.s32.totalorder %s37, 0
      %p151 = por %p149, %p150
      %s153 = sadd.s32 %s152, 1
      %p156 = scmp.eq.s32.totalorder %s31, 7
      %p157 = scmp.ne.s32.totalorder %s152, %s154
      %p158 = scmp.eq.s32.totalorder %s31, 0
      %p159 = por %p157, %p158
      %p160 = scmp.ne.s32.totalorder %s152, %s154
      %p161 = scmp.eq.s32.totalorder %s36, 7
      %p162 = por %p160, %p161
      %p163 = scmp.ne.s32.totalorder %s154, %s155
      %p164 = scmp.eq.s32.totalorder %s36, 0
      %p165 = por %p163, %p164
      %p166 = scmp.ne.s32.totalorder %s154, %s155
      %p167 = scmp.eq.s32.totalorder %s37, 7
      %p168 = por %p166, %p167
      %p170 = scmp.ne.s32.totalorder %s155, %s169
      %p171 = scmp.eq.s32.totalorder %s37, 0
      %p172 = por %p170, %p171
      %s174 = sadd.s32 %s173, 1
      %p177 = scmp.eq.s32.totalorder %s31, 7
      %p178 = scmp.ne.s32.totalorder %s173, %s175
      %p179 = scmp.eq.s32.totalorder %s31, 0
      %p180 = por %p178, %p179
      %p181 = scmp.ne.s32.totalorder %s173, %s175
      %p182 = scmp.eq.s32.totalorder %s36, 7
      %p183 = por %p181, %p182
      %p184 = scmp.ne.s32.totalorder %s175, %s176
      %p185 = scmp.eq.s32.totalorder %s36, 0
      %p186 = por %p184, %p185
      %p187 = scmp.ne.s32.totalorder %s175, %s176
      %p188 = scmp.eq.s32.totalorder %s37, 7
      %p189 = por %p187, %p188
      %p191 = scmp.ne.s32.totalorder %s176, %s190
      %p192 = scmp.eq.s32.totalorder %s37, 0
      %p193 = por %p191, %p192
      %s194 = ssub.s32 %s40, %s49
      %p195 = scmp.eq.s32.totalorder %s194, 0
      %s197 = sadd.s32 %s196, 1
      %s198 = scalar_select %p195, %s196, %s197
      %p201 = pneg %p195
      %p202 = scmp.eq.s32.totalorder %s31, 7
      %p203 = por %p201, %p202
      %p204 = scmp.ne.s32.totalorder %s196, %s199
      %p205 = scmp.eq.s32.totalorder %s31, 0
      %p206 = por %p204, %p205
      %p207 = scmp.ne.s32.totalorder %s196, %s199
      %p208 = scmp.eq.s32.totalorder %s36, 7
      %p209 = por %p207, %p208
      %p210 = scmp.ne.s32.totalorder %s199, %s200
      %p211 = scmp.eq.s32.totalorder %s36, 0
      %p212 = por %p210, %p211
      %p213 = scmp.ne.s32.totalorder %s199, %s200
      %p214 = scmp.eq.s32.totalorder %s37, 7
      %p215 = por %p213, %p214
      %p217 = scmp.ne.s32.totalorder %s200, %s216
      %p218 = scmp.eq.s32.totalorder %s37, 0
      %p219 = por %p217, %p218
      %s220 = ssub.s32 %s40, %s49
      %p221 = scmp.eq.s32.totalorder %s220, 0
      %s223 = sadd.s32 %s222, 1
      %s224 = scalar_select %p221, %s222, %s223
      %p227 = pneg %p221
      %p228 = scmp.eq.s32.totalorder %s31, 7
      %p229 = por %p227, %p228
      %p230 = scmp.ne.s32.totalorder %s222, %s225
      %p231 = scmp.eq.s32.totalorder %s31, 0
      %p232 = por %p230, %p231
      %p233 = scmp.ne.s32.totalorder %s222, %s225
      %p234 = scmp.eq.s32.totalorder %s36, 7
      %p235 = por %p233, %p234
      %p236 = scmp.ne.s32.totalorder %s225, %s226
      %p237 = scmp.eq.s32.totalorder %s36, 0
      %p238 = por %p236, %p237
      %p239 = scmp.ne.s32.totalorder %s225, %s226
      %p240 = scmp.eq.s32.totalorder %s37, 7
      %p241 = por %p239, %p240
      %p243 = scmp.ne.s32.totalorder %s226, %s242
      %p244 = scmp.eq.s32.totalorder %s37, 0
      %p245 = por %p243, %p244
      %s246 = smul.u32 %s40, %s39
      %s247 = smul.u32 %s49, %s53
      %s248 = ssub.s32 %s246, %s247
      %p249 = scmp.eq.s32.totalorder %s248, 0
      %s251 = sadd.s32 %s250, 1
      %s252 = scalar_select %p249, %s250, %s251
      %p255 = pneg %p249
      %p256 = scmp.eq.s32.totalorder %s31, 7
      %p257 = por %p255, %p256
      %p258 = scmp.ne.s32.totalorder %s250, %s253
      %p259 = scmp.eq.s32.totalorder %s31, 0
      %p260 = por %p258, %p259
      %p261 = scmp.ne.s32.totalorder %s250, %s253
      %p262 = scmp.eq.s32.totalorder %s36, 7
      %p263 = por %p261, %p262
      %p264 = scmp.ne.s32.totalorder %s253, %s254
      %p265 = scmp.eq.s32.totalorder %s36, 0
      %p266 = por %p264, %p265
      %p267 = scmp.ne.s32.totalorder %s253, %s254
      %p268 = scmp.eq.s32.totalorder %s37, 7
      %p269 = por %p267, %p268
      %p271 = scmp.ne.s32.totalorder %s254, %s270
      %p272 = scmp.eq.s32.totalorder %s37, 0
      %p273 = por %p271, %p272
      %s274 = smul.u32 %s40, %s39
      %s275 = smul.u32 %s49, %s53
      %s276 = ssub.s32 %s274, %s275
      %p277 = scmp.eq.s32.totalorder %s276, 0
      %s279 = sadd.s32 %s278, 1
      %s280 = scalar_select %p277, %s278, %s279
      %p283 = pneg %p277
      %p284 = scmp.eq.s32.totalorder %s31, 7
      %p285 = por %p283, %p284
      %p286 = scmp.ne.s32.totalorder %s278, %s281
      %p287 = scmp.eq.s32.totalorder %s31, 0
      %p288 = por %p286, %p287
      %p289 = scmp.ne.s32.totalorder %s278, %s281
      %p290 = scmp.eq.s32.totalorder %s36, 7
      %p291 = por %p289, %p290
      %p292 = scmp.ne.s32.totalorder %s281, %s282
      %p293 = scmp.eq.s32.totalorder %s36, 0
      %p294 = por %p292, %p293
      %p295 = scmp.ne.s32.totalorder %s281, %s282
      %p296 = scmp.eq.s32.totalorder %s37, 7
      %p297 = por %p295, %p296
      %p299 = scmp.ne.s32.totalorder %s282, %s298
      %p300 = scmp.eq.s32.totalorder %s37, 0
      %p301 = por %p299, %p300
      %s303 = sadd.s32 %s302, 1
      %p306 = scmp.eq.s32.totalorder %s31, 7
      %p307 = scmp.ne.s32.totalorder %s302, %s304
      %p308 = scmp.eq.s32.totalorder %s31, 0
      %p309 = por %p307, %p308
      %p310 = scmp.ne.s32.totalorder %s302, %s304
      %p311 = scmp.eq.s32.totalorder %s36, 7
      %p312 = por %p310, %p311
      %p313 = scmp.ne.s32.totalorder %s304, %s305
      %p314 = scmp.eq.s32.totalorder %s36, 0
      %p315 = por %p313, %p314
      %p316 = scmp.ne.s32.totalorder %s304, %s305
      %p317 = scmp.eq.s32.totalorder %s37, 7
      %p318 = por %p316, %p317
      %p320 = scmp.ne.s32.totalorder %s305, %s319
      %p321 = scmp.eq.s32.totalorder %s37, 0
      %p322 = por %p320, %p321
      %s324 = sadd.s32 %s323, 1
      %p327 = scmp.eq.s32.totalorder %s31, 7
      %p328 = scmp.ne.s32.totalorder %s323, %s325
      %p329 = scmp.eq.s32.totalorder %s31, 0
      %p330 = por %p328, %p329
      %p331 = scmp.ne.s32.totalorder %s323, %s325
      %p332 = scmp.eq.s32.totalorder %s36, 7
      %p333 = por %p331, %p332
      %p334 = scmp.ne.s32.totalorder %s325, %s326
      %p335 = scmp.eq.s32.totalorder %s36, 0
      %p336 = por %p334, %p335
      %p337 = scmp.ne.s32.totalorder %s325, %s326
      %p338 = scmp.eq.s32.totalorder %s37, 7
      %p339 = por %p337, %p338
      %p341 = scmp.ne.s32.totalorder %s326, %s340
      %p342 = scmp.eq.s32.totalorder %s37, 0
      %p343 = por %p341, %p342
      %s344 = smul.u32 %s40, %s39
      %s345 = smul.u32 %s49, %s53
      %s346 = ssub.s32 %s38, %s57
      %s347 = ssub.s32 %s344, %s345
      %s348 = sor.u32 %s346, %s347
      %p349 = scmp.eq.s32.totalorder %s348, 0
      %s351 = sadd.s32 %s350, 1
      %s352 = scalar_select %p349, %s350, %s351
      %p355 = pneg %p349
      %p356 = scmp.eq.s32.totalorder %s31, 7
      %p357 = por %p355, %p356
      %p358 = scmp.ne.s32.totalorder %s350, %s353
      %p359 = scmp.eq.s32.totalorder %s31, 0
      %p360 = por %p358, %p359
      %p361 = scmp.ne.s32.totalorder %s350, %s353
      %p362 = scmp.eq.s32.totalorder %s36, 7
      %p363 = por %p361, %p362
      %p364 = scmp.ne.s32.totalorder %s353, %s354
      %p365 = scmp.eq.s32.totalorder %s36, 0
      %p366 = por %p364, %p365
      %p367 = scmp.ne.s32.totalorder %s353, %s354
      %p368 = scmp.eq.s32.totalorder %s37, 7
      %p369 = por %p367, %p368
      %p371 = scmp.ne.s32.totalorder %s354, %s370
      %p372 = scmp.eq.s32.totalorder %s37, 0
      %p373 = por %p371, %p372
      %s374 = ssub.s32 %s38, %s57
      %p375 = scmp.eq.s32.totalorder %s374, 0
      %s377 = sadd.s32 %s376, 1
      %s378 = scalar_select %p375, %s376, %s377
      %p381 = pneg %p375
      %p382 = scmp.eq.s32.totalorder %s31, 7
      %p383 = por %p381, %p382
      %p384 = scmp.ne.s32.totalorder %s376, %s379
      %p385 = scmp.eq.s32.totalorder %s31, 0
      %p386 = por %p384, %p385
      %p387 = scmp.ne.s32.totalorder %s376, %s379
      %p388 = scmp.eq.s32.totalorder %s36, 7
      %p389 = por %p387, %p388
      %p390 = scmp.ne.s32.totalorder %s379, %s380
      %p391 = scmp.eq.s32.totalorder %s36, 0
      %p392 = por %p390, %p391
      %p393 = scmp.ne.s32.totalorder %s379, %s380
      %p394 = scmp.eq.s32.totalorder %s37, 7
      %p395 = por %p393, %p394
      %p397 = scmp.ne.s32.totalorder %s380, %s396
      %p398 = scmp.eq.s32.totalorder %s37, 0
      %p399 = por %p397, %p398
      %s400 = smul.u32 %s40, %s39
      %s401 = smul.u32 %s49, %s53
      %s402 = ssub.s32 %s38, %s57
      %s403 = ssub.s32 %s400, %s401
      %s404 = sor.u32 %s402, %s403
      %p405 = scmp.eq.s32.totalorder %s404, 0
      %s407 = sadd.s32 %s406, 1
      %s408 = scalar_select %p405, %s406, %s407
      %p411 = pneg %p405
      %p412 = scmp.eq.s32.totalorder %s31, 7
      %p413 = por %p411, %p412
      %p414 = scmp.ne.s32.totalorder %s406, %s409
      %p415 = scmp.eq.s32.totalorder %s31, 0
      %p416 = por %p414, %p415
      %p417 = scmp.ne.s32.totalorder %s406, %s409
      %p418 = scmp.eq.s32.totalorder %s36, 7
      %p419 = por %p417, %p418
      %p420 = scmp.ne.s32.totalorder %s409, %s410
      %p421 = scmp.eq.s32.totalorder %s36, 0
      %p422 = por %p420, %p421
      %p423 = scmp.ne.s32.totalorder %s409, %s410
      %p424 = scmp.eq.s32.totalorder %s37, 7
      %p425 = por %p423, %p424
      %p427 = scmp.ne.s32.totalorder %s410, %s426
      %p428 = scmp.eq.s32.totalorder %s37, 0
      %p429 = por %p427, %p428
      %s430 = smul.u32 %s40, %s39
      %s431 = smul.u32 %s49, %s53
      %s432 = ssub.s32 %s38, %s57
      %s433 = ssub.s32 %s430, %s431
      %s434 = sor.u32 %s432, %s433
      %p435 = scmp.eq.s32.totalorder %s434, 0
      %s437 = sadd.s32 %s436, 1
      %s438 = scalar_select %p435, %s436, %s437
      %p441 = pneg %p435
      %p442 = scmp.eq.s32.totalorder %s31, 7
      %p443 = por %p441, %p442
      %p444 = scmp.ne.s32.totalorder %s436, %s439
      %p445 = scmp.eq.s32.totalorder %s31, 0
      %p446 = por %p444, %p445
      %p447 = scmp.ne.s32.totalorder %s436, %s439
      %p448 = scmp.eq.s32.totalorder %s36, 7
      %p449 = por %p447, %p448
      %p450 = scmp.ne.s32.totalorder %s439, %s440
      %p451 = scmp.eq.s32.totalorder %s36, 0
      %p452 = por %p450, %p451
      %p453 = scmp.ne.s32.totalorder %s439, %s440
      %p454 = scmp.eq.s32.totalorder %s37, 7
      %p455 = por %p453, %p454
      %p457 = scmp.ne.s32.totalorder %s440, %s456
      %p458 = scmp.eq.s32.totalorder %s37, 0
      %p459 = por %p457, %p458
      %p460 = scmp.le.s32.totalorder 1, %s31
      %p461 = scmp.lt.s32.totalorder %s31, 9
      %p462 = pnand %p460, %p461
      %p463 = pneg %p462
      // Predicated region
      $region9: #{tpu_custom_call.1} parent=5 // pred_check
        _
      $region10: #{tpu_custom_call.1} parent=5 // pred_check_branch
        %465 = sbr.rel (%p462) target = $region12
      $region11: #{tpu_custom_call.1} parent=5 // pred_region
        %s466 = ssub.s32 %s31, 1
        // Predicated region
        $region13: #{tpu_custom_call.1} parent=11 // pred_check
          %p467 = pneg %p123
        $region14: #{tpu_custom_call.1} parent=11 // pred_check_branch
          %469 = sbr.rel (%p467) target = $region16
        $region15: #{tpu_custom_call.1} parent=11 // pred_region
          _
        $region16: #{tpu_custom_call.1} parent=11 // pred_fallthru
          _
        // Predicated region
        $region17: #{tpu_custom_call.1} parent=11 // pred_check
          %p470 = pneg %p144
        $region18: #{tpu_custom_call.1} parent=11 // pred_check_branch
          %472 = sbr.rel (%p470) target = $region20
        $region19: #{tpu_custom_call.1} parent=11 // pred_region
          _
        $region20: #{tpu_custom_call.1} parent=11 // pred_fallthru
          _
        // Predicated region
        $region21: #{tpu_custom_call.1} parent=11 // pred_check
          %p473 = pneg %p165
        $region22: #{tpu_custom_call.1} parent=11 // pred_check_branch
          %475 = sbr.rel (%p473) target = $region24
        $region23: #{tpu_custom_call.1} parent=11 // pred_region
          %s477 = ssub.s32 2048, 2048
          %478 = vsyncadd [#allocation6], %s477
          %s479 = sshll.u32 [#allocation5], 4
          %s480 = int_to_ptr.vmem [resolvable:$true] %s479
          %485 = dma.hbm_to_vmem [thread:$0]  %s4, 2048, %s480, [#allocation6], 128, 128, 8
        $region24: #{tpu_custom_call.1} parent=11 // pred_fallthru
          _
        // Predicated region
        $region25: #{tpu_custom_call.1} parent=11 // pred_check
          %p486 = pneg %p186
        $region26: #{tpu_custom_call.1} parent=11 // pred_check_branch
          %488 = sbr.rel (%p486) target = $region28
        $region27: #{tpu_custom_call.1} parent=11 // pred_region
          _
        $region28: #{tpu_custom_call.1} parent=11 // pred_fallthru
          _
        // Predicated region
        $region29: #{tpu_custom_call.1} parent=11 // pred_check
          %p489 = pneg %p315
        $region30: #{tpu_custom_call.1} parent=11 // pred_check_branch
          %491 = sbr.rel (%p489) target = $region32
        $region31: #{tpu_custom_call.1} parent=11 // pred_region
          _
        $region32: #{tpu_custom_call.1} parent=11 // pred_fallthru
          _
        // Predicated region
        $region33: #{tpu_custom_call.1} parent=11 // pred_check
          %p492 = pneg %p336
        $region34: #{tpu_custom_call.1} parent=11 // pred_check_branch
          %494 = sbr.rel (%p492) target = $region36
        $region35: #{tpu_custom_call.1} parent=11 // pred_region
          _
        $region36: #{tpu_custom_call.1} parent=11 // pred_fallthru
          _
      $region12: #{tpu_custom_call.1} parent=5 // pred_fallthru
        _
      %p495 = scmp.lt.s32.totalorder %s31, 8
      // Predicated region
      $region37: #{tpu_custom_call.1} parent=5 // pred_check
        %p496 = pneg %p495
      $region38: #{tpu_custom_call.1} parent=5 // pred_check_branch
        %498 = sbr.rel (%p496) target = $region40
      $region39: #{tpu_custom_call.1} parent=5 // pred_region
        // Predicated region
        $region41: #{tpu_custom_call.1} parent=39 // pred_check
          %p499 = pneg %p70
        $region42: #{tpu_custom_call.1} parent=39 // pred_check_branch
          %501 = sbr.rel (%p499) target = $region44
        $region43: #{tpu_custom_call.1} parent=39 // pred_region
          %s502 = smul.u32 16, %s38
          %p503 = scmp.lt.s32.totalorder %s502, 31
          %s504 = scalar_select %p503, %s502, 31
          %s505 = smul.addr %s504, 8
          %s506 = scalar_lea.vmem %s0, %s505
          %s507 = smul.u32 16, %s38
        $region44: #{tpu_custom_call.1} parent=39 // pred_fallthru
          _
        // Predicated region
        $region45: #{tpu_custom_call.1} parent=39 // pred_check
          %p508 = pneg %p96
        $region46: #{tpu_custom_call.1} parent=39 // pred_check_branch
          %510 = sbr.rel (%p508) target = $region48
        $region47: #{tpu_custom_call.1} parent=39 // pred_region
          %s511 = smul.u32 16, %s38
          %p512 = scmp.lt.s32.totalorder %s511, 31
          %s513 = scalar_select %p512, %s511, 31
          %s514 = smul.addr %s513, 8
          %s515 = scalar_lea.vmem %s1, %s514
          %s516 = smul.u32 16, %s38
        $region48: #{tpu_custom_call.1} parent=39 // pred_fallthru
          _
        // Predicated region
        $region49: #{tpu_custom_call.1} parent=39 // pred_check
          %p517 = pneg %p206
        $region50: #{tpu_custom_call.1} parent=39 // pred_check_branch
          %519 = sbr.rel (%p517) target = $region52
        $region51: #{tpu_custom_call.1} parent=39 // pred_region
          %s520 = sand.u32 %s196, 1
          %s521 = sand.u32 %s196, 1
          %s522 = smul.addr %s521, 128
          %s523 = scalar_lea.vmem [#allocation8], %s522
          %s524 = smul.addr %s40, 8
          %s525 = scalar_lea.vmem %s6, %s524
          // Predicated region
          $region53: #{tpu_custom_call.1} parent=51 // pred_check
            _
          $region54: #{tpu_custom_call.1} parent=51 // pred_check_branch
            %527 = sbr.rel (0) target = $region56
          $region55: #{tpu_custom_call.1} parent=51 // pred_region
            // Predicated region
            $region57: #{tpu_custom_call.1} parent=55 // pred_check
              _
            $region58: #{tpu_custom_call.1} parent=55 // pred_check_branch
              %529 = sbr.rel (0) target = $region60
            $region59: #{tpu_custom_call.1} parent=55 // pred_region
              // Predicated region
              $region72: #{tpu_custom_call.1} parent=59 // pred_check
                _
              $region73: #{tpu_custom_call.1} parent=59 // pred_check_branch
                %574 = sbr.rel (0) target = $region75
              $region74: #{tpu_custom_call.1} parent=59 // pred_region
                loop: start=0, step=1, limit=1
                $region76: #{tpu_custom_call.1} parent=74 // loop_pre_header
                  _
                $region77: #{tpu_custom_call.1} parent=74 // loop_header
                  %s576 = sphi 0, %s580
                  %p577 = scmp.ge.s32.totalorder %s576, 1
                  %s581 = sphi %s525, %s525
                  %s582 = sphi %s523, %s523
                $region78: #{tpu_custom_call.1} parent=74 // loop_header_branch
                  %579 = sbr.rel (%p577) target = $region82
                $region79: #{tpu_custom_call.1} parent=74 // loop_body
                  %v583 = vld [vmem:[%s581] sm:$0xff]
                  %584 = vst [vmem:[%s582] sm:$0xff] %v583
                  %v585 = vld [vmem:[%s581 + $0x10] sm:$0xff]
                  %586 = vst [vmem:[%s582 + $0x8] sm:$0xff] %v585
                  %v587 = vld [vmem:[%s581 + $0x20] sm:$0xff]
                  %588 = vst [vmem:[%s582 + $0x10] sm:$0xff] %v587
                  %v589 = vld [vmem:[%s581 + $0x30] sm:$0xff]
                  %590 = vst [vmem:[%s582 + $0x18] sm:$0xff] %v589
                  %v591 = vld [vmem:[%s581 + $0x40] sm:$0xff]
                  %592 = vst [vmem:[%s582 + $0x20] sm:$0xff] %v591
                  %v593 = vld [vmem:[%s581 + $0x50] sm:$0xff]
                  %594 = vst [vmem:[%s582 + $0x28] sm:$0xff] %v593
                  %v595 = vld [vmem:[%s581 + $0x60] sm:$0xff]
                  %596 = vst [vmem:[%s582 + $0x30] sm:$0xff] %v595
                  %v597 = vld [vmem:[%s581 + $0x70] sm:$0xff]
                  %598 = vst [vmem:[%s582 + $0x38] sm:$0xff] %v597
                  %v599 = vld [vmem:[%s581 + $0x80] sm:$0xff]
                  %600 = vst [vmem:[%s582 + $0x40] sm:$0xff] %v599
                  %v601 = vld [vmem:[%s581 + $0x90] sm:$0xff]
                  %602 = vst [vmem:[%s582 + $0x48] sm:$0xff] %v601
                  %v603 = vld [vmem:[%s581 + $0xa0] sm:$0xff]
                  %604 = vst [vmem:[%s582 + $0x50] sm:$0xff] %v603
                  %v605 = vld [vmem:[%s581 + $0xb0] sm:$0xff]
                  %606 = vst [vmem:[%s582 + $0x58] sm:$0xff] %v605
                  %v607 = vld [vmem:[%s581 + $0xc0] sm:$0xff]
                  %608 = vst [vmem:[%s582 + $0x60] sm:$0xff] %v607
                  %v609 = vld [vmem:[%s581 + $0xd0] sm:$0xff]
                  %610 = vst [vmem:[%s582 + $0x68] sm:$0xff] %v609
                  %v611 = vld [vmem:[%s581 + $0xe0] sm:$0xff]
                  %612 = vst [vmem:[%s582 + $0x70] sm:$0xff] %v611
                  %v613 = vld [vmem:[%s581 + $0xf0] sm:$0xff]
                  %614 = vst [vmem:[%s582 + $0x78] sm:$0xff] %v613
                $region80: #{tpu_custom_call.1} parent=74 // loop_footer
                  %s580 = sadd.s32 1, %s576
                $region81: #{tpu_custom_call.1} parent=74 // loop_footer_branch
                  %575 = sbr.rel target = $region77
                $region82: #{tpu_custom_call.1} parent=74 // loop_exit
                  _
              $region75: #{tpu_custom_call.1} parent=59 // pred_fallthru
                _
              // Predicated region
              $region83: #{tpu_custom_call.1} parent=59 // pred_check
                _
              $region84: #{tpu_custom_call.1} parent=59 // pred_check_branch
                %616 = sbr.rel target = $region86
              $region85: #{tpu_custom_call.1} parent=59 // pred_region
                _
              $region86: #{tpu_custom_call.1} parent=59 // pred_fallthru
                _
            $region60: #{tpu_custom_call.1} parent=55 // pred_fallthru
              _
            // Predicated region
            $region61: #{tpu_custom_call.1} parent=55 // pred_check
              _
            $region62: #{tpu_custom_call.1} parent=55 // pred_check_branch
              %531 = sbr.rel target = $region64
            $region63: #{tpu_custom_call.1} parent=55 // pred_region
              loop: start=0, step=1, limit=1
              $region65: #{tpu_custom_call.1} parent=63 // loop_pre_header
                _
              $region66: #{tpu_custom_call.1} parent=63 // loop_header
                %s534 = sphi 0, %s538
                %p535 = scmp.ge.s32.totalorder %s534, 1
                %s539 = sphi %s525, %s525
                %s540 = sphi %s523, %s523
              $region67: #{tpu_custom_call.1} parent=63 // loop_header_branch
                %537 = sbr.rel (%p535) target = $region71
              $region68: #{tpu_custom_call.1} parent=63 // loop_body
                %v541 = vld [vmem:[%s539] sm:$0xff]
                %542 = vst [vmem:[%s540] sm:$0xff] %v541
                %v543 = vld [vmem:[%s539 + $0x10] sm:$0xff]
                %544 = vst [vmem:[%s540 + $0x8] sm:$0xff] %v543
                %v545 = vld [vmem:[%s539 + $0x20] sm:$0xff]
                %546 = vst [vmem:[%s540 + $0x10] sm:$0xff] %v545
                %v547 = vld [vmem:[%s539 + $0x30] sm:$0xff]
                %548 = vst [vmem:[%s540 + $0x18] sm:$0xff] %v547
                %v549 = vld [vmem:[%s539 + $0x40] sm:$0xff]
                %550 = vst [vmem:[%s540 + $0x20] sm:$0xff] %v549
                %v551 = vld [vmem:[%s539 + $0x50] sm:$0xff]
                %552 = vst [vmem:[%s540 + $0x28] sm:$0xff] %v551
                %v553 = vld [vmem:[%s539 + $0x60] sm:$0xff]
                %554 = vst [vmem:[%s540 + $0x30] sm:$0xff] %v553
                %v555 = vld [vmem:[%s539 + $0x70] sm:$0xff]
                %556 = vst [vmem:[%s540 + $0x38] sm:$0xff] %v555
                %v557 = vld [vmem:[%s539 + $0x80] sm:$0xff]
                %558 = vst [vmem:[%s540 + $0x40] sm:$0xff] %v557
                %v559 = vld [vmem:[%s539 + $0x90] sm:$0xff]
                %560 = vst [vmem:[%s540 + $0x48] sm:$0xff] %v559
                %v561 = vld [vmem:[%s539 + $0xa0] sm:$0xff]
                %562 = vst [vmem:[%s540 + $0x50] sm:$0xff] %v561
                %v563 = vld [vmem:[%s539 + $0xb0] sm:$0xff]
                %564 = vst [vmem:[%s540 + $0x58] sm:$0xff] %v563
                %v565 = vld [vmem:[%s539 + $0xc0] sm:$0xff]
                %566 = vst [vmem:[%s540 + $0x60] sm:$0xff] %v565
                %v567 = vld [vmem:[%s539 + $0xd0] sm:$0xff]
                %568 = vst [vmem:[%s540 + $0x68] sm:$0xff] %v567
                %v569 = vld [vmem:[%s539 + $0xe0] sm:$0xff]
                %570 = vst [vmem:[%s540 + $0x70] sm:$0xff] %v569
                %v571 = vld [vmem:[%s539 + $0xf0] sm:$0xff]
                %572 = vst [vmem:[%s540 + $0x78] sm:$0xff] %v571
              $region69: #{tpu_custom_call.1} parent=63 // loop_footer
                %s538 = sadd.s32 1, %s534
              $region70: #{tpu_custom_call.1} parent=63 // loop_footer_branch
                %533 = sbr.rel target = $region66
              $region71: #{tpu_custom_call.1} parent=63 // loop_exit
                _
            $region64: #{tpu_custom_call.1} parent=55 // pred_fallthru
              _
          $region56: #{tpu_custom_call.1} parent=51 // pred_fallthru
            _
          %617 = vnop
        $region52: #{tpu_custom_call.1} parent=39 // pred_fallthru
          _
        // Predicated region
        $region87: #{tpu_custom_call.1} parent=39 // pred_check
          %p618 = pneg %p232
        $region88: #{tpu_custom_call.1} parent=39 // pred_check_branch
          %620 = sbr.rel (%p618) target = $region90
        $region89: #{tpu_custom_call.1} parent=39 // pred_region
          %p621 = scmp.lt.s32.totalorder %s40, 1
          %s622 = scalar_select %p621, %s40, 1
          %s623 = scalar_lea.vmem %s7, %s622
        $region90: #{tpu_custom_call.1} parent=39 // pred_fallthru
          _
        // Predicated region
        $region91: #{tpu_custom_call.1} parent=39 // pred_check
          %p624 = pneg %p260
        $region92: #{tpu_custom_call.1} parent=39 // pred_check_branch
          %626 = sbr.rel (%p624) target = $region94
        $region93: #{tpu_custom_call.1} parent=39 // pred_region
          %s627 = sand.u32 %s250, 1
          %s628 = sand.u32 %s250, 1
          %s629 = smul.addr %s628, 128
          %s630 = scalar_lea.vmem [#allocation9], %s629
          %s631 = smul.u32 %s40, %s39
          %s632 = smul.addr %s631, 8
          %s633 = scalar_lea.vmem %s8, %s632
          // Predicated region
          $region95: #{tpu_custom_call.1} parent=93 // pred_check
            _
          $region96: #{tpu_custom_call.1} parent=93 // pred_check_branch
            %635 = sbr.rel (0) target = $region98
          $region97: #{tpu_custom_call.1} parent=93 // pred_region
            // Predicated region
            $region99: #{tpu_custom_call.1} parent=97 // pred_check
              _
            $region100: #{tpu_custom_call.1} parent=97 // pred_check_branch
              %637 = sbr.rel (0) target = $region102
            $region101: #{tpu_custom_call.1} parent=97 // pred_region
              // Predicated region
              $region114: #{tpu_custom_call.1} parent=101 // pred_check
                _
              $region115: #{tpu_custom_call.1} parent=101 // pred_check_branch
                %682 = sbr.rel (0) target = $region117
              $region116: #{tpu_custom_call.1} parent=101 // pred_region
                loop: start=0, step=1, limit=1
                $region118: #{tpu_custom_call.1} parent=116 // loop_pre_header
                  _
                $region119: #{tpu_custom_call.1} parent=116 // loop_header
                  %s684 = sphi 0, %s688
                  %p685 = scmp.ge.s32.totalorder %s684, 1
                  %s689 = sphi %s633, %s633
                  %s690 = sphi %s630, %s630
                $region120: #{tpu_custom_call.1} parent=116 // loop_header_branch
                  %687 = sbr.rel (%p685) target = $region124
                $region121: #{tpu_custom_call.1} parent=116 // loop_body
                  %v691 = vld [vmem:[%s689] sm:$0xff]
                  %692 = vst [vmem:[%s690] sm:$0xff] %v691
                  %v693 = vld [vmem:[%s689 + $0x10] sm:$0xff]
                  %694 = vst [vmem:[%s690 + $0x8] sm:$0xff] %v693
                  %v695 = vld [vmem:[%s689 + $0x20] sm:$0xff]
                  %696 = vst [vmem:[%s690 + $0x10] sm:$0xff] %v695
                  %v697 = vld [vmem:[%s689 + $0x30] sm:$0xff]
                  %698 = vst [vmem:[%s690 + $0x18] sm:$0xff] %v697
                  %v699 = vld [vmem:[%s689 + $0x40] sm:$0xff]
                  %700 = vst [vmem:[%s690 + $0x20] sm:$0xff] %v699
                  %v701 = vld [vmem:[%s689 + $0x50] sm:$0xff]
                  %702 = vst [vmem:[%s690 + $0x28] sm:$0xff] %v701
                  %v703 = vld [vmem:[%s689 + $0x60] sm:$0xff]
                  %704 = vst [vmem:[%s690 + $0x30] sm:$0xff] %v703
                  %v705 = vld [vmem:[%s689 + $0x70] sm:$0xff]
                  %706 = vst [vmem:[%s690 + $0x38] sm:$0xff] %v705
                  %v707 = vld [vmem:[%s689 + $0x80] sm:$0xff]
                  %708 = vst [vmem:[%s690 + $0x40] sm:$0xff] %v707
                  %v709 = vld [vmem:[%s689 + $0x90] sm:$0xff]
                  %710 = vst [vmem:[%s690 + $0x48] sm:$0xff] %v709
                  %v711 = vld [vmem:[%s689 + $0xa0] sm:$0xff]
                  %712 = vst [vmem:[%s690 + $0x50] sm:$0xff] %v711
                  %v713 = vld [vmem:[%s689 + $0xb0] sm:$0xff]
                  %714 = vst [vmem:[%s690 + $0x58] sm:$0xff] %v713
                  %v715 = vld [vmem:[%s689 + $0xc0] sm:$0xff]
                  %716 = vst [vmem:[%s690 + $0x60] sm:$0xff] %v715
                  %v717 = vld [vmem:[%s689 + $0xd0] sm:$0xff]
                  %718 = vst [vmem:[%s690 + $0x68] sm:$0xff] %v717
                  %v719 = vld [vmem:[%s689 + $0xe0] sm:$0xff]
                  %720 = vst [vmem:[%s690 + $0x70] sm:$0xff] %v719
                  %v721 = vld [vmem:[%s689 + $0xf0] sm:$0xff]
                  %722 = vst [vmem:[%s690 + $0x78] sm:$0xff] %v721
                $region122: #{tpu_custom_call.1} parent=116 // loop_footer
                  %s688 = sadd.s32 1, %s684
                $region123: #{tpu_custom_call.1} parent=116 // loop_footer_branch
                  %683 = sbr.rel target = $region119
                $region124: #{tpu_custom_call.1} parent=116 // loop_exit
                  _
              $region117: #{tpu_custom_call.1} parent=101 // pred_fallthru
                _
              // Predicated region
              $region125: #{tpu_custom_call.1} parent=101 // pred_check
                _
              $region126: #{tpu_custom_call.1} parent=101 // pred_check_branch
                %724 = sbr.rel target = $region128
              $region127: #{tpu_custom_call.1} parent=101 // pred_region
                _
              $region128: #{tpu_custom_call.1} parent=101 // pred_fallthru
                _
            $region102: #{tpu_custom_call.1} parent=97 // pred_fallthru
              _
            // Predicated region
            $region103: #{tpu_custom_call.1} parent=97 // pred_check
              _
            $region104: #{tpu_custom_call.1} parent=97 // pred_check_branch
              %639 = sbr.rel target = $region106
            $region105: #{tpu_custom_call.1} parent=97 // pred_region
              loop: start=0, step=1, limit=1
              $region107: #{tpu_custom_call.1} parent=105 // loop_pre_header
                _
              $region108: #{tpu_custom_call.1} parent=105 // loop_header
                %s642 = sphi 0, %s646
                %p643 = scmp.ge.s32.totalorder %s642, 1
                %s647 = sphi %s633, %s633
                %s648 = sphi %s630, %s630
              $region109: #{tpu_custom_call.1} parent=105 // loop_header_branch
                %645 = sbr.rel (%p643) target = $region113
              $region110: #{tpu_custom_call.1} parent=105 // loop_body
                %v649 = vld [vmem:[%s647] sm:$0xff]
                %650 = vst [vmem:[%s648] sm:$0xff] %v649
                %v651 = vld [vmem:[%s647 + $0x10] sm:$0xff]
                %652 = vst [vmem:[%s648 + $0x8] sm:$0xff] %v651
                %v653 = vld [vmem:[%s647 + $0x20] sm:$0xff]
                %654 = vst [vmem:[%s648 + $0x10] sm:$0xff] %v653
                %v655 = vld [vmem:[%s647 + $0x30] sm:$0xff]
                %656 = vst [vmem:[%s648 + $0x18] sm:$0xff] %v655
                %v657 = vld [vmem:[%s647 + $0x40] sm:$0xff]
                %658 = vst [vmem:[%s648 + $0x20] sm:$0xff] %v657
                %v659 = vld [vmem:[%s647 + $0x50] sm:$0xff]
                %660 = vst [vmem:[%s648 + $0x28] sm:$0xff] %v659
                %v661 = vld [vmem:[%s647 + $0x60] sm:$0xff]
                %662 = vst [vmem:[%s648 + $0x30] sm:$0xff] %v661
                %v663 = vld [vmem:[%s647 + $0x70] sm:$0xff]
                %664 = vst [vmem:[%s648 + $0x38] sm:$0xff] %v663
                %v665 = vld [vmem:[%s647 + $0x80] sm:$0xff]
                %666 = vst [vmem:[%s648 + $0x40] sm:$0xff] %v665
                %v667 = vld [vmem:[%s647 + $0x90] sm:$0xff]
                %668 = vst [vmem:[%s648 + $0x48] sm:$0xff] %v667
                %v669 = vld [vmem:[%s647 + $0xa0] sm:$0xff]
                %670 = vst [vmem:[%s648 + $0x50] sm:$0xff] %v669
                %v671 = vld [vmem:[%s647 + $0xb0] sm:$0xff]
                %672 = vst [vmem:[%s648 + $0x58] sm:$0xff] %v671
                %v673 = vld [vmem:[%s647 + $0xc0] sm:$0xff]
                %674 = vst [vmem:[%s648 + $0x60] sm:$0xff] %v673
                %v675 = vld [vmem:[%s647 + $0xd0] sm:$0xff]
                %676 = vst [vmem:[%s648 + $0x68] sm:$0xff] %v675
                %v677 = vld [vmem:[%s647 + $0xe0] sm:$0xff]
                %678 = vst [vmem:[%s648 + $0x70] sm:$0xff] %v677
                %v679 = vld [vmem:[%s647 + $0xf0] sm:$0xff]
                %680 = vst [vmem:[%s648 + $0x78] sm:$0xff] %v679
              $region111: #{tpu_custom_call.1} parent=105 // loop_footer
                %s646 = sadd.s32 1, %s642
              $region112: #{tpu_custom_call.1} parent=105 // loop_footer_branch
                %641 = sbr.rel target = $region108
              $region113: #{tpu_custom_call.1} parent=105 // loop_exit
                _
            $region106: #{tpu_custom_call.1} parent=97 // pred_fallthru
              _
          $region98: #{tpu_custom_call.1} parent=93 // pred_fallthru
            _
          %725 = vnop
        $region94: #{tpu_custom_call.1} parent=39 // pred_fallthru
          _
        // Predicated region
        $region129: #{tpu_custom_call.1} parent=39 // pred_check
          %p726 = pneg %p288
        $region130: #{tpu_custom_call.1} parent=39 // pred_check_branch
          %728 = sbr.rel (%p726) target = $region132
        $region131: #{tpu_custom_call.1} parent=39 // pred_region
          %s729 = smul.u32 %s40, %s39
          %p730 = scmp.lt.s32.totalorder %s729, 1
          %s731 = scalar_select %p730, %s729, 1
          %s732 = scalar_lea.vmem %s9, %s731
          %s733 = smul.u32 %s40, %s39
        $region132: #{tpu_custom_call.1} parent=39 // pred_fallthru
          _
      $region40: #{tpu_custom_call.1} parent=5 // pred_fallthru
        _
      %p734 = scmp.le.s32.totalorder 1, %s31
      %p735 = scmp.lt.s32.totalorder %s31, 9
      %p736 = pnand %p734, %p735
      %p737 = pneg %p736
      // Predicated region
      $region133: #{tpu_custom_call.1} parent=5 // pred_check
        _
      $region134: #{tpu_custom_call.1} parent=5 // pred_check_branch
        %739 = sbr.rel (%p736) target = $region136
      $region135: #{tpu_custom_call.1} parent=5 // pred_region
        %s740 = ssub.s32 %s31, 1
        // Predicated region
        $region137: #{tpu_custom_call.1} parent=135 // pred_check
          %p741 = pneg %p165
        $region138: #{tpu_custom_call.1} parent=135 // pred_check_branch
          %743 = sbr.rel (%p741) target = $region140
        $region139: #{tpu_custom_call.1} parent=135 // pred_region
          %744 = dma.done [#allocation6], 2048
        $region140: #{tpu_custom_call.1} parent=135 // pred_fallthru
          _
        %s745 = sand.u32 %s199, 1
        %s746 = sand.u32 %s199, 1
        %s747 = smul.addr %s746, 128
        %s748 = scalar_lea.vmem [#allocation8], %s747
        // Predicated region
        $region141: #{tpu_custom_call.1} parent=135 // pred_check
          %p749 = pneg %p212
        $region142: #{tpu_custom_call.1} parent=135 // pred_check_branch
          %751 = sbr.rel (%p749) target = $region144
        $region143: #{tpu_custom_call.1} parent=135 // pred_region
          _
        $region144: #{tpu_custom_call.1} parent=135 // pred_fallthru
          _
        %s752 = sand.u32 %s253, 1
        %s753 = sand.u32 %s253, 1
        %s754 = smul.addr %s753, 128
        %s755 = scalar_lea.vmem [#allocation9], %s754
        // Predicated region
        $region145: #{tpu_custom_call.1} parent=135 // pred_check
          %p756 = pneg %p266
        $region146: #{tpu_custom_call.1} parent=135 // pred_check_branch
          %758 = sbr.rel (%p756) target = $region148
        $region147: #{tpu_custom_call.1} parent=135 // pred_region
          _
        $region148: #{tpu_custom_call.1} parent=135 // pred_fallthru
          _
        %s759 = smul.u32 16, %s41
        %p760 = scmp.lt.s32.totalorder %s759, 31
        %s761 = scalar_select %p760, %s759, 31
        %s762 = smul.addr %s761, 8
        %s763 = scalar_lea.vmem %s0, %s762
        %p764 = pneg %p76
        %p765 = pneg %p73
        %s766 = smul.u32 16, %s41
        %p767 = scmp.lt.s32.totalorder %s766, 31
        %s768 = scalar_select %p767, %s766, 31
        %s769 = smul.addr %s768, 8
        %s770 = scalar_lea.vmem %s1, %s769
        %p771 = pneg %p102
        %p772 = pneg %p99
        %p773 = pneg %p123
        %p774 = pneg %p120
        %p775 = pneg %p144
        %p776 = pneg %p141
        %p777 = pneg %p165
        %p778 = pneg %p162
        %p779 = pneg %p186
        %p780 = pneg %p183
        %s781 = sand.u32 %s199, 1
        %s782 = sand.u32 %s199, 1
        %s783 = smul.addr %s782, 128
        %s784 = scalar_lea.vmem [#allocation8], %s783
        %p785 = pneg %p212
        %p786 = pneg %p209
        %p787 = scmp.lt.s32.totalorder %s43, 1
        %s788 = scalar_select %p787, %s43, 1
        %s789 = scalar_lea.vmem %s7, %s788
        %p790 = pneg %p238
        %p791 = pneg %p235
        %s792 = sand.u32 %s253, 1
        %s793 = sand.u32 %s253, 1
        %s794 = smul.addr %s793, 128
        %s795 = scalar_lea.vmem [#allocation9], %s794
        %p796 = pneg %p266
        %p797 = pneg %p263
        %s798 = smul.u32 %s43, %s42
        %p799 = scmp.lt.s32.totalorder %s798, 1
        %s800 = scalar_select %p799, %s798, 1
        %s801 = scalar_lea.vmem %s9, %s800
        %p802 = pneg %p294
        %p803 = pneg %p291
        %p804 = pneg %p315
        %p805 = pneg %p312
        %p806 = pneg %p336
        %p807 = pneg %p333
        %p808 = pneg %p366
        %p809 = pneg %p363
        %s810 = sand.u32 %s353, 1
        %s811 = scalar_lea.sflag [#allocation7], %s810
        %s812 = sand.u32 %s353, 1
        %s813 = smul.addr %s812, 128
        %s814 = scalar_lea.vmem [#allocation10], %s813
        %p815 = pneg %p392
        %p816 = pneg %p389
        %s817 = smul.u32 16, %s41
        %p818 = scmp.lt.s32.totalorder %s817, 31
        %s819 = scalar_select %p818, %s817, 31
        %s820 = smul.addr %s819, 8
        %s821 = scalar_lea.vmem %s13, %s820
        %p822 = pneg %p422
        %p823 = pneg %p419
        %s824 = sand.u32 %s36, 1
        %s825 = scalar_lea.sflag [#allocation12], %s824
        %s826 = sand.u32 %s409, 1
        %s827 = smul.addr %s826, 128
        %s828 = scalar_lea.vmem [#allocation11], %s827
        %p829 = pneg %p452
        %p830 = pneg %p449
        %s831 = sand.u32 %s36, 1
        %s832 = scalar_lea.sflag [#allocation12], %s831
        %s833 = sand.u32 %s439, 1
        %s834 = smul.addr %s833, 128
        %s835 = scalar_lea.vmem [#allocation13], %s834
        %s836 = smul.u32 16, %s41
        %p837 = scmp.lt.s32.totalorder %s836, 31
        %s838 = scalar_select %p837, %s836, 31
        %s839 = smul.addr %s838, 8
        %s840 = scalar_lea.vmem %s0, %s839
        %s841 = smul.u32 16, %s41
        %s842 = smul.u32 16, %s41
        %p843 = scmp.lt.s32.totalorder %s842, 31
        %s844 = scalar_select %p843, %s842, 31
        %s845 = smul.addr %s844, 8
        %s846 = scalar_lea.vmem %s1, %s845
        %s847 = smul.u32 16, %s41
        %p848 = scmp.lt.s32.totalorder %s43, 1
        %s849 = scalar_select %p848, %s43, 1
        %s850 = scalar_lea.vmem %s7, %s849
        %s851 = smul.u32 %s43, %s42
        %s852 = smul.u32 %s43, %s42
        %p853 = scmp.lt.s32.totalorder %s852, 1
        %s854 = scalar_select %p853, %s852, 1
        %s855 = scalar_lea.vmem %s9, %s854
        %s856 = smul.u32 %s43, %s42
        %s857 = smul.u32 %s43, %s42
        %s858 = smul.u32 16, %s41
        %s859 = smul.u32 16, %s41
        %p860 = scmp.lt.s32.totalorder %s859, 31
        %s861 = scalar_select %p860, %s859, 31
        %s862 = smul.addr %s861, 8
        %s863 = scalar_lea.vmem %s13, %s862
        %s864 = smul.u32 16, %s41
        %s865 = smul.u32 %s43, %s42
        %s866 = smul.u32 16, %s41
        %s867 = smul.u32 %s43, %s42
        %s868 = smul.u32 16, %s41
        %p869 = scmp.eq.s32.totalorder %s42, 0
        %p870 = scmp.eq.s32.totalorder %s43, 0
        %p871 = pnand %p869, %p870
        %p872 = pneg %p871
        // Predicated region
        $region149: #{tpu_custom_call.1} parent=135 // pred_check
          _
        $region150: #{tpu_custom_call.1} parent=135 // pred_check_branch
          %874 = sbr.rel (%p871) target = $region152
        $region151: #{tpu_custom_call.1} parent=135 // pred_region
          %v875 = vld [vmem:[%s840] sm:$0xff]
          %v876 = vld [vmem:[%s840 + $0x8] sm:$0xff]
          %v877 = vld [vmem:[%s840 + $0x10] sm:$0xff]
          %v878 = vld [vmem:[%s840 + $0x18] sm:$0xff]
          %v879 = vld [vmem:[%s840 + $0x20] sm:$0xff]
          %v880 = vld [vmem:[%s840 + $0x28] sm:$0xff]
          %v881 = vld [vmem:[%s840 + $0x30] sm:$0xff]
          %v882 = vld [vmem:[%s840 + $0x38] sm:$0xff]
          %v883 = vld [vmem:[%s840 + $0x40] sm:$0xff]
          %v884 = vld [vmem:[%s840 + $0x48] sm:$0xff]
          %v885 = vld [vmem:[%s840 + $0x50] sm:$0xff]
          %v886 = vld [vmem:[%s840 + $0x58] sm:$0xff]
          %v887 = vld [vmem:[%s840 + $0x60] sm:$0xff]
          %v888 = vld [vmem:[%s840 + $0x68] sm:$0xff]
          %v889 = vld [vmem:[%s840 + $0x70] sm:$0xff]
          %v890 = vld [vmem:[%s840 + $0x78] sm:$0xff]
          %v891 = vld [vmem:[%s2] sm:$0xff]
          %v892 = vld [vmem:[%s2 + $0x8] sm:$0xff]
          %v893 = vld [vmem:[%s3] sm:$0x1]
          %v895 = vlaneseq
          %v896 = vshrl.u32 %v895, 7
          %v897 = vsub.s32 0, %v896
          %v898 = vrot.slane %v893, %v897
          %vm900 = vcmask 130048
          %v902 = vsel %vm900, %v875, 0
          %v905 = vsel %vm900, %v876, 0
          %v908 = vsel %vm900, %v877, 0
          %v911 = vsel %vm900, %v878, 0
          %v914 = vsel %vm900, %v879, 0
          %v917 = vsel %vm900, %v880, 0
          %v920 = vsel %vm900, %v881, 0
          %v923 = vsel %vm900, %v882, 0
          %v926 = vsel %vm900, %v883, 0
          %v929 = vsel %vm900, %v884, 0
          %v932 = vsel %vm900, %v885, 0
          %v935 = vsel %vm900, %v886, 0
          %v938 = vsel %vm900, %v887, 0
          %v941 = vsel %vm900, %v888, 0
          %v944 = vsel %vm900, %v889, 0
          %v947 = vsel %vm900, %v890, 0
          %949 = vmatprep.subr.mxu0 0.0
          %950 = vmatpush1.msra.mxu0 %v891
          %951 = vmatprep.subr.mxu0 0.0
          %952 = vmatpush1.msra.mxu0 %v892
          %953 = vmatprep.subr.mxu0 0.0
          %954 = vmatpush1.msra.mxu0 0.0
          %955 = vmatprep.subr.mxu0 0.0
          %956 = vmatpush1.msra.mxu0 0.0
          %957 = vmatprep.subr.mxu0 0.0
          %958 = vmatpush1.msra.mxu0 0.0
          %959 = vmatprep.subr.mxu0 0.0
          %960 = vmatpush1.msra.mxu0 0.0
          %961 = vmatprep.subr.mxu0 0.0
          %962 = vmatpush1.msra.mxu0 0.0
          %963 = vmatprep.subr.mxu0 0.0
          %964 = vmatpush1.msra.mxu0 0.0
          %965 = vmatprep.subr.mxu0 0.0
          %966 = vmatpush1.msra.mxu0 0.0
          %967 = vmatprep.subr.mxu0 0.0
          %968 = vmatpush1.msra.mxu0 0.0
          %969 = vmatprep.subr.mxu0 0.0
          %970 = vmatpush1.msra.mxu0 0.0
          %971 = vmatprep.subr.mxu0 0.0
          %972 = vmatpush1.msra.mxu0 0.0
          %973 = vmatprep.subr.mxu0 0.0
          %974 = vmatpush1.msra.mxu0 0.0
          %975 = vmatprep.subr.mxu0 0.0
          %976 = vmatpush1.msra.mxu0 0.0
          %977 = vmatprep.subr.mxu0 0.0
          %978 = vmatpush1.msra.mxu0 0.0
          %979 = vmatprep.subr.mxu0 0.0
          %980 = vmatpush1.msra.mxu0 0.0
          %981 = vmatprep.subr.mxu0 0.0
          %982 = vmatpush1.msra.mxu0 0.0
          %983 = vmatprep.subr.mxu0 0.0
          %984 = vmatpush1.msra.mxu0 0.0
          %985 = vmatprep.subr.mxu0 0.0
          %986 = vmatpush1.msra.mxu0 0.0
          %987 = vmatprep.subr.mxu0 0.0
          %988 = vmatpush1.msra.mxu0 0.0
          %989 = vmatprep.subr.mxu0 0.0
          %990 = vmatpush1.msra.mxu0 0.0
          %991 = vmatprep.subr.mxu0 0.0
          %992 = vmatpush1.msra.mxu0 0.0
          %993 = vmatprep.subr.mxu0 0.0
          %994 = vmatpush1.msra.mxu0 0.0
          %995 = vmatprep.subr.mxu0 0.0
          %996 = vmatpush1.msra.mxu0 0.0
          %997 = vmatprep.subr.mxu0 0.0
          %998 = vmatpush1.msra.mxu0 0.0
          %999 = vmatprep.subr.mxu0 0.0
          %1000 = vmatpush1.msra.mxu0 0.0
          %1001 = vmatprep.subr.mxu0 0.0
          %1002 = vmatpush1.msra.mxu0 0.0
          %1003 = vmatprep.subr.mxu0 0.0
          %1004 = vmatpush1.msra.mxu0 0.0
          %1005 = vmatprep.subr.mxu0 0.0
          %1006 = vmatpush1.msra.mxu0 0.0
          %1007 = vmatprep.subr.mxu0 0.0
          %1008 = vmatpush1.msra.mxu0 0.0
          %1009 = vmatprep.subr.mxu0 0.0
          %1010 = vmatpush1.msra.mxu0 0.0
          %1011 = vmatprep.subr.mxu0 0.0
          %1012 = vmatpush1.msra.mxu0 0.0
          %1013 = vmatprep.mubr.f32.mxu0 0.0
          %1014 = vmatmul.mubr.f32.gmra.mrb[0].mxu0 %v902
          %v1015 = vpop.f32.mrb[0].mxu0
          %v1016 = vadd.f32 %v898, %v1015
          %v1017 = vpop.f32.mrb[0].mxu0
          %1018 = vmatprep.mubr.f32.mxu0 0.0
          %1019 = vmatmul.mubr.f32.gmra.mrb[0].mxu0 %v905
          %v1020 = vpop.f32.mrb[0].mxu0
          %v1021 = vadd.f32 %v898, %v1020
          %v1022 = vpop.f32.mrb[0].mxu0
          %1023 = vmatprep.mubr.f32.mxu0 0.0
          %1024 = vmatmul.mubr.f32.gmra.mrb[0].mxu0 %v908
          %v1025 = vpop.f32.mrb[0].mxu0
          %v1026 = vadd.f32 %v898, %v1025
          %v1027 = vpop.f32.mrb[0].mxu0
          %1028 = vmatprep.mubr.f32.mxu0 0.0
          %1029 = vmatmul.mubr.f32.gmra.mrb[0].mxu0 %v911
          %v1030 = vpop.f32.mrb[0].mxu0
          %v1031 = vadd.f32 %v898, %v1030
          %v1032 = vpop.f32.mrb[0].mxu0
          %1033 = vmatprep.mubr.f32.mxu0 0.0
          %1034 = vmatmul.mubr.f32.gmra.mrb[0].mxu0 %v914
          %v1035 = vpop.f32.mrb[0].mxu0
          %v1036 = vadd.f32 %v898, %v1035
          %v1037 = vpop.f32.mrb[0].mxu0
          %1038 = vmatprep.mubr.f32.mxu0 0.0
          %1039 = vmatmul.mubr.f32.gmra.mrb[0].mxu0 %v917
          %v1040 = vpop.f32.mrb[0].mxu0
          %v1041 = vadd.f32 %v898, %v1040
          %v1042 = vpop.f32.mrb[0].mxu0
          %1043 = vmatprep.mubr.f32.mxu0 0.0
          %1044 = vmatmul.mubr.f32.gmra.mrb[0].mxu0 %v920
          %v1045 = vpop.f32.mrb[0].mxu0
          %v1046 = vadd.f32 %v898, %v1045
          %v1047 = vpop.f32.mrb[0].mxu0
          %1048 = vmatprep.mubr.f32.mxu0 0.0
          %1049 = vmatmul.mubr.f32.gmra.mrb[0].mxu0 %v923
          %v1050 = vpop.f32.mrb[0].mxu0
          %v1051 = vadd.f32 %v898, %v1050
          %v1052 = vpop.f32.mrb[0].mxu0
          %1053 = vmatprep.mubr.f32.mxu0 0.0
          %1054 = vmatmul.mubr.f32.gmra.mrb[0].mxu0 %v926
          %v1055 = vpop.f32.mrb[0].mxu0
          %v1056 = vadd.f32 %v898, %v1055
          %v1057 = vpop.f32.mrb[0].mxu0
          %1058 = vmatprep.mubr.f32.mxu0 0.0
          %1059 = vmatmul.mubr.f32.gmra.mrb[0].mxu0 %v929
          %v1060 = vpop.f32.mrb[0].mxu0
          %v1061 = vadd.f32 %v898, %v1060
          %v1062 = vpop.f32.mrb[0].mxu0
          %1063 = vmatprep.mubr.f32.mxu0 0.0
          %1064 = vmatmul.mubr.f32.gmra.mrb[0].mxu0 %v932
          %v1065 = vpop.f32.mrb[0].mxu0
          %v1066 = vadd.f32 %v898, %v1065
          %v1067 = vpop.f32.mrb[0].mxu0
          %1068 = vmatprep.mubr.f32.mxu0 0.0
          %1069 = vmatmul.mubr.f32.gmra.mrb[0].mxu0 %v935
          %v1070 = vpop.f32.mrb[0].mxu0
          %v1071 = vadd.f32 %v898, %v1070
          %v1072 = vpop.f32.mrb[0].mxu0
          %1073 = vmatprep.mubr.f32.mxu0 0.0
          %1074 = vmatmul.mubr.f32.gmra.mrb[0].mxu0 %v938
          %v1075 = vpop.f32.mrb[0].mxu0
          %v1076 = vadd.f32 %v898, %v1075
          %v1077 = vpop.f32.mrb[0].mxu0
          %1078 = vmatprep.mubr.f32.mxu0 0.0
          %1079 = vmatmul.mubr.f32.gmra.mrb[0].mxu0 %v941
          %v1080 = vpop.f32.mrb[0].mxu0
          %v1081 = vadd.f32 %v898, %v1080
          %v1082 = vpop.f32.mrb[0].mxu0
          %1083 = vmatprep.mubr.f32.mxu0 0.0
          %1084 = vmatmul.mubr.f32.gmra.mrb[0].mxu0 %v944
          %v1085 = vpop.f32.mrb[0].mxu0
          %v1086 = vadd.f32 %v898, %v1085
          %v1087 = vpop.f32.mrb[0].mxu0
          %1088 = vmatprep.mubr.f32.mxu0 0.0
          %1089 = vmatmul.mubr.f32.gmra.mrb[0].mxu0 %v947
          %v1090 = vpop.f32.mrb[0].mxu0
          %v1091 = vadd.f32 %v898, %v1090
          %v1092 = vpop.f32.mrb[0].mxu0
          %1093 = vdwg.mxu0
          %v1094 = vmax.f32 %v1016, 0.0
          %v1095 = vmax.f32 %v1021, 0.0
          %v1096 = vmax.f32 %v1026, 0.0
          %v1097 = vmax.f32 %v1031, 0.0
          %v1098 = vmax.f32 %v1036, 0.0
          %v1099 = vmax.f32 %v1041, 0.0
          %v1100 = vmax.f32 %v1046, 0.0
          %v1101 = vmax.f32 %v1051, 0.0
          %v1102 = vmax.f32 %v1056, 0.0
          %v1103 = vmax.f32 %v1061, 0.0
          %v1104 = vmax.f32 %v1066, 0.0
          %v1105 = vmax.f32 %v1071, 0.0
          %v1106 = vmax.f32 %v1076, 0.0
          %v1107 = vmax.f32 %v1081, 0.0
          %v1108 = vmax.f32 %v1086, 0.0
          %v1109 = vmax.f32 %v1091, 0.0
          %v1110 = vld [vmem:[#allocation5] sm:$0xff]
          %v1111 = vld [vmem:[#allocation5 + $0x8] sm:$0xff]
          %v1112 = vld [vmem:[#allocation5 + $0x10] sm:$0xff]
          %v1113 = vld [vmem:[#allocation5 + $0x18] sm:$0xff]
          %v1114 = vld [vmem:[#allocation5 + $0x20] sm:$0xff]
          %v1115 = vld [vmem:[#allocation5 + $0x28] sm:$0xff]
          %v1116 = vld [vmem:[#allocation5 + $0x30] sm:$0xff]
          %v1117 = vld [vmem:[#allocation5 + $0x38] sm:$0xff]
          %v1118 = vld [vmem:[#allocation5 + $0x40] sm:$0xff]
          %v1119 = vld [vmem:[#allocation5 + $0x48] sm:$0xff]
          %v1120 = vld [vmem:[#allocation5 + $0x50] sm:$0xff]
          %v1121 = vld [vmem:[#allocation5 + $0x58] sm:$0xff]
          %v1122 = vld [vmem:[#allocation5 + $0x60] sm:$0xff]
          %v1123 = vld [vmem:[#allocation5 + $0x68] sm:$0xff]
          %v1124 = vld [vmem:[#allocation5 + $0x70] sm:$0xff]
          %v1125 = vld [vmem:[#allocation5 + $0x78] sm:$0xff]
          %v1126 = vld [vmem:[%s5] sm:$0x1]
          %v1128 = vlaneseq
          %v1129 = vshrl.u32 %v1128, 7
          %v1130 = vsub.s32 0, %v1129
          %v1131 = vrot.slane %v1126, %v1130
          %1133 = vmatprep.subr.mxu0 0.0
          %1134 = vmatpush1.msra.mxu0 %v1110
          %1135 = vmatprep.subr.mxu0 0.0
          %1136 = vmatpush1.msra.mxu0 %v1111
          %1137 = vmatprep.subr.mxu0 0.0
          %1138 = vmatpush1.msra.mxu0 %v1112
          %1139 = vmatprep.subr.mxu0 0.0
          %1140 = vmatpush1.msra.mxu0 %v1113
          %1141 = vmatprep.subr.mxu0 0.0
          %1142 = vmatpush1.msra.mxu0 %v1114
          %1143 = vmatprep.subr.mxu0 0.0
          %1144 = vmatpush1.msra.mxu0 %v1115
          %1145 = vmatprep.subr.mxu0 0.0
          %1146 = vmatpush1.msra.mxu0 %v1116
          %1147 = vmatprep.subr.mxu0 0.0
          %1148 = vmatpush1.msra.mxu0 %v1117
          %1149 = vmatprep.subr.mxu0 0.0
          %1150 = vmatpush1.msra.mxu0 %v1118
          %1151 = vmatprep.subr.mxu0 0.0
          %1152 = vmatpush1.msra.mxu0 %v1119
          %1153 = vmatprep.subr.mxu0 0.0
          %1154 = vmatpush1.msra.mxu0 %v1120
          %1155 = vmatprep.subr.mxu0 0.0
          %1156 = vmatpush1.msra.mxu0 %v1121
          %1157 = vmatprep.subr.mxu0 0.0
          %1158 = vmatpush1.msra.mxu0 %v1122
          %1159 = vmatprep.subr.mxu0 0.0
          %1160 = vmatpush1.msra.mxu0 %v1123
          %1161 = vmatprep.subr.mxu0 0.0
          %1162 = vmatpush1.msra.mxu0 %v1124
          %1163 = vmatprep.subr.mxu0 0.0
          %1164 = vmatpush1.msra.mxu0 %v1125
          %1165 = vmatprep.subr.mxu0 0.0
          %1166 = vmatpush1.msra.mxu0 0.0
          %1167 = vmatprep.subr.mxu0 0.0
          %1168 = vmatpush1.msra.mxu0 0.0
          %1169 = vmatprep.subr.mxu0 0.0
          %1170 = vmatpush1.msra.mxu0 0.0
          %1171 = vmatprep.subr.mxu0 0.0
          %1172 = vmatpush1.msra.mxu0 0.0
          %1173 = vmatprep.subr.mxu0 0.0
          %1174 = vmatpush1.msra.mxu0 0.0
          %1175 = vmatprep.subr.mxu0 0.0
          %1176 = vmatpush1.msra.mxu0 0.0
          %1177 = vmatprep.subr.mxu0 0.0
          %1178 = vmatpush1.msra.mxu0 0.0
          %1179 = vmatprep.subr.mxu0 0.0
          %1180 = vmatpush1.msra.mxu0 0.0
          %1181 = vmatprep.subr.mxu0 0.0
          %1182 = vmatpush1.msra.mxu0 0.0
          %1183 = vmatprep.subr.mxu0 0.0
          %1184 = vmatpush1.msra.mxu0 0.0
          %1185 = vmatprep.subr.mxu0 0.0
          %1186 = vmatpush1.msra.mxu0 0.0
          %1187 = vmatprep.subr.mxu0 0.0
          %1188 = vmatpush1.msra.mxu0 0.0
          %1189 = vmatprep.subr.mxu0 0.0
          %1190 = vmatpush1.msra.mxu0 0.0
          %1191 = vmatprep.subr.mxu0 0.0
          %1192 = vmatpush1.msra.mxu0 0.0
          %1193 = vmatprep.subr.mxu0 0.0
          %1194 = vmatpush1.msra.mxu0 0.0
          %1195 = vmatprep.subr.mxu0 0.0
          %1196 = vmatpush1.msra.mxu0 0.0
          %1197 = vmatprep.mubr.f32.mxu0 0.0
          %1198 = vmatmul.mubr.f32.gmra.mrb[0].mxu0 %v1094
          %v1199 = vpop.f32.mrb[0].mxu0
          %v1200 = vadd.f32 %v1131, %v1199
          %v1201 = vpop.f32.mrb[0].mxu0
          %1202 = vmatprep.mubr.f32.mxu0 0.0
          %1203 = vmatmul.mubr.f32.gmra.mrb[0].mxu0 %v1095
          %v1204 = vpop.f32.mrb[0].mxu0
          %v1205 = vadd.f32 %v1131, %v1204
          %v1206 = vpop.f32.mrb[0].mxu0
          %1207 = vmatprep.mubr.f32.mxu0 0.0
          %1208 = vmatmul.mubr.f32.gmra.mrb[0].mxu0 %v1096
          %v1209 = vpop.f32.mrb[0].mxu0
          %v1210 = vadd.f32 %v1131, %v1209
          %v1211 = vpop.f32.mrb[0].mxu0
          %1212 = vmatprep.mubr.f32.mxu0 0.0
          %1213 = vmatmul.mubr.f32.gmra.mrb[0].mxu0 %v1097
          %v1214 = vpop.f32.mrb[0].mxu0
          %v1215 = vadd.f32 %v1131, %v1214
          %v1216 = vpop.f32.mrb[0].mxu0
          %1217 = vmatprep.mubr.f32.mxu0 0.0
          %1218 = vmatmul.mubr.f32.gmra.mrb[0].mxu0 %v1098
          %v1219 = vpop.f32.mrb[0].mxu0
          %v1220 = vadd.f32 %v1131, %v1219
          %v1221 = vpop.f32.mrb[0].mxu0
          %1222 = vmatprep.mubr.f32.mxu0 0.0
          %1223 = vmatmul.mubr.f32.gmra.mrb[0].mxu0 %v1099
          %v1224 = vpop.f32.mrb[0].mxu0
          %v1225 = vadd.f32 %v1131, %v1224
          %v1226 = vpop.f32.mrb[0].mxu0
          %1227 = vmatprep.mubr.f32.mxu0 0.0
          %1228 = vmatmul.mubr.f32.gmra.mrb[0].mxu0 %v1100
          %v1229 = vpop.f32.mrb[0].mxu0
          %v1230 = vadd.f32 %v1131, %v1229
          %v1231 = vpop.f32.mrb[0].mxu0
          %1232 = vmatprep.mubr.f32.mxu0 0.0
          %1233 = vmatmul.mubr.f32.gmra.mrb[0].mxu0 %v1101
          %v1234 = vpop.f32.mrb[0].mxu0
          %v1235 = vadd.f32 %v1131, %v1234
          %v1236 = vpop.f32.mrb[0].mxu0
          %1237 = vmatprep.mubr.f32.mxu0 0.0
          %1238 = vmatmul.mubr.f32.gmra.mrb[0].mxu0 %v1102
          %v1239 = vpop.f32.mrb[0].mxu0
          %v1240 = vadd.f32 %v1131, %v1239
          %v1241 = vpop.f32.mrb[0].mxu0
          %1242 = vmatprep.mubr.f32.mxu0 0.0
          %1243 = vmatmul.mubr.f32.gmra.mrb[0].mxu0 %v1103
          %v1244 = vpop.f32.mrb[0].mxu0
          %v1245 = vadd.f32 %v1131, %v1244
          %v1246 = vpop.f32.mrb[0].mxu0
          %1247 = vmatprep.mubr.f32.mxu0 0.0
          %1248 = vmatmul.mubr.f32.gmra.mrb[0].mxu0 %v1104
          %v1249 = vpop.f32.mrb[0].mxu0
          %v1250 = vadd.f32 %v1131, %v1249
          %v1251 = vpop.f32.mrb[0].mxu0
          %1252 = vmatprep.mubr.f32.mxu0 0.0
          %1253 = vmatmul.mubr.f32.gmra.mrb[0].mxu0 %v1105
          %v1254 = vpop.f32.mrb[0].mxu0
          %v1255 = vadd.f32 %v1131, %v1254
          %v1256 = vpop.f32.mrb[0].mxu0
          %1257 = vmatprep.mubr.f32.mxu0 0.0
          %1258 = vmatmul.mubr.f32.gmra.mrb[0].mxu0 %v1106
          %v1259 = vpop.f32.mrb[0].mxu0
          %v1260 = vadd.f32 %v1131, %v1259
          %v1261 = vpop.f32.mrb[0].mxu0
          %1262 = vmatprep.mubr.f32.mxu0 0.0
          %1263 = vmatmul.mubr.f32.gmra.mrb[0].mxu0 %v1107
          %v1264 = vpop.f32.mrb[0].mxu0
          %v1265 = vadd.f32 %v1131, %v1264
          %v1266 = vpop.f32.mrb[0].mxu0
          %1267 = vmatprep.mubr.f32.mxu0 0.0
          %1268 = vmatmul.mubr.f32.gmra.mrb[0].mxu0 %v1108
          %v1269 = vpop.f32.mrb[0].mxu0
          %v1270 = vadd.f32 %v1131, %v1269
          %v1271 = vpop.f32.mrb[0].mxu0
          %1272 = vmatprep.mubr.f32.mxu0 0.0
          %1273 = vmatmul.mubr.f32.gmra.mrb[0].mxu0 %v1109
          %v1274 = vpop.f32.mrb[0].mxu0
          %v1275 = vadd.f32 %v1131, %v1274
          %v1276 = vpop.f32.mrb[0].mxu0
          %1277 = vdwg.mxu0
          %v1278 = vmax.f32 %v1200, 0.0
          %v1279 = vmax.f32 %v1205, 0.0
          %v1280 = vmax.f32 %v1210, 0.0
          %v1281 = vmax.f32 %v1215, 0.0
          %v1282 = vmax.f32 %v1220, 0.0
          %v1283 = vmax.f32 %v1225, 0.0
          %v1284 = vmax.f32 %v1230, 0.0
          %v1285 = vmax.f32 %v1235, 0.0
          %v1286 = vmax.f32 %v1240, 0.0
          %v1287 = vmax.f32 %v1245, 0.0
          %v1288 = vmax.f32 %v1250, 0.0
          %v1289 = vmax.f32 %v1255, 0.0
          %v1290 = vmax.f32 %v1260, 0.0
          %v1291 = vmax.f32 %v1265, 0.0
          %v1292 = vmax.f32 %v1270, 0.0
          %v1293 = vmax.f32 %v1275, 0.0
          %1294 = vst [vmem:[#allocation2] sm:$0xff] %v1278
          %1295 = vst [vmem:[#allocation2 + $0x8] sm:$0xff] %v1279
          %1296 = vst [vmem:[#allocation2 + $0x10] sm:$0xff] %v1280
          %1297 = vst [vmem:[#allocation2 + $0x18] sm:$0xff] %v1281
          %1298 = vst [vmem:[#allocation2 + $0x20] sm:$0xff] %v1282
          %1299 = vst [vmem:[#allocation2 + $0x28] sm:$0xff] %v1283
          %1300 = vst [vmem:[#allocation2 + $0x30] sm:$0xff] %v1284
          %1301 = vst [vmem:[#allocation2 + $0x38] sm:$0xff] %v1285
          %1302 = vst [vmem:[#allocation2 + $0x40] sm:$0xff] %v1286
          %1303 = vst [vmem:[#allocation2 + $0x48] sm:$0xff] %v1287
          %1304 = vst [vmem:[#allocation2 + $0x50] sm:$0xff] %v1288
          %1305 = vst [vmem:[#allocation2 + $0x58] sm:$0xff] %v1289
          %1306 = vst [vmem:[#allocation2 + $0x60] sm:$0xff] %v1290
          %1307 = vst [vmem:[#allocation2 + $0x68] sm:$0xff] %v1291
          %1308 = vst [vmem:[#allocation2 + $0x70] sm:$0xff] %v1292
          %1309 = vst [vmem:[#allocation2 + $0x78] sm:$0xff] %v1293
          %vm1310 = vcmask 7168
          %1311 = vst.msk [vmem:[#allocation3] sm:$0xff] %vm1310, 0.0
          %1312 = vst.msk [vmem:[#allocation3 + $0x8] sm:$0xff] %vm1310, 0.0
          %1313 = vst.msk [vmem:[#allocation3 + $0x10] sm:$0xff] %vm1310, 0.0
          %1314 = vst.msk [vmem:[#allocation3 + $0x18] sm:$0xff] %vm1310, 0.0
          %1315 = vst.msk [vmem:[#allocation3 + $0x20] sm:$0xff] %vm1310, 0.0
          %1316 = vst.msk [vmem:[#allocation3 + $0x28] sm:$0xff] %vm1310, 0.0
          %1317 = vst.msk [vmem:[#allocation3 + $0x30] sm:$0xff] %vm1310, 0.0
          %1318 = vst.msk [vmem:[#allocation3 + $0x38] sm:$0xff] %vm1310, 0.0
          %1319 = vst.msk [vmem:[#allocation3 + $0x40] sm:$0xff] %vm1310, 0.0
          %1320 = vst.msk [vmem:[#allocation3 + $0x48] sm:$0xff] %vm1310, 0.0
          %1321 = vst.msk [vmem:[#allocation3 + $0x50] sm:$0xff] %vm1310, 0.0
          %1322 = vst.msk [vmem:[#allocation3 + $0x58] sm:$0xff] %vm1310, 0.0
          %1323 = vst.msk [vmem:[#allocation3 + $0x60] sm:$0xff] %vm1310, 0.0
          %1324 = vst.msk [vmem:[#allocation3 + $0x68] sm:$0xff] %vm1310, 0.0
          %1325 = vst.msk [vmem:[#allocation3 + $0x70] sm:$0xff] %vm1310, 0.0
          %1326 = vst.msk [vmem:[#allocation3 + $0x78] sm:$0xff] %vm1310, 0.0
          %v1327 = vld [vmem:[%s10] sm:$0x1]
          %v1329 = vlaneseq
          %v1330 = vshrl.u32 %v1329, 7
          %v1331 = vsub.s32 0, %v1330
          %v1332 = vrot.slane %v1327, %v1331
          %v1334 = vmul.f32 %v1278, %v1332
          %v1335 = vmul.f32 %v1279, %v1332
          %v1336 = vmul.f32 %v1280, %v1332
          %v1337 = vmul.f32 %v1281, %v1332
          %v1338 = vmul.f32 %v1282, %v1332
          %v1339 = vmul.f32 %v1283, %v1332
          %v1340 = vmul.f32 %v1284, %v1332
          %v1341 = vmul.f32 %v1285, %v1332
          %v1342 = vmul.f32 %v1286, %v1332
          %v1343 = vmul.f32 %v1287, %v1332
          %v1344 = vmul.f32 %v1288, %v1332
          %v1345 = vmul.f32 %v1289, %v1332
          %v1346 = vmul.f32 %v1290, %v1332
          %v1347 = vmul.f32 %v1291, %v1332
          %v1348 = vmul.f32 %v1292, %v1332
          %v1349 = vmul.f32 %v1293, %v1332
          %1350 = vadd.xlane.f32.xlu0 %v1334
          %v1351 = vpop.xlane.xlu0 %1350
          %1352 = vadd.xlane.f32.xlu0 %v1335
          %v1353 = vpop.xlane.xlu0 %1352
          %1354 = vadd.xlane.f32.xlu0 %v1336
          %v1355 = vpop.xlane.xlu0 %1354
          %1356 = vadd.xlane.f32.xlu0 %v1337
          %v1357 = vpop.xlane.xlu0 %1356
          %1358 = vadd.xlane.f32.xlu0 %v1338
          %v1359 = vpop.xlane.xlu0 %1358
          %1360 = vadd.xlane.f32.xlu0 %v1339
          %v1361 = vpop.xlane.xlu0 %1360
          %1362 = vadd.xlane.f32.xlu0 %v1340
          %v1363 = vpop.xlane.xlu0 %1362
          %1364 = vadd.xlane.f32.xlu0 %v1341
          %v1365 = vpop.xlane.xlu0 %1364
          %1366 = vadd.xlane.f32.xlu0 %v1342
          %v1367 = vpop.xlane.xlu0 %1366
          %1368 = vadd.xlane.f32.xlu0 %v1343
          %v1369 = vpop.xlane.xlu0 %1368
          %1370 = vadd.xlane.f32.xlu0 %v1344
          %v1371 = vpop.xlane.xlu0 %1370
          %1372 = vadd.xlane.f32.xlu0 %v1345
          %v1373 = vpop.xlane.xlu0 %1372
          %1374 = vadd.xlane.f32.xlu0 %v1346
          %v1375 = vpop.xlane.xlu0 %1374
          %1376 = vadd.xlane.f32.xlu0 %v1347
          %v1377 = vpop.xlane.xlu0 %1376
          %1378 = vadd.xlane.f32.xlu0 %v1348
          %v1379 = vpop.xlane.xlu0 %1378
          %1380 = vadd.xlane.f32.xlu0 %v1349
          %v1381 = vpop.xlane.xlu0 %1380
          %v1382 = vld [vmem:[#allocation4] sm:$0x1]
          %v1384 = vlaneseq
          %v1385 = vshrl.u32 %v1384, 7
          %v1386 = vsub.s32 0, %v1385
          %v1387 = vrot.slane %v1382, %v1386
          %v1389 = vadd.f32 %v1351, %v1387
          %v1390 = vadd.f32 %v1353, %v1387
          %v1391 = vadd.f32 %v1355, %v1387
          %v1392 = vadd.f32 %v1357, %v1387
          %v1393 = vadd.f32 %v1359, %v1387
          %v1394 = vadd.f32 %v1361, %v1387
          %v1395 = vadd.f32 %v1363, %v1387
          %v1396 = vadd.f32 %v1365, %v1387
          %v1397 = vadd.f32 %v1367, %v1387
          %v1398 = vadd.f32 %v1369, %v1387
          %v1399 = vadd.f32 %v1371, %v1387
          %v1400 = vadd.f32 %v1373, %v1387
          %v1401 = vadd.f32 %v1375, %v1387
          %v1402 = vadd.f32 %v1377, %v1387
          %v1403 = vadd.f32 %v1379, %v1387
          %v1404 = vadd.f32 %v1381, %v1387
          %v1405 = vtanh.pop %v1389
          %v1406 = vtanh.pop %v1390
          %v1407 = vtanh.pop %v1391
          %v1408 = vtanh.pop %v1392
          %v1409 = vtanh.pop %v1393
          %v1410 = vtanh.pop %v1394
          %v1411 = vtanh.pop %v1395
          %v1412 = vtanh.pop %v1396
          %v1413 = vtanh.pop %v1397
          %v1414 = vtanh.pop %v1398
          %v1415 = vtanh.pop %v1399
          %v1416 = vtanh.pop %v1400
          %v1417 = vtanh.pop %v1401
          %v1418 = vtanh.pop %v1402
          %v1419 = vtanh.pop %v1403
          %v1420 = vtanh.pop %v1404
          %v1421 = vadd.f32 %v1405, 1.0
          %v1422 = vadd.f32 %v1406, 1.0
          %v1423 = vadd.f32 %v1407, 1.0
          %v1424 = vadd.f32 %v1408, 1.0
          %v1425 = vadd.f32 %v1409, 1.0
          %v1426 = vadd.f32 %v1410, 1.0
          %v1427 = vadd.f32 %v1411, 1.0
          %v1428 = vadd.f32 %v1412, 1.0
          %v1429 = vadd.f32 %v1413, 1.0
          %v1430 = vadd.f32 %v1414, 1.0
          %v1431 = vadd.f32 %v1415, 1.0
          %v1432 = vadd.f32 %v1416, 1.0
          %v1433 = vadd.f32 %v1417, 1.0
          %v1434 = vadd.f32 %v1418, 1.0
          %v1435 = vadd.f32 %v1419, 1.0
          %v1436 = vadd.f32 %v1420, 1.0
          %v1437 = vmul.f32 %v1421, 0.5
          %v1438 = vmul.f32 %v1422, 0.5
          %v1439 = vmul.f32 %v1423, 0.5
          %v1440 = vmul.f32 %v1424, 0.5
          %v1441 = vmul.f32 %v1425, 0.5
          %v1442 = vmul.f32 %v1426, 0.5
          %v1443 = vmul.f32 %v1427, 0.5
          %v1444 = vmul.f32 %v1428, 0.5
          %v1445 = vmul.f32 %v1429, 0.5
          %v1446 = vmul.f32 %v1430, 0.5
          %v1447 = vmul.f32 %v1431, 0.5
          %v1448 = vmul.f32 %v1432, 0.5
          %v1449 = vmul.f32 %v1433, 0.5
          %v1450 = vmul.f32 %v1434, 0.5
          %v1451 = vmul.f32 %v1435, 0.5
          %v1452 = vmul.f32 %v1436, 0.5
          %1453 = vst.msk [vmem:[%s863] sm:$0xff] %vm1310, %v1437
          %1454 = vst.msk [vmem:[%s863 + $0x8] sm:$0xff] %vm1310, %v1438
          %1455 = vst.msk [vmem:[%s863 + $0x10] sm:$0xff] %vm1310, %v1439
          %1456 = vst.msk [vmem:[%s863 + $0x18] sm:$0xff] %vm1310, %v1440
          %1457 = vst.msk [vmem:[%s863 + $0x20] sm:$0xff] %vm1310, %v1441
          %1458 = vst.msk [vmem:[%s863 + $0x28] sm:$0xff] %vm1310, %v1442
          %1459 = vst.msk [vmem:[%s863 + $0x30] sm:$0xff] %vm1310, %v1443
          %1460 = vst.msk [vmem:[%s863 + $0x38] sm:$0xff] %vm1310, %v1444
          %1461 = vst.msk [vmem:[%s863 + $0x40] sm:$0xff] %vm1310, %v1445
          %1462 = vst.msk [vmem:[%s863 + $0x48] sm:$0xff] %vm1310, %v1446
          %1463 = vst.msk [vmem:[%s863 + $0x50] sm:$0xff] %vm1310, %v1447
          %1464 = vst.msk [vmem:[%s863 + $0x58] sm:$0xff] %vm1310, %v1448
          %1465 = vst.msk [vmem:[%s863 + $0x60] sm:$0xff] %vm1310, %v1449
          %1466 = vst.msk [vmem:[%s863 + $0x68] sm:$0xff] %vm1310, %v1450
          %1467 = vst.msk [vmem:[%s863 + $0x70] sm:$0xff] %vm1310, %v1451
          %1468 = vst.msk [vmem:[%s863 + $0x78] sm:$0xff] %vm1310, %v1452
        $region152: #{tpu_custom_call.1} parent=135 // pred_fallthru
          _
        %v1469 = vld [vmem:[#allocation2] sm:$0xff]
        %v1470 = vld [vmem:[#allocation2 + $0x8] sm:$0xff]
        %v1471 = vld [vmem:[#allocation2 + $0x10] sm:$0xff]
        %v1472 = vld [vmem:[#allocation2 + $0x18] sm:$0xff]
        %v1473 = vld [vmem:[#allocation2 + $0x20] sm:$0xff]
        %v1474 = vld [vmem:[#allocation2 + $0x28] sm:$0xff]
        %v1475 = vld [vmem:[#allocation2 + $0x30] sm:$0xff]
        %v1476 = vld [vmem:[#allocation2 + $0x38] sm:$0xff]
        %v1477 = vld [vmem:[#allocation2 + $0x40] sm:$0xff]
        %v1478 = vld [vmem:[#allocation2 + $0x48] sm:$0xff]
        %v1479 = vld [vmem:[#allocation2 + $0x50] sm:$0xff]
        %v1480 = vld [vmem:[#allocation2 + $0x58] sm:$0xff]
        %v1481 = vld [vmem:[#allocation2 + $0x60] sm:$0xff]
        %v1482 = vld [vmem:[#allocation2 + $0x68] sm:$0xff]
        %v1483 = vld [vmem:[#allocation2 + $0x70] sm:$0xff]
        %v1484 = vld [vmem:[#allocation2 + $0x78] sm:$0xff]
        %v1485 = vld [vmem:[%s748] sm:$0xff]
        %v1486 = vld [vmem:[%s748 + $0x8] sm:$0xff]
        %v1487 = vld [vmem:[%s748 + $0x10] sm:$0xff]
        %v1488 = vld [vmem:[%s748 + $0x18] sm:$0xff]
        %v1489 = vld [vmem:[%s748 + $0x20] sm:$0xff]
        %v1490 = vld [vmem:[%s748 + $0x28] sm:$0xff]
        %v1491 = vld [vmem:[%s748 + $0x30] sm:$0xff]
        %v1492 = vld [vmem:[%s748 + $0x38] sm:$0xff]
        %v1493 = vld [vmem:[%s748 + $0x40] sm:$0xff]
        %v1494 = vld [vmem:[%s748 + $0x48] sm:$0xff]
        %v1495 = vld [vmem:[%s748 + $0x50] sm:$0xff]
        %v1496 = vld [vmem:[%s748 + $0x58] sm:$0xff]
        %v1497 = vld [vmem:[%s748 + $0x60] sm:$0xff]
        %v1498 = vld [vmem:[%s748 + $0x68] sm:$0xff]
        %v1499 = vld [vmem:[%s748 + $0x70] sm:$0xff]
        %v1500 = vld [vmem:[%s748 + $0x78] sm:$0xff]
        %v1501 = vld [vmem:[%s850] sm:$0x1]
        %v1503 = vlaneseq
        %v1504 = vshrl.u32 %v1503, 7
        %v1505 = vsub.s32 0, %v1504
        %v1506 = vrot.slane %v1501, %v1505
        %1508 = vmatprep.subr.mxu0 0.0
        %1509 = vmatpush1.msra.mxu0 %v1485
        %1510 = vmatprep.subr.mxu0 0.0
        %1511 = vmatpush1.msra.mxu0 %v1486
        %1512 = vmatprep.subr.mxu0 0.0
        %1513 = vmatpush1.msra.mxu0 %v1487
        %1514 = vmatprep.subr.mxu0 0.0
        %1515 = vmatpush1.msra.mxu0 %v1488
        %1516 = vmatprep.subr.mxu0 0.0
        %1517 = vmatpush1.msra.mxu0 %v1489
        %1518 = vmatprep.subr.mxu0 0.0
        %1519 = vmatpush1.msra.mxu0 %v1490
        %1520 = vmatprep.subr.mxu0 0.0
        %1521 = vmatpush1.msra.mxu0 %v1491
        %1522 = vmatprep.subr.mxu0 0.0
        %1523 = vmatpush1.msra.mxu0 %v1492
        %1524 = vmatprep.subr.mxu0 0.0
        %1525 = vmatpush1.msra.mxu0 %v1493
        %1526 = vmatprep.subr.mxu0 0.0
        %1527 = vmatpush1.msra.mxu0 %v1494
        %1528 = vmatprep.subr.mxu0 0.0
        %1529 = vmatpush1.msra.mxu0 %v1495
        %1530 = vmatprep.subr.mxu0 0.0
        %1531 = vmatpush1.msra.mxu0 %v1496
        %1532 = vmatprep.subr.mxu0 0.0
        %1533 = vmatpush1.msra.mxu0 %v1497
        %1534 = vmatprep.subr.mxu0 0.0
        %1535 = vmatpush1.msra.mxu0 %v1498
        %1536 = vmatprep.subr.mxu0 0.0
        %1537 = vmatpush1.msra.mxu0 %v1499
        %1538 = vmatprep.subr.mxu0 0.0
        %1539 = vmatpush1.msra.mxu0 %v1500
        %1540 = vmatprep.subr.mxu0 0.0
        %1541 = vmatpush1.msra.mxu0 0.0
        %1542 = vmatprep.subr.mxu0 0.0
        %1543 = vmatpush1.msra.mxu0 0.0
        %1544 = vmatprep.subr.mxu0 0.0
        %1545 = vmatpush1.msra.mxu0 0.0
        %1546 = vmatprep.subr.mxu0 0.0
        %1547 = vmatpush1.msra.mxu0 0.0
        %1548 = vmatprep.subr.mxu0 0.0
        %1549 = vmatpush1.msra.mxu0 0.0
        %1550 = vmatprep.subr.mxu0 0.0
        %1551 = vmatpush1.msra.mxu0 0.0
        %1552 = vmatprep.subr.mxu0 0.0
        %1553 = vmatpush1.msra.mxu0 0.0
        %1554 = vmatprep.subr.mxu0 0.0
        %1555 = vmatpush1.msra.mxu0 0.0
        %1556 = vmatprep.subr.mxu0 0.0
        %1557 = vmatpush1.msra.mxu0 0.0
        %1558 = vmatprep.subr.mxu0 0.0
        %1559 = vmatpush1.msra.mxu0 0.0
        %1560 = vmatprep.subr.mxu0 0.0
        %1561 = vmatpush1.msra.mxu0 0.0
        %1562 = vmatprep.subr.mxu0 0.0
        %1563 = vmatpush1.msra.mxu0 0.0
        %1564 = vmatprep.subr.mxu0 0.0
        %1565 = vmatpush1.msra.mxu0 0.0
        %1566 = vmatprep.subr.mxu0 0.0
        %1567 = vmatpush1.msra.mxu0 0.0
        %1568 = vmatprep.subr.mxu0 0.0
        %1569 = vmatpush1.msra.mxu0 0.0
        %1570 = vmatprep.subr.mxu0 0.0
        %1571 = vmatpush1.msra.mxu0 0.0
        %1572 = vmatprep.mubr.f32.mxu0 0.0
        %1573 = vmatmul.mubr.f32.gmra.mrb[0].mxu0 %v1469
        %v1574 = vpop.f32.mrb[0].mxu0
        %v1575 = vadd.f32 %v1506, %v1574
        %v1576 = vpop.f32.mrb[0].mxu0
        %1577 = vmatprep.mubr.f32.mxu0 0.0
        %1578 = vmatmul.mubr.f32.gmra.mrb[0].mxu0 %v1470
        %v1579 = vpop.f32.mrb[0].mxu0
        %v1580 = vadd.f32 %v1506, %v1579
        %v1581 = vpop.f32.mrb[0].mxu0
        %1582 = vmatprep.mubr.f32.mxu0 0.0
        %1583 = vmatmul.mubr.f32.gmra.mrb[0].mxu0 %v1471
        %v1584 = vpop.f32.mrb[0].mxu0
        %v1585 = vadd.f32 %v1506, %v1584
        %v1586 = vpop.f32.mrb[0].mxu0
        %1587 = vmatprep.mubr.f32.mxu0 0.0
        %1588 = vmatmul.mubr.f32.gmra.mrb[0].mxu0 %v1472
        %v1589 = vpop.f32.mrb[0].mxu0
        %v1590 = vadd.f32 %v1506, %v1589
        %v1591 = vpop.f32.mrb[0].mxu0
        %1592 = vmatprep.mubr.f32.mxu0 0.0
        %1593 = vmatmul.mubr.f32.gmra.mrb[0].mxu0 %v1473
        %v1594 = vpop.f32.mrb[0].mxu0
        %v1595 = vadd.f32 %v1506, %v1594
        %v1596 = vpop.f32.mrb[0].mxu0
        %1597 = vmatprep.mubr.f32.mxu0 0.0
        %1598 = vmatmul.mubr.f32.gmra.mrb[0].mxu0 %v1474
        %v1599 = vpop.f32.mrb[0].mxu0
        %v1600 = vadd.f32 %v1506, %v1599
        %v1601 = vpop.f32.mrb[0].mxu0
        %1602 = vmatprep.mubr.f32.mxu0 0.0
        %1603 = vmatmul.mubr.f32.gmra.mrb[0].mxu0 %v1475
        %v1604 = vpop.f32.mrb[0].mxu0
        %v1605 = vadd.f32 %v1506, %v1604
        %v1606 = vpop.f32.mrb[0].mxu0
        %1607 = vmatprep.mubr.f32.mxu0 0.0
        %1608 = vmatmul.mubr.f32.gmra.mrb[0].mxu0 %v1476
        %v1609 = vpop.f32.mrb[0].mxu0
        %v1610 = vadd.f32 %v1506, %v1609
        %v1611 = vpop.f32.mrb[0].mxu0
        %1612 = vmatprep.mubr.f32.mxu0 0.0
        %1613 = vmatmul.mubr.f32.gmra.mrb[0].mxu0 %v1477
        %v1614 = vpop.f32.mrb[0].mxu0
        %v1615 = vadd.f32 %v1506, %v1614
        %v1616 = vpop.f32.mrb[0].mxu0
        %1617 = vmatprep.mubr.f32.mxu0 0.0
        %1618 = vmatmul.mubr.f32.gmra.mrb[0].mxu0 %v1478
        %v1619 = vpop.f32.mrb[0].mxu0
        %v1620 = vadd.f32 %v1506, %v1619
        %v1621 = vpop.f32.mrb[0].mxu0
        %1622 = vmatprep.mubr.f32.mxu0 0.0
        %1623 = vmatmul.mubr.f32.gmra.mrb[0].mxu0 %v1479
        %v1624 = vpop.f32.mrb[0].mxu0
        %v1625 = vadd.f32 %v1506, %v1624
        %v1626 = vpop.f32.mrb[0].mxu0
        %1627 = vmatprep.mubr.f32.mxu0 0.0
        %1628 = vmatmul.mubr.f32.gmra.mrb[0].mxu0 %v1480
        %v1629 = vpop.f32.mrb[0].mxu0
        %v1630 = vadd.f32 %v1506, %v1629
        %v1631 = vpop.f32.mrb[0].mxu0
        %1632 = vmatprep.mubr.f32.mxu0 0.0
        %1633 = vmatmul.mubr.f32.gmra.mrb[0].mxu0 %v1481
        %v1634 = vpop.f32.mrb[0].mxu0
        %v1635 = vadd.f32 %v1506, %v1634
        %v1636 = vpop.f32.mrb[0].mxu0
        %1637 = vmatprep.mubr.f32.mxu0 0.0
        %1638 = vmatmul.mubr.f32.gmra.mrb[0].mxu0 %v1482
        %v1639 = vpop.f32.mrb[0].mxu0
        %v1640 = vadd.f32 %v1506, %v1639
        %v1641 = vpop.f32.mrb[0].mxu0
        %1642 = vmatprep.mubr.f32.mxu0 0.0
        %1643 = vmatmul.mubr.f32.gmra.mrb[0].mxu0 %v1483
        %v1644 = vpop.f32.mrb[0].mxu0
        %v1645 = vadd.f32 %v1506, %v1644
        %v1646 = vpop.f32.mrb[0].mxu0
        %1647 = vmatprep.mubr.f32.mxu0 0.0
        %1648 = vmatmul.mubr.f32.gmra.mrb[0].mxu0 %v1484
        %v1649 = vpop.f32.mrb[0].mxu0
        %v1650 = vadd.f32 %v1506, %v1649
        %v1651 = vpop.f32.mrb[0].mxu0
        %1652 = vdwg.mxu0
        %v1653 = vmax.f32 %v1575, 0.0
        %v1654 = vmax.f32 %v1580, 0.0
        %v1655 = vmax.f32 %v1585, 0.0
        %v1656 = vmax.f32 %v1590, 0.0
        %v1657 = vmax.f32 %v1595, 0.0
        %v1658 = vmax.f32 %v1600, 0.0
        %v1659 = vmax.f32 %v1605, 0.0
        %v1660 = vmax.f32 %v1610, 0.0
        %v1661 = vmax.f32 %v1615, 0.0
        %v1662 = vmax.f32 %v1620, 0.0
        %v1663 = vmax.f32 %v1625, 0.0
        %v1664 = vmax.f32 %v1630, 0.0
        %v1665 = vmax.f32 %v1635, 0.0
        %v1666 = vmax.f32 %v1640, 0.0
        %v1667 = vmax.f32 %v1645, 0.0
        %v1668 = vmax.f32 %v1650, 0.0
        %v1669 = vand.u32 2147483647, %v1575
        %v1670 = vand.u32 2147483647, %v1580
        %v1671 = vand.u32 2147483647, %v1585
        %v1672 = vand.u32 2147483647, %v1590
        %v1673 = vand.u32 2147483647, %v1595
        %v1674 = vand.u32 2147483647, %v1600
        %v1675 = vand.u32 2147483647, %v1605
        %v1676 = vand.u32 2147483647, %v1610
        %v1677 = vand.u32 2147483647, %v1615
        %v1678 = vand.u32 2147483647, %v1620
        %v1679 = vand.u32 2147483647, %v1625
        %v1680 = vand.u32 2147483647, %v1630
        %v1681 = vand.u32 2147483647, %v1635
        %v1682 = vand.u32 2147483647, %v1640
        %v1683 = vand.u32 2147483647, %v1645
        %v1684 = vand.u32 2147483647, %v1650
        %v1685 = vsub.f32 0.0, %v1669
        %v1686 = vsub.f32 0.0, %v1670
        %v1687 = vsub.f32 0.0, %v1671
        %v1688 = vsub.f32 0.0, %v1672
        %v1689 = vsub.f32 0.0, %v1673
        %v1690 = vsub.f32 0.0, %v1674
        %v1691 = vsub.f32 0.0, %v1675
        %v1692 = vsub.f32 0.0, %v1676
        %v1693 = vsub.f32 0.0, %v1677
        %v1694 = vsub.f32 0.0, %v1678
        %v1695 = vsub.f32 0.0, %v1679
        %v1696 = vsub.f32 0.0, %v1680
        %v1697 = vsub.f32 0.0, %v1681
        %v1698 = vsub.f32 0.0, %v1682
        %v1699 = vsub.f32 0.0, %v1683
        %v1700 = vsub.f32 0.0, %v1684
        %v1701 = vmul.f32 %v1685, 1.442695
        %v1702 = vpow.pop %v1701
        %v1703 = vmul.f32 %v1686, 1.442695
        %v1704 = vpow.pop %v1703
        %v1705 = vmul.f32 %v1687, 1.442695
        %v1706 = vpow.pop %v1705
        %v1707 = vmul.f32 %v1688, 1.442695
        %v1708 = vpow.pop %v1707
        %v1709 = vmul.f32 %v1689, 1.442695
        %v1710 = vpow.pop %v1709
        %v1711 = vmul.f32 %v1690, 1.442695
        %v1712 = vpow.pop %v1711
        %v1713 = vmul.f32 %v1691, 1.442695
        %v1714 = vpow.pop %v1713
        %v1715 = vmul.f32 %v1692, 1.442695
        %v1716 = vpow.pop %v1715
        %v1717 = vmul.f32 %v1693, 1.442695
        %v1718 = vpow.pop %v1717
        %v1719 = vmul.f32 %v1694, 1.442695
        %v1720 = vpow.pop %v1719
        %v1721 = vmul.f32 %v1695, 1.442695
        %v1722 = vpow.pop %v1721
        %v1723 = vmul.f32 %v1696, 1.442695
        %v1724 = vpow.pop %v1723
        %v1725 = vmul.f32 %v1697, 1.442695
        %v1726 = vpow.pop %v1725
        %v1727 = vmul.f32 %v1698, 1.442695
        %v1728 = vpow.pop %v1727
        %v1729 = vmul.f32 %v1699, 1.442695
        %v1730 = vpow.pop %v1729
        %v1731 = vmul.f32 %v1700, 1.442695
        %v1732 = vpow.pop %v1731
        %v1733 = vadd.f32 %v1702, 1.0
        %v1734 = vlog2.pop %v1733
        %v1735 = vmul.f32 %v1734, 0.6931472
        %v1736 = vmul.f32 -0.5, %v1702
        %v1737 = vadd.f32 %v1736, 1.0
        %v1738 = vmul.f32 %v1737, %v1702
        %v1739 = vand.u32 2147483647, %v1702
        %vm1740 = vcmp.lt.f32.partialorder %v1739, 0.0004427343
        %v1741 = vsel %vm1740, %v1738, %v1735
        %v1742 = vadd.f32 %v1704, 1.0
        %v1743 = vlog2.pop %v1742
        %v1744 = vmul.f32 %v1743, 0.6931472
        %v1745 = vmul.f32 -0.5, %v1704
        %v1746 = vadd.f32 %v1745, 1.0
        %v1747 = vmul.f32 %v1746, %v1704
        %v1748 = vand.u32 2147483647, %v1704
        %vm1749 = vcmp.lt.f32.partialorder %v1748, 0.0004427343
        %v1750 = vsel %vm1749, %v1747, %v1744
        %v1751 = vadd.f32 %v1706, 1.0
        %v1752 = vlog2.pop %v1751
        %v1753 = vmul.f32 %v1752, 0.6931472
        %v1754 = vmul.f32 -0.5, %v1706
        %v1755 = vadd.f32 %v1754, 1.0
        %v1756 = vmul.f32 %v1755, %v1706
        %v1757 = vand.u32 2147483647, %v1706
        %vm1758 = vcmp.lt.f32.partialorder %v1757, 0.0004427343
        %v1759 = vsel %vm1758, %v1756, %v1753
        %v1760 = vadd.f32 %v1708, 1.0
        %v1761 = vlog2.pop %v1760
        %v1762 = vmul.f32 %v1761, 0.6931472
        %v1763 = vmul.f32 -0.5, %v1708
        %v1764 = vadd.f32 %v1763, 1.0
        %v1765 = vmul.f32 %v1764, %v1708
        %v1766 = vand.u32 2147483647, %v1708
        %vm1767 = vcmp.lt.f32.partialorder %v1766, 0.0004427343
        %v1768 = vsel %vm1767, %v1765, %v1762
        %v1769 = vadd.f32 %v1710, 1.0
        %v1770 = vlog2.pop %v1769
        %v1771 = vmul.f32 %v1770, 0.6931472
        %v1772 = vmul.f32 -0.5, %v1710
        %v1773 = vadd.f32 %v1772, 1.0
        %v1774 = vmul.f32 %v1773, %v1710
        %v1775 = vand.u32 2147483647, %v1710
        %vm1776 = vcmp.lt.f32.partialorder %v1775, 0.0004427343
        %v1777 = vsel %vm1776, %v1774, %v1771
        %v1778 = vadd.f32 %v1712, 1.0
        %v1779 = vlog2.pop %v1778
        %v1780 = vmul.f32 %v1779, 0.6931472
        %v1781 = vmul.f32 -0.5, %v1712
        %v1782 = vadd.f32 %v1781, 1.0
        %v1783 = vmul.f32 %v1782, %v1712
        %v1784 = vand.u32 2147483647, %v1712
        %vm1785 = vcmp.lt.f32.partialorder %v1784, 0.0004427343
        %v1786 = vsel %vm1785, %v1783, %v1780
        %v1787 = vadd.f32 %v1714, 1.0
        %v1788 = vlog2.pop %v1787
        %v1789 = vmul.f32 %v1788, 0.6931472
        %v1790 = vmul.f32 -0.5, %v1714
        %v1791 = vadd.f32 %v1790, 1.0
        %v1792 = vmul.f32 %v1791, %v1714
        %v1793 = vand.u32 2147483647, %v1714
        %vm1794 = vcmp.lt.f32.partialorder %v1793, 0.0004427343
        %v1795 = vsel %vm1794, %v1792, %v1789
        %v1796 = vadd.f32 %v1716, 1.0
        %v1797 = vlog2.pop %v1796
        %v1798 = vmul.f32 %v1797, 0.6931472
        %v1799 = vmul.f32 -0.5, %v1716
        %v1800 = vadd.f32 %v1799, 1.0
        %v1801 = vmul.f32 %v1800, %v1716
        %v1802 = vand.u32 2147483647, %v1716
        %vm1803 = vcmp.lt.f32.partialorder %v1802, 0.0004427343
        %v1804 = vsel %vm1803, %v1801, %v1798
        %v1805 = vadd.f32 %v1718, 1.0
        %v1806 = vlog2.pop %v1805
        %v1807 = vmul.f32 %v1806, 0.6931472
        %v1808 = vmul.f32 -0.5, %v1718
        %v1809 = vadd.f32 %v1808, 1.0
        %v1810 = vmul.f32 %v1809, %v1718
        %v1811 = vand.u32 2147483647, %v1718
        %vm1812 = vcmp.lt.f32.partialorder %v1811, 0.0004427343
        %v1813 = vsel %vm1812, %v1810, %v1807
        %v1814 = vadd.f32 %v1720, 1.0
        %v1815 = vlog2.pop %v1814
        %v1816 = vmul.f32 %v1815, 0.6931472
        %v1817 = vmul.f32 -0.5, %v1720
        %v1818 = vadd.f32 %v1817, 1.0
        %v1819 = vmul.f32 %v1818, %v1720
        %v1820 = vand.u32 2147483647, %v1720
        %vm1821 = vcmp.lt.f32.partialorder %v1820, 0.0004427343
        %v1822 = vsel %vm1821, %v1819, %v1816
        %v1823 = vadd.f32 %v1722, 1.0
        %v1824 = vlog2.pop %v1823
        %v1825 = vmul.f32 %v1824, 0.6931472
        %v1826 = vmul.f32 -0.5, %v1722
        %v1827 = vadd.f32 %v1826, 1.0
        %v1828 = vmul.f32 %v1827, %v1722
        %v1829 = vand.u32 2147483647, %v1722
        %vm1830 = vcmp.lt.f32.partialorder %v1829, 0.0004427343
        %v1831 = vsel %vm1830, %v1828, %v1825
        %v1832 = vadd.f32 %v1724, 1.0
        %v1833 = vlog2.pop %v1832
        %v1834 = vmul.f32 %v1833, 0.6931472
        %v1835 = vmul.f32 -0.5, %v1724
        %v1836 = vadd.f32 %v1835, 1.0
        %v1837 = vmul.f32 %v1836, %v1724
        %v1838 = vand.u32 2147483647, %v1724
        %vm1839 = vcmp.lt.f32.partialorder %v1838, 0.0004427343
        %v1840 = vsel %vm1839, %v1837, %v1834
        %v1841 = vadd.f32 %v1726, 1.0
        %v1842 = vlog2.pop %v1841
        %v1843 = vmul.f32 %v1842, 0.6931472
        %v1844 = vmul.f32 -0.5, %v1726
        %v1845 = vadd.f32 %v1844, 1.0
        %v1846 = vmul.f32 %v1845, %v1726
        %v1847 = vand.u32 2147483647, %v1726
        %vm1848 = vcmp.lt.f32.partialorder %v1847, 0.0004427343
        %v1849 = vsel %vm1848, %v1846, %v1843
        %v1850 = vadd.f32 %v1728, 1.0
        %v1851 = vlog2.pop %v1850
        %v1852 = vmul.f32 %v1851, 0.6931472
        %v1853 = vmul.f32 -0.5, %v1728
        %v1854 = vadd.f32 %v1853, 1.0
        %v1855 = vmul.f32 %v1854, %v1728
        %v1856 = vand.u32 2147483647, %v1728
        %vm1857 = vcmp.lt.f32.partialorder %v1856, 0.0004427343
        %v1858 = vsel %vm1857, %v1855, %v1852
        %v1859 = vadd.f32 %v1730, 1.0
        %v1860 = vlog2.pop %v1859
        %v1861 = vmul.f32 %v1860, 0.6931472
        %v1862 = vmul.f32 -0.5, %v1730
        %v1863 = vadd.f32 %v1862, 1.0
        %v1864 = vmul.f32 %v1863, %v1730
        %v1865 = vand.u32 2147483647, %v1730
        %vm1866 = vcmp.lt.f32.partialorder %v1865, 0.0004427343
        %v1867 = vsel %vm1866, %v1864, %v1861
        %v1868 = vadd.f32 %v1732, 1.0
        %v1869 = vlog2.pop %v1868
        %v1870 = vmul.f32 %v1869, 0.6931472
        %v1871 = vmul.f32 -0.5, %v1732
        %v1872 = vadd.f32 %v1871, 1.0
        %v1873 = vmul.f32 %v1872, %v1732
        %v1874 = vand.u32 2147483647, %v1732
        %vm1875 = vcmp.lt.f32.partialorder %v1874, 0.0004427343
        %v1876 = vsel %vm1875, %v1873, %v1870
        %v1877 = vadd.f32 %v1653, %v1741
        %v1878 = vadd.f32 %v1654, %v1750
        %v1879 = vadd.f32 %v1655, %v1759
        %v1880 = vadd.f32 %v1656, %v1768
        %v1881 = vadd.f32 %v1657, %v1777
        %v1882 = vadd.f32 %v1658, %v1786
        %v1883 = vadd.f32 %v1659, %v1795
        %v1884 = vadd.f32 %v1660, %v1804
        %v1885 = vadd.f32 %v1661, %v1813
        %v1886 = vadd.f32 %v1662, %v1822
        %v1887 = vadd.f32 %v1663, %v1831
        %v1888 = vadd.f32 %v1664, %v1840
        %v1889 = vadd.f32 %v1665, %v1849
        %v1890 = vadd.f32 %v1666, %v1858
        %v1891 = vadd.f32 %v1667, %v1867
        %v1892 = vadd.f32 %v1668, %v1876
        %v1893 = vsub.f32 %v1877, 0.31326163
        %v1894 = vsub.f32 %v1878, 0.31326163
        %v1895 = vsub.f32 %v1879, 0.31326163
        %v1896 = vsub.f32 %v1880, 0.31326163
        %v1897 = vsub.f32 %v1881, 0.31326163
        %v1898 = vsub.f32 %v1882, 0.31326163
        %v1899 = vsub.f32 %v1883, 0.31326163
        %v1900 = vsub.f32 %v1884, 0.31326163
        %v1901 = vsub.f32 %v1885, 0.31326163
        %v1902 = vsub.f32 %v1886, 0.31326163
        %v1903 = vsub.f32 %v1887, 0.31326163
        %v1904 = vsub.f32 %v1888, 0.31326163
        %v1905 = vsub.f32 %v1889, 0.31326163
        %v1906 = vsub.f32 %v1890, 0.31326163
        %v1907 = vsub.f32 %v1891, 0.31326163
        %v1908 = vsub.f32 %v1892, 0.31326163
        %vm1909 = vcmp.le.f32.partialorder %v1893, 0.0
        %vm1910 = vcmp.le.f32.partialorder %v1894, 0.0
        %vm1911 = vcmp.le.f32.partialorder %v1895, 0.0
        %vm1912 = vcmp.le.f32.partialorder %v1896, 0.0
        %vm1913 = vcmp.le.f32.partialorder %v1897, 0.0
        %vm1914 = vcmp.le.f32.partialorder %v1898, 0.0
        %vm1915 = vcmp.le.f32.partialorder %v1899, 0.0
        %vm1916 = vcmp.le.f32.partialorder %v1900, 0.0
        %vm1917 = vcmp.le.f32.partialorder %v1901, 0.0
        %vm1918 = vcmp.le.f32.partialorder %v1902, 0.0
        %vm1919 = vcmp.le.f32.partialorder %v1903, 0.0
        %vm1920 = vcmp.le.f32.partialorder %v1904, 0.0
        %vm1921 = vcmp.le.f32.partialorder %v1905, 0.0
        %vm1922 = vcmp.le.f32.partialorder %v1906, 0.0
        %vm1923 = vcmp.le.f32.partialorder %v1907, 0.0
        %vm1924 = vcmp.le.f32.partialorder %v1908, 0.0
        %v1925 = vsel %vm1909, 0.0, %v1893
        %v1926 = vsel %vm1910, 0.0, %v1894
        %v1927 = vsel %vm1911, 0.0, %v1895
        %v1928 = vsel %vm1912, 0.0, %v1896
        %v1929 = vsel %vm1913, 0.0, %v1897
        %v1930 = vsel %vm1914, 0.0, %v1898
        %v1931 = vsel %vm1915, 0.0, %v1899
        %v1932 = vsel %vm1916, 0.0, %v1900
        %v1933 = vsel %vm1917, 0.0, %v1901
        %v1934 = vsel %vm1918, 0.0, %v1902
        %v1935 = vsel %vm1919, 0.0, %v1903
        %v1936 = vsel %vm1920, 0.0, %v1904
        %v1937 = vsel %vm1921, 0.0, %v1905
        %v1938 = vsel %vm1922, 0.0, %v1906
        %v1939 = vsel %vm1923, 0.0, %v1907
        %v1940 = vsel %vm1924, 0.0, %v1908
        // Predicated region
        $region153: #{tpu_custom_call.1} parent=135 // pred_check
          %p1941 = pneg %p869
        $region154: #{tpu_custom_call.1} parent=135 // pred_check_branch
          %1943 = sbr.rel (%p1941) target = $region156
        $region155: #{tpu_custom_call.1} parent=135 // pred_region
          %v1944 = vld [vmem:[#allocation3] sm:$0xff]
          %v1945 = vld [vmem:[#allocation3 + $0x8] sm:$0xff]
          %v1946 = vld [vmem:[#allocation3 + $0x10] sm:$0xff]
          %v1947 = vld [vmem:[#allocation3 + $0x18] sm:$0xff]
          %v1948 = vld [vmem:[#allocation3 + $0x20] sm:$0xff]
          %v1949 = vld [vmem:[#allocation3 + $0x28] sm:$0xff]
          %v1950 = vld [vmem:[#allocation3 + $0x30] sm:$0xff]
          %v1951 = vld [vmem:[#allocation3 + $0x38] sm:$0xff]
          %v1952 = vld [vmem:[#allocation3 + $0x40] sm:$0xff]
          %v1953 = vld [vmem:[#allocation3 + $0x48] sm:$0xff]
          %v1954 = vld [vmem:[#allocation3 + $0x50] sm:$0xff]
          %v1955 = vld [vmem:[#allocation3 + $0x58] sm:$0xff]
          %v1956 = vld [vmem:[#allocation3 + $0x60] sm:$0xff]
          %v1957 = vld [vmem:[#allocation3 + $0x68] sm:$0xff]
          %v1958 = vld [vmem:[#allocation3 + $0x70] sm:$0xff]
          %v1959 = vld [vmem:[#allocation3 + $0x78] sm:$0xff]
          %1960 = vadd.xlane.f32.xlu0 %v1925
          %v1961 = vpop.xlane.xlu0 %1960
          %1962 = vadd.xlane.f32.xlu0 %v1926
          %v1963 = vpop.xlane.xlu0 %1962
          %1964 = vadd.xlane.f32.xlu0 %v1927
          %v1965 = vpop.xlane.xlu0 %1964
          %1966 = vadd.xlane.f32.xlu0 %v1928
          %v1967 = vpop.xlane.xlu0 %1966
          %1968 = vadd.xlane.f32.xlu0 %v1929
          %v1969 = vpop.xlane.xlu0 %1968
          %1970 = vadd.xlane.f32.xlu0 %v1930
          %v1971 = vpop.xlane.xlu0 %1970
          %1972 = vadd.xlane.f32.xlu0 %v1931
          %v1973 = vpop.xlane.xlu0 %1972
          %1974 = vadd.xlane.f32.xlu0 %v1932
          %v1975 = vpop.xlane.xlu0 %1974
          %1976 = vadd.xlane.f32.xlu0 %v1933
          %v1977 = vpop.xlane.xlu0 %1976
          %1978 = vadd.xlane.f32.xlu0 %v1934
          %v1979 = vpop.xlane.xlu0 %1978
          %1980 = vadd.xlane.f32.xlu0 %v1935
          %v1981 = vpop.xlane.xlu0 %1980
          %1982 = vadd.xlane.f32.xlu0 %v1936
          %v1983 = vpop.xlane.xlu0 %1982
          %1984 = vadd.xlane.f32.xlu0 %v1937
          %v1985 = vpop.xlane.xlu0 %1984
          %1986 = vadd.xlane.f32.xlu0 %v1938
          %v1987 = vpop.xlane.xlu0 %1986
          %1988 = vadd.xlane.f32.xlu0 %v1939
          %v1989 = vpop.xlane.xlu0 %1988
          %1990 = vadd.xlane.f32.xlu0 %v1940
          %v1991 = vpop.xlane.xlu0 %1990
          %v1992 = vadd.f32 %v1944, %v1961
          %v1993 = vadd.f32 %v1945, %v1963
          %v1994 = vadd.f32 %v1946, %v1965
          %v1995 = vadd.f32 %v1947, %v1967
          %v1996 = vadd.f32 %v1948, %v1969
          %v1997 = vadd.f32 %v1949, %v1971
          %v1998 = vadd.f32 %v1950, %v1973
          %v1999 = vadd.f32 %v1951, %v1975
          %v2000 = vadd.f32 %v1952, %v1977
          %v2001 = vadd.f32 %v1953, %v1979
          %v2002 = vadd.f32 %v1954, %v1981
          %v2003 = vadd.f32 %v1955, %v1983
          %v2004 = vadd.f32 %v1956, %v1985
          %v2005 = vadd.f32 %v1957, %v1987
          %v2006 = vadd.f32 %v1958, %v1989
          %v2007 = vadd.f32 %v1959, %v1991
          %vm2008 = vcmask 7168
          %2009 = vst.msk [vmem:[#allocation3] sm:$0xff] %vm2008, %v1992
          %2010 = vst.msk [vmem:[#allocation3 + $0x8] sm:$0xff] %vm2008, %v1993
          %2011 = vst.msk [vmem:[#allocation3 + $0x10] sm:$0xff] %vm2008, %v1994
          %2012 = vst.msk [vmem:[#allocation3 + $0x18] sm:$0xff] %vm2008, %v1995
          %2013 = vst.msk [vmem:[#allocation3 + $0x20] sm:$0xff] %vm2008, %v1996
          %2014 = vst.msk [vmem:[#allocation3 + $0x28] sm:$0xff] %vm2008, %v1997
          %2015 = vst.msk [vmem:[#allocation3 + $0x30] sm:$0xff] %vm2008, %v1998
          %2016 = vst.msk [vmem:[#allocation3 + $0x38] sm:$0xff] %vm2008, %v1999
          %2017 = vst.msk [vmem:[#allocation3 + $0x40] sm:$0xff] %vm2008, %v2000
          %2018 = vst.msk [vmem:[#allocation3 + $0x48] sm:$0xff] %vm2008, %v2001
          %2019 = vst.msk [vmem:[#allocation3 + $0x50] sm:$0xff] %vm2008, %v2002
          %2020 = vst.msk [vmem:[#allocation3 + $0x58] sm:$0xff] %vm2008, %v2003
          %2021 = vst.msk [vmem:[#allocation3 + $0x60] sm:$0xff] %vm2008, %v2004
          %2022 = vst.msk [vmem:[#allocation3 + $0x68] sm:$0xff] %vm2008, %v2005
          %2023 = vst.msk [vmem:[#allocation3 + $0x70] sm:$0xff] %vm2008, %v2006
          %2024 = vst.msk [vmem:[#allocation3 + $0x78] sm:$0xff] %vm2008, %v2007
        $region156: #{tpu_custom_call.1} parent=135 // pred_fallthru
          _
        %p2025 = scmp.eq.s32.totalorder %s42, 1
        // Predicated region
        $region157: #{tpu_custom_call.1} parent=135 // pred_check
          %p2026 = pneg %p2025
        $region158: #{tpu_custom_call.1} parent=135 // pred_check_branch
          %2028 = sbr.rel (%p2026) target = $region160
        $region159: #{tpu_custom_call.1} parent=135 // pred_region
          %v2029 = vld [vmem:[#allocation3] sm:$0xff]
          %v2030 = vld [vmem:[#allocation3 + $0x8] sm:$0xff]
          %v2031 = vld [vmem:[#allocation3 + $0x10] sm:$0xff]
          %v2032 = vld [vmem:[#allocation3 + $0x18] sm:$0xff]
          %v2033 = vld [vmem:[#allocation3 + $0x20] sm:$0xff]
          %v2034 = vld [vmem:[#allocation3 + $0x28] sm:$0xff]
          %v2035 = vld [vmem:[#allocation3 + $0x30] sm:$0xff]
          %v2036 = vld [vmem:[#allocation3 + $0x38] sm:$0xff]
          %v2037 = vld [vmem:[#allocation3 + $0x40] sm:$0xff]
          %v2038 = vld [vmem:[#allocation3 + $0x48] sm:$0xff]
          %v2039 = vld [vmem:[#allocation3 + $0x50] sm:$0xff]
          %v2040 = vld [vmem:[#allocation3 + $0x58] sm:$0xff]
          %v2041 = vld [vmem:[#allocation3 + $0x60] sm:$0xff]
          %v2042 = vld [vmem:[#allocation3 + $0x68] sm:$0xff]
          %v2043 = vld [vmem:[#allocation3 + $0x70] sm:$0xff]
          %v2044 = vld [vmem:[#allocation3 + $0x78] sm:$0xff]
          %v2045 = vadd.f32 %v2029, 1e-05
          %v2046 = vadd.f32 %v2030, 1e-05
          %v2047 = vadd.f32 %v2031, 1e-05
          %v2048 = vadd.f32 %v2032, 1e-05
          %v2049 = vadd.f32 %v2033, 1e-05
          %v2050 = vadd.f32 %v2034, 1e-05
          %v2051 = vadd.f32 %v2035, 1e-05
          %v2052 = vadd.f32 %v2036, 1e-05
          %v2053 = vadd.f32 %v2037, 1e-05
          %v2054 = vadd.f32 %v2038, 1e-05
          %v2055 = vadd.f32 %v2039, 1e-05
          %v2056 = vadd.f32 %v2040, 1e-05
          %v2057 = vadd.f32 %v2041, 1e-05
          %v2058 = vadd.f32 %v2042, 1e-05
          %v2059 = vadd.f32 %v2043, 1e-05
          %v2060 = vadd.f32 %v2044, 1e-05
          %v2061 = vrcp.pop %v2045
          %v2062 = vrcp.pop %v2046
          %v2063 = vrcp.pop %v2047
          %v2064 = vrcp.pop %v2048
          %v2065 = vrcp.pop %v2049
          %v2066 = vrcp.pop %v2050
          %v2067 = vrcp.pop %v2051
          %v2068 = vrcp.pop %v2052
          %v2069 = vrcp.pop %v2053
          %v2070 = vrcp.pop %v2054
          %v2071 = vrcp.pop %v2055
          %v2072 = vrcp.pop %v2056
          %v2073 = vrcp.pop %v2057
          %v2074 = vrcp.pop %v2058
          %v2075 = vrcp.pop %v2059
          %v2076 = vrcp.pop %v2060
          %2078 = vset.pattern.permute.xlu0 0
          %2079 = vperm.xlu0 %2078, %v2061
          %v2080 = vpop.permute.xlu0 %2079
          %2083 = vset.pattern.permute.xlu0 0
          %2084 = vperm.xlu0 %2083, %v2062
          %v2085 = vpop.permute.xlu0 %2084
          %2088 = vset.pattern.permute.xlu0 0
          %2089 = vperm.xlu0 %2088, %v2063
          %v2090 = vpop.permute.xlu0 %2089
          %2093 = vset.pattern.permute.xlu0 0
          %2094 = vperm.xlu0 %2093, %v2064
          %v2095 = vpop.permute.xlu0 %2094
          %2098 = vset.pattern.permute.xlu0 0
          %2099 = vperm.xlu0 %2098, %v2065
          %v2100 = vpop.permute.xlu0 %2099
          %2103 = vset.pattern.permute.xlu0 0
          %2104 = vperm.xlu0 %2103, %v2066
          %v2105 = vpop.permute.xlu0 %2104
          %2108 = vset.pattern.permute.xlu0 0
          %2109 = vperm.xlu0 %2108, %v2067
          %v2110 = vpop.permute.xlu0 %2109
          %2113 = vset.pattern.permute.xlu0 0
          %2114 = vperm.xlu0 %2113, %v2068
          %v2115 = vpop.permute.xlu0 %2114
          %2118 = vset.pattern.permute.xlu0 0
          %2119 = vperm.xlu0 %2118, %v2069
          %v2120 = vpop.permute.xlu0 %2119
          %2123 = vset.pattern.permute.xlu0 0
          %2124 = vperm.xlu0 %2123, %v2070
          %v2125 = vpop.permute.xlu0 %2124
          %2128 = vset.pattern.permute.xlu0 0
          %2129 = vperm.xlu0 %2128, %v2071
          %v2130 = vpop.permute.xlu0 %2129
          %2133 = vset.pattern.permute.xlu0 0
          %2134 = vperm.xlu0 %2133, %v2072
          %v2135 = vpop.permute.xlu0 %2134
          %2138 = vset.pattern.permute.xlu0 0
          %2139 = vperm.xlu0 %2138, %v2073
          %v2140 = vpop.permute.xlu0 %2139
          %2143 = vset.pattern.permute.xlu0 0
          %2144 = vperm.xlu0 %2143, %v2074
          %v2145 = vpop.permute.xlu0 %2144
          %2148 = vset.pattern.permute.xlu0 0
          %2149 = vperm.xlu0 %2148, %v2075
          %v2150 = vpop.permute.xlu0 %2149
          %2153 = vset.pattern.permute.xlu0 0
          %2154 = vperm.xlu0 %2153, %v2076
          %v2155 = vpop.permute.xlu0 %2154
          %v2157 = vmul.f32 %v1925, %v2080
          %v2158 = vmul.f32 %v1926, %v2085
          %v2159 = vmul.f32 %v1927, %v2090
          %v2160 = vmul.f32 %v1928, %v2095
          %v2161 = vmul.f32 %v1929, %v2100
          %v2162 = vmul.f32 %v1930, %v2105
          %v2163 = vmul.f32 %v1931, %v2110
          %v2164 = vmul.f32 %v1932, %v2115
          %v2165 = vmul.f32 %v1933, %v2120
          %v2166 = vmul.f32 %v1934, %v2125
          %v2167 = vmul.f32 %v1935, %v2130
          %v2168 = vmul.f32 %v1936, %v2135
          %v2169 = vmul.f32 %v1937, %v2140
          %v2170 = vmul.f32 %v1938, %v2145
          %v2171 = vmul.f32 %v1939, %v2150
          %v2172 = vmul.f32 %v1940, %v2155
          %v2173 = vld [vmem:[%s755] sm:$0xff]
          %v2174 = vld [vmem:[%s755 + $0x8] sm:$0xff]
          %v2175 = vld [vmem:[%s755 + $0x10] sm:$0xff]
          %v2176 = vld [vmem:[%s755 + $0x18] sm:$0xff]
          %v2177 = vld [vmem:[%s755 + $0x20] sm:$0xff]
          %v2178 = vld [vmem:[%s755 + $0x28] sm:$0xff]
          %v2179 = vld [vmem:[%s755 + $0x30] sm:$0xff]
          %v2180 = vld [vmem:[%s755 + $0x38] sm:$0xff]
          %v2181 = vld [vmem:[%s755 + $0x40] sm:$0xff]
          %v2182 = vld [vmem:[%s755 + $0x48] sm:$0xff]
          %v2183 = vld [vmem:[%s755 + $0x50] sm:$0xff]
          %v2184 = vld [vmem:[%s755 + $0x58] sm:$0xff]
          %v2185 = vld [vmem:[%s755 + $0x60] sm:$0xff]
          %v2186 = vld [vmem:[%s755 + $0x68] sm:$0xff]
          %v2187 = vld [vmem:[%s755 + $0x70] sm:$0xff]
          %v2188 = vld [vmem:[%s755 + $0x78] sm:$0xff]
          %v2189 = vld [vmem:[%s855] sm:$0x1]
          %v2191 = vlaneseq
          %v2192 = vshrl.u32 %v2191, 7
          %v2193 = vsub.s32 0, %v2192
          %v2194 = vrot.slane %v2189, %v2193
          %2196 = vmatprep.subr.mxu0 0.0
          %2197 = vmatpush1.msra.mxu0 %v2173
          %2198 = vmatprep.subr.mxu0 0.0
          %2199 = vmatpush1.msra.mxu0 %v2174
          %2200 = vmatprep.subr.mxu0 0.0
          %2201 = vmatpush1.msra.mxu0 %v2175
          %2202 = vmatprep.subr.mxu0 0.0
          %2203 = vmatpush1.msra.mxu0 %v2176
          %2204 = vmatprep.subr.mxu0 0.0
          %2205 = vmatpush1.msra.mxu0 %v2177
          %2206 = vmatprep.subr.mxu0 0.0
          %2207 = vmatpush1.msra.mxu0 %v2178
          %2208 = vmatprep.subr.mxu0 0.0
          %2209 = vmatpush1.msra.mxu0 %v2179
          %2210 = vmatprep.subr.mxu0 0.0
          %2211 = vmatpush1.msra.mxu0 %v2180
          %2212 = vmatprep.subr.mxu0 0.0
          %2213 = vmatpush1.msra.mxu0 %v2181
          %2214 = vmatprep.subr.mxu0 0.0
          %2215 = vmatpush1.msra.mxu0 %v2182
          %2216 = vmatprep.subr.mxu0 0.0
          %2217 = vmatpush1.msra.mxu0 %v2183
          %2218 = vmatprep.subr.mxu0 0.0
          %2219 = vmatpush1.msra.mxu0 %v2184
          %2220 = vmatprep.subr.mxu0 0.0
          %2221 = vmatpush1.msra.mxu0 %v2185
          %2222 = vmatprep.subr.mxu0 0.0
          %2223 = vmatpush1.msra.mxu0 %v2186
          %2224 = vmatprep.subr.mxu0 0.0
          %2225 = vmatpush1.msra.mxu0 %v2187
          %2226 = vmatprep.subr.mxu0 0.0
          %2227 = vmatpush1.msra.mxu0 %v2188
          %2228 = vmatprep.subr.mxu0 0.0
          %2229 = vmatpush1.msra.mxu0 0.0
          %2230 = vmatprep.subr.mxu0 0.0
          %2231 = vmatpush1.msra.mxu0 0.0
          %2232 = vmatprep.subr.mxu0 0.0
          %2233 = vmatpush1.msra.mxu0 0.0
          %2234 = vmatprep.subr.mxu0 0.0
          %2235 = vmatpush1.msra.mxu0 0.0
          %2236 = vmatprep.subr.mxu0 0.0
          %2237 = vmatpush1.msra.mxu0 0.0
          %2238 = vmatprep.subr.mxu0 0.0
          %2239 = vmatpush1.msra.mxu0 0.0
          %2240 = vmatprep.subr.mxu0 0.0
          %2241 = vmatpush1.msra.mxu0 0.0
          %2242 = vmatprep.subr.mxu0 0.0
          %2243 = vmatpush1.msra.mxu0 0.0
          %2244 = vmatprep.subr.mxu0 0.0
          %2245 = vmatpush1.msra.mxu0 0.0
          %2246 = vmatprep.subr.mxu0 0.0
          %2247 = vmatpush1.msra.mxu0 0.0
          %2248 = vmatprep.subr.mxu0 0.0
          %2249 = vmatpush1.msra.mxu0 0.0
          %2250 = vmatprep.subr.mxu0 0.0
          %2251 = vmatpush1.msra.mxu0 0.0
          %2252 = vmatprep.subr.mxu0 0.0
          %2253 = vmatpush1.msra.mxu0 0.0
          %2254 = vmatprep.subr.mxu0 0.0
          %2255 = vmatpush1.msra.mxu0 0.0
          %2256 = vmatprep.subr.mxu0 0.0
          %2257 = vmatpush1.msra.mxu0 0.0
          %2258 = vmatprep.subr.mxu0 0.0
          %2259 = vmatpush1.msra.mxu0 0.0
          %2260 = vmatprep.mubr.f32.mxu0 0.0
          %2261 = vmatmul.mubr.f32.gmra.mrb[0].mxu0 %v1469
          %v2262 = vpop.f32.mrb[0].mxu0
          %v2263 = vadd.f32 %v2194, %v2262
          %v2264 = vpop.f32.mrb[0].mxu0
          %2265 = vmatprep.mubr.f32.mxu0 0.0
          %2266 = vmatmul.mubr.f32.gmra.mrb[0].mxu0 %v1470
          %v2267 = vpop.f32.mrb[0].mxu0
          %v2268 = vadd.f32 %v2194, %v2267
          %v2269 = vpop.f32.mrb[0].mxu0
          %2270 = vmatprep.mubr.f32.mxu0 0.0
          %2271 = vmatmul.mubr.f32.gmra.mrb[0].mxu0 %v1471
          %v2272 = vpop.f32.mrb[0].mxu0
          %v2273 = vadd.f32 %v2194, %v2272
          %v2274 = vpop.f32.mrb[0].mxu0
          %2275 = vmatprep.mubr.f32.mxu0 0.0
          %2276 = vmatmul.mubr.f32.gmra.mrb[0].mxu0 %v1472
          %v2277 = vpop.f32.mrb[0].mxu0
          %v2278 = vadd.f32 %v2194, %v2277
          %v2279 = vpop.f32.mrb[0].mxu0
          %2280 = vmatprep.mubr.f32.mxu0 0.0
          %2281 = vmatmul.mubr.f32.gmra.mrb[0].mxu0 %v1473
          %v2282 = vpop.f32.mrb[0].mxu0
          %v2283 = vadd.f32 %v2194, %v2282
          %v2284 = vpop.f32.mrb[0].mxu0
          %2285 = vmatprep.mubr.f32.mxu0 0.0
          %2286 = vmatmul.mubr.f32.gmra.mrb[0].mxu0 %v1474
          %v2287 = vpop.f32.mrb[0].mxu0
          %v2288 = vadd.f32 %v2194, %v2287
          %v2289 = vpop.f32.mrb[0].mxu0
          %2290 = vmatprep.mubr.f32.mxu0 0.0
          %2291 = vmatmul.mubr.f32.gmra.mrb[0].mxu0 %v1475
          %v2292 = vpop.f32.mrb[0].mxu0
          %v2293 = vadd.f32 %v2194, %v2292
          %v2294 = vpop.f32.mrb[0].mxu0
          %2295 = vmatprep.mubr.f32.mxu0 0.0
          %2296 = vmatmul.mubr.f32.gmra.mrb[0].mxu0 %v1476
          %v2297 = vpop.f32.mrb[0].mxu0
          %v2298 = vadd.f32 %v2194, %v2297
          %v2299 = vpop.f32.mrb[0].mxu0
          %2300 = vmatprep.mubr.f32.mxu0 0.0
          %2301 = vmatmul.mubr.f32.gmra.mrb[0].mxu0 %v1477
          %v2302 = vpop.f32.mrb[0].mxu0
          %v2303 = vadd.f32 %v2194, %v2302
          %v2304 = vpop.f32.mrb[0].mxu0
          %2305 = vmatprep.mubr.f32.mxu0 0.0
          %2306 = vmatmul.mubr.f32.gmra.mrb[0].mxu0 %v1478
          %v2307 = vpop.f32.mrb[0].mxu0
          %v2308 = vadd.f32 %v2194, %v2307
          %v2309 = vpop.f32.mrb[0].mxu0
          %2310 = vmatprep.mubr.f32.mxu0 0.0
          %2311 = vmatmul.mubr.f32.gmra.mrb[0].mxu0 %v1479
          %v2312 = vpop.f32.mrb[0].mxu0
          %v2313 = vadd.f32 %v2194, %v2312
          %v2314 = vpop.f32.mrb[0].mxu0
          %2315 = vmatprep.mubr.f32.mxu0 0.0
          %2316 = vmatmul.mubr.f32.gmra.mrb[0].mxu0 %v1480
          %v2317 = vpop.f32.mrb[0].mxu0
          %v2318 = vadd.f32 %v2194, %v2317
          %v2319 = vpop.f32.mrb[0].mxu0
          %2320 = vmatprep.mubr.f32.mxu0 0.0
          %2321 = vmatmul.mubr.f32.gmra.mrb[0].mxu0 %v1481
          %v2322 = vpop.f32.mrb[0].mxu0
          %v2323 = vadd.f32 %v2194, %v2322
          %v2324 = vpop.f32.mrb[0].mxu0
          %2325 = vmatprep.mubr.f32.mxu0 0.0
          %2326 = vmatmul.mubr.f32.gmra.mrb[0].mxu0 %v1482
          %v2327 = vpop.f32.mrb[0].mxu0
          %v2328 = vadd.f32 %v2194, %v2327
          %v2329 = vpop.f32.mrb[0].mxu0
          %2330 = vmatprep.mubr.f32.mxu0 0.0
          %2331 = vmatmul.mubr.f32.gmra.mrb[0].mxu0 %v1483
          %v2332 = vpop.f32.mrb[0].mxu0
          %v2333 = vadd.f32 %v2194, %v2332
          %v2334 = vpop.f32.mrb[0].mxu0
          %2335 = vmatprep.mubr.f32.mxu0 0.0
          %2336 = vmatmul.mubr.f32.gmra.mrb[0].mxu0 %v1484
          %v2337 = vpop.f32.mrb[0].mxu0
          %v2338 = vadd.f32 %v2194, %v2337
          %v2339 = vpop.f32.mrb[0].mxu0
          %2340 = vdwg.mxu0
          %v2341 = vld [vmem:[%s846] sm:$0xff]
          %v2342 = vld [vmem:[%s846 + $0x8] sm:$0xff]
          %v2343 = vld [vmem:[%s846 + $0x10] sm:$0xff]
          %v2344 = vld [vmem:[%s846 + $0x18] sm:$0xff]
          %v2345 = vld [vmem:[%s846 + $0x20] sm:$0xff]
          %v2346 = vld [vmem:[%s846 + $0x28] sm:$0xff]
          %v2347 = vld [vmem:[%s846 + $0x30] sm:$0xff]
          %v2348 = vld [vmem:[%s846 + $0x38] sm:$0xff]
          %v2349 = vld [vmem:[%s846 + $0x40] sm:$0xff]
          %v2350 = vld [vmem:[%s846 + $0x48] sm:$0xff]
          %v2351 = vld [vmem:[%s846 + $0x50] sm:$0xff]
          %v2352 = vld [vmem:[%s846 + $0x58] sm:$0xff]
          %v2353 = vld [vmem:[%s846 + $0x60] sm:$0xff]
          %v2354 = vld [vmem:[%s846 + $0x68] sm:$0xff]
          %v2355 = vld [vmem:[%s846 + $0x70] sm:$0xff]
          %v2356 = vld [vmem:[%s846 + $0x78] sm:$0xff]
          %v2357 = vmul.f32 %v2341, 1.442695
          %v2358 = vpow.pop %v2357
          %v2359 = vmul.f32 %v2342, 1.442695
          %v2360 = vpow.pop %v2359
          %v2361 = vmul.f32 %v2343, 1.442695
          %v2362 = vpow.pop %v2361
          %v2363 = vmul.f32 %v2344, 1.442695
          %v2364 = vpow.pop %v2363
          %v2365 = vmul.f32 %v2345, 1.442695
          %v2366 = vpow.pop %v2365
          %v2367 = vmul.f32 %v2346, 1.442695
          %v2368 = vpow.pop %v2367
          %v2369 = vmul.f32 %v2347, 1.442695
          %v2370 = vpow.pop %v2369
          %v2371 = vmul.f32 %v2348, 1.442695
          %v2372 = vpow.pop %v2371
          %v2373 = vmul.f32 %v2349, 1.442695
          %v2374 = vpow.pop %v2373
          %v2375 = vmul.f32 %v2350, 1.442695
          %v2376 = vpow.pop %v2375
          %v2377 = vmul.f32 %v2351, 1.442695
          %v2378 = vpow.pop %v2377
          %v2379 = vmul.f32 %v2352, 1.442695
          %v2380 = vpow.pop %v2379
          %v2381 = vmul.f32 %v2353, 1.442695
          %v2382 = vpow.pop %v2381
          %v2383 = vmul.f32 %v2354, 1.442695
          %v2384 = vpow.pop %v2383
          %v2385 = vmul.f32 %v2355, 1.442695
          %v2386 = vpow.pop %v2385
          %v2387 = vmul.f32 %v2356, 1.442695
          %v2388 = vpow.pop %v2387
          %2390 = vset.pattern.permute.xlu0 0
          %2391 = vperm.xlu0 %2390, %v2358
          %v2392 = vpop.permute.xlu0 %2391
          %2395 = vset.pattern.permute.xlu0 0
          %2396 = vperm.xlu0 %2395, %v2360
          %v2397 = vpop.permute.xlu0 %2396
          %2400 = vset.pattern.permute.xlu0 0
          %2401 = vperm.xlu0 %2400, %v2362
          %v2402 = vpop.permute.xlu0 %2401
          %2405 = vset.pattern.permute.xlu0 0
          %2406 = vperm.xlu0 %2405, %v2364
          %v2407 = vpop.permute.xlu0 %2406
          %2410 = vset.pattern.permute.xlu0 0
          %2411 = vperm.xlu0 %2410, %v2366
          %v2412 = vpop.permute.xlu0 %2411
          %2415 = vset.pattern.permute.xlu0 0
          %2416 = vperm.xlu0 %2415, %v2368
          %v2417 = vpop.permute.xlu0 %2416
          %2420 = vset.pattern.permute.xlu0 0
          %2421 = vperm.xlu0 %2420, %v2370
          %v2422 = vpop.permute.xlu0 %2421
          %2425 = vset.pattern.permute.xlu0 0
          %2426 = vperm.xlu0 %2425, %v2372
          %v2427 = vpop.permute.xlu0 %2426
          %2430 = vset.pattern.permute.xlu0 0
          %2431 = vperm.xlu0 %2430, %v2374
          %v2432 = vpop.permute.xlu0 %2431
          %2435 = vset.pattern.permute.xlu0 0
          %2436 = vperm.xlu0 %2435, %v2376
          %v2437 = vpop.permute.xlu0 %2436
          %2440 = vset.pattern.permute.xlu0 0
          %2441 = vperm.xlu0 %2440, %v2378
          %v2442 = vpop.permute.xlu0 %2441
          %2445 = vset.pattern.permute.xlu0 0
          %2446 = vperm.xlu0 %2445, %v2380
          %v2447 = vpop.permute.xlu0 %2446
          %2450 = vset.pattern.permute.xlu0 0
          %2451 = vperm.xlu0 %2450, %v2382
          %v2452 = vpop.permute.xlu0 %2451
          %2455 = vset.pattern.permute.xlu0 0
          %2456 = vperm.xlu0 %2455, %v2384
          %v2457 = vpop.permute.xlu0 %2456
          %2460 = vset.pattern.permute.xlu0 0
          %2461 = vperm.xlu0 %2460, %v2386
          %v2462 = vpop.permute.xlu0 %2461
          %2465 = vset.pattern.permute.xlu0 0
          %2466 = vperm.xlu0 %2465, %v2388
          %v2467 = vpop.permute.xlu0 %2466
          %v2469 = vmul.f32 %v2392, %v2157
          %v2470 = vmul.f32 %v2397, %v2158
          %v2471 = vmul.f32 %v2402, %v2159
          %v2472 = vmul.f32 %v2407, %v2160
          %v2473 = vmul.f32 %v2412, %v2161
          %v2474 = vmul.f32 %v2417, %v2162
          %v2475 = vmul.f32 %v2422, %v2163
          %v2476 = vmul.f32 %v2427, %v2164
          %v2477 = vmul.f32 %v2432, %v2165
          %v2478 = vmul.f32 %v2437, %v2166
          %v2479 = vmul.f32 %v2442, %v2167
          %v2480 = vmul.f32 %v2447, %v2168
          %v2481 = vmul.f32 %v2452, %v2169
          %v2482 = vmul.f32 %v2457, %v2170
          %v2483 = vmul.f32 %v2462, %v2171
          %v2484 = vmul.f32 %v2467, %v2172
          %2485 = vst [vmem:[%s814] sm:$0xff] %v2157
          %2486 = vst [vmem:[%s814 + $0x8] sm:$0xff] %v2158
          %2487 = vst [vmem:[%s814 + $0x10] sm:$0xff] %v2159
          %2488 = vst [vmem:[%s814 + $0x18] sm:$0xff] %v2160
          %2489 = vst [vmem:[%s814 + $0x20] sm:$0xff] %v2161
          %2490 = vst [vmem:[%s814 + $0x28] sm:$0xff] %v2162
          %2491 = vst [vmem:[%s814 + $0x30] sm:$0xff] %v2163
          %2492 = vst [vmem:[%s814 + $0x38] sm:$0xff] %v2164
          %2493 = vst [vmem:[%s814 + $0x40] sm:$0xff] %v2165
          %2494 = vst [vmem:[%s814 + $0x48] sm:$0xff] %v2166
          %2495 = vst [vmem:[%s814 + $0x50] sm:$0xff] %v2167
          %2496 = vst [vmem:[%s814 + $0x58] sm:$0xff] %v2168
          %2497 = vst [vmem:[%s814 + $0x60] sm:$0xff] %v2169
          %2498 = vst [vmem:[%s814 + $0x68] sm:$0xff] %v2170
          %2499 = vst [vmem:[%s814 + $0x70] sm:$0xff] %v2171
          %2500 = vst [vmem:[%s814 + $0x78] sm:$0xff] %v2172
          %2501 = vst [vmem:[%s828] sm:$0xff] %v2469
          %2502 = vst [vmem:[%s828 + $0x8] sm:$0xff] %v2470
          %2503 = vst [vmem:[%s828 + $0x10] sm:$0xff] %v2471
          %2504 = vst [vmem:[%s828 + $0x18] sm:$0xff] %v2472
          %2505 = vst [vmem:[%s828 + $0x20] sm:$0xff] %v2473
          %2506 = vst [vmem:[%s828 + $0x28] sm:$0xff] %v2474
          %2507 = vst [vmem:[%s828 + $0x30] sm:$0xff] %v2475
          %2508 = vst [vmem:[%s828 + $0x38] sm:$0xff] %v2476
          %2509 = vst [vmem:[%s828 + $0x40] sm:$0xff] %v2477
          %2510 = vst [vmem:[%s828 + $0x48] sm:$0xff] %v2478
          %2511 = vst [vmem:[%s828 + $0x50] sm:$0xff] %v2479
          %2512 = vst [vmem:[%s828 + $0x58] sm:$0xff] %v2480
          %2513 = vst [vmem:[%s828 + $0x60] sm:$0xff] %v2481
          %2514 = vst [vmem:[%s828 + $0x68] sm:$0xff] %v2482
          %2515 = vst [vmem:[%s828 + $0x70] sm:$0xff] %v2483
          %2516 = vst [vmem:[%s828 + $0x78] sm:$0xff] %v2484
          %2517 = vst [vmem:[%s835] sm:$0xff] %v2263
          %2518 = vst [vmem:[%s835 + $0x8] sm:$0xff] %v2268
          %2519 = vst [vmem:[%s835 + $0x10] sm:$0xff] %v2273
          %2520 = vst [vmem:[%s835 + $0x18] sm:$0xff] %v2278
          %2521 = vst [vmem:[%s835 + $0x20] sm:$0xff] %v2283
          %2522 = vst [vmem:[%s835 + $0x28] sm:$0xff] %v2288
          %2523 = vst [vmem:[%s835 + $0x30] sm:$0xff] %v2293
          %2524 = vst [vmem:[%s835 + $0x38] sm:$0xff] %v2298
          %2525 = vst [vmem:[%s835 + $0x40] sm:$0xff] %v2303
          %2526 = vst [vmem:[%s835 + $0x48] sm:$0xff] %v2308
          %2527 = vst [vmem:[%s835 + $0x50] sm:$0xff] %v2313
          %2528 = vst [vmem:[%s835 + $0x58] sm:$0xff] %v2318
          %2529 = vst [vmem:[%s835 + $0x60] sm:$0xff] %v2323
          %2530 = vst [vmem:[%s835 + $0x68] sm:$0xff] %v2328
          %2531 = vst [vmem:[%s835 + $0x70] sm:$0xff] %v2333
          %2532 = vst [vmem:[%s835 + $0x78] sm:$0xff] %v2338
        $region160: #{tpu_custom_call.1} parent=135 // pred_fallthru
          _
        %s2533 = sand.u32 %s353, 1
        %s2534 = scalar_lea.sflag [#allocation7], %s2533
        %s2535 = sand.u32 %s353, 1
        %s2536 = smul.addr %s2535, 128
        %s2537 = scalar_lea.vmem [#allocation10], %s2536
        %s2538 = smul.u32 16, %s41
        %p2539 = scmp.lt.s32.totalorder %s2538, 31
        %s2540 = scalar_select %p2539, %s2538, 31
        %s2541 = smul.addr %s2540, 8
        %s2542 = scalar_lea.vmem %s13, %s2541
        %s2543 = sand.u32 %s36, 1
        %s2544 = scalar_lea.sflag [#allocation12], %s2543
        %s2545 = sand.u32 %s409, 1
        %s2546 = smul.addr %s2545, 128
        %s2547 = scalar_lea.vmem [#allocation11], %s2546
        %s2548 = sand.u32 %s36, 1
        %s2549 = scalar_lea.sflag [#allocation12], %s2548
        %s2550 = sand.u32 %s439, 1
        %s2551 = smul.addr %s2550, 128
        %s2552 = scalar_lea.vmem [#allocation13], %s2551
        // Predicated region
        $region161: #{tpu_custom_call.1} parent=135 // pred_check
          %p2553 = pneg %p363
        $region162: #{tpu_custom_call.1} parent=135 // pred_check_branch
          %2555 = sbr.rel (%p2553) target = $region164
        $region163: #{tpu_custom_call.1} parent=135 // pred_region
          %s2556 = smul.u32 %s43, %s42
          %s2557 = smul.u32 16, %s41
          %s2559 = ssub.s32 2048, 2048
          %2560 = vsyncadd %s2534, %s2559
          %s2561 = smul.addr %s2557, 2
          %s2562 = sadd.s32 %s2556, %s2561
          %s2563 = smul.addr %s2562, 128
          %s2564 = scalar_lea.hbm %s12, %s2563
          %s2565 = sshll.u32 %s2537, 4
          %s2566 = int_to_ptr.vmem [resolvable:$true] %s2565
          %2571 = dma.vmem_to_hbm [thread:$0]  %s2566, 2048, %s2564, %s2534, 128, 256, 8
        $region164: #{tpu_custom_call.1} parent=135 // pred_fallthru
          _
        // Predicated region
        $region165: #{tpu_custom_call.1} parent=135 // pred_check
          %p2572 = pneg %p389
        $region166: #{tpu_custom_call.1} parent=135 // pred_check_branch
          %2574 = sbr.rel (%p2572) target = $region168
        $region167: #{tpu_custom_call.1} parent=135 // pred_region
          %s2575 = smul.u32 16, %s41
        $region168: #{tpu_custom_call.1} parent=135 // pred_fallthru
          _
        // Predicated region
        $region169: #{tpu_custom_call.1} parent=135 // pred_check
          %p2576 = pneg %p419
        $region170: #{tpu_custom_call.1} parent=135 // pred_check_branch
          %2578 = sbr.rel (%p2576) target = $region172
        $region171: #{tpu_custom_call.1} parent=135 // pred_region
          %s2579 = smul.u32 %s43, %s42
          %s2580 = smul.u32 16, %s41
          %s2582 = ssub.s32 2048, 2048
          %2583 = vsyncadd %s2544, %s2582
          %s2584 = smul.addr %s2580, 2
          %s2585 = sadd.s32 %s2579, %s2584
          %s2586 = smul.addr %s2585, 128
          %s2587 = scalar_lea.hbm %s14, %s2586
          %s2588 = sshll.u32 %s2547, 4
          %s2589 = int_to_ptr.vmem [resolvable:$true] %s2588
          %2594 = dma.vmem_to_hbm [thread:$0]  %s2589, 2048, %s2587, %s2544, 128, 256, 8
        $region172: #{tpu_custom_call.1} parent=135 // pred_fallthru
          _
        // Predicated region
        $region173: #{tpu_custom_call.1} parent=135 // pred_check
          %p2595 = pneg %p449
        $region174: #{tpu_custom_call.1} parent=135 // pred_check_branch
          %2597 = sbr.rel (%p2595) target = $region176
        $region175: #{tpu_custom_call.1} parent=135 // pred_region
          %s2598 = smul.u32 %s43, %s42
          %s2599 = smul.u32 16, %s41
          %s2601 = ssub.s32 2048, 2048
          %2602 = vsyncadd %s2549, %s2601
          %s2603 = smul.addr %s2599, 2
          %s2604 = sadd.s32 %s2598, %s2603
          %s2605 = smul.addr %s2604, 128
          %s2606 = scalar_lea.hbm %s15, %s2605
          %s2607 = sshll.u32 %s2552, 4
          %s2608 = int_to_ptr.vmem [resolvable:$true] %s2607
          %2613 = dma.vmem_to_hbm [thread:$0]  %s2608, 2048, %s2606, %s2549, 128, 256, 8
        $region176: #{tpu_custom_call.1} parent=135 // pred_fallthru
          _
      $region136: #{tpu_custom_call.1} parent=5 // pred_fallthru
        _
      %p2614 = scmp.le.s32.totalorder 2, %s31
      // Predicated region
      $region177: #{tpu_custom_call.1} parent=5 // pred_check
        %p2615 = pneg %p2614
      $region178: #{tpu_custom_call.1} parent=5 // pred_check_branch
        %2617 = sbr.rel (%p2615) target = $region180
      $region179: #{tpu_custom_call.1} parent=5 // pred_region
        %s2618 = ssub.s32 %s31, 2
        // Predicated region
        $region181: #{tpu_custom_call.1} parent=179 // pred_check
          %p2619 = pneg %p369
        $region182: #{tpu_custom_call.1} parent=179 // pred_check_branch
          %2621 = sbr.rel (%p2619) target = $region184
        $region183: #{tpu_custom_call.1} parent=179 // pred_region
          %s2622 = sand.u32 %s354, 1
          %s2623 = scalar_lea.sflag [#allocation7], %s2622
          %s2624 = sand.u32 %s354, 1
          %s2625 = smul.addr %s2624, 128
          %s2626 = scalar_lea.vmem [#allocation10], %s2625
          %2627 = dma.done %s2623, 2048
        $region184: #{tpu_custom_call.1} parent=179 // pred_fallthru
          _
        // Predicated region
        $region185: #{tpu_custom_call.1} parent=179 // pred_check
          %p2628 = pneg %p395
        $region186: #{tpu_custom_call.1} parent=179 // pred_check_branch
          %2630 = sbr.rel (%p2628) target = $region188
        $region187: #{tpu_custom_call.1} parent=179 // pred_region
          %s2631 = smul.u32 16, %s44
          %p2632 = scmp.lt.s32.totalorder %s2631, 31
          %s2633 = scalar_select %p2632, %s2631, 31
          %s2634 = smul.addr %s2633, 8
          %s2635 = scalar_lea.vmem %s13, %s2634
        $region188: #{tpu_custom_call.1} parent=179 // pred_fallthru
          _
        // Predicated region
        $region189: #{tpu_custom_call.1} parent=179 // pred_check
          %p2636 = pneg %p425
        $region190: #{tpu_custom_call.1} parent=179 // pred_check_branch
          %2638 = sbr.rel (%p2636) target = $region192
        $region191: #{tpu_custom_call.1} parent=179 // pred_region
          %s2639 = sand.u32 %s37, 1
          %s2640 = scalar_lea.sflag [#allocation12], %s2639
          %s2641 = sand.u32 %s410, 1
          %s2642 = smul.addr %s2641, 128
          %s2643 = scalar_lea.vmem [#allocation11], %s2642
          %2644 = dma.done %s2640, 2048
        $region192: #{tpu_custom_call.1} parent=179 // pred_fallthru
          _
        // Predicated region
        $region193: #{tpu_custom_call.1} parent=179 // pred_check
          %p2645 = pneg %p455
        $region194: #{tpu_custom_call.1} parent=179 // pred_check_branch
          %2647 = sbr.rel (%p2645) target = $region196
        $region195: #{tpu_custom_call.1} parent=179 // pred_region
          %s2648 = sand.u32 %s37, 1
          %s2649 = scalar_lea.sflag [#allocation12], %s2648
          %s2650 = sand.u32 %s440, 1
          %s2651 = smul.addr %s2650, 128
          %s2652 = scalar_lea.vmem [#allocation13], %s2651
          %2653 = dma.done %s2649, 2048
        $region196: #{tpu_custom_call.1} parent=179 // pred_fallthru
          _
      $region180: #{tpu_custom_call.1} parent=5 // pred_fallthru
        _
    $region6: #{tpu_custom_call.1} parent=1 // loop_footer
      %s35 = sadd.s32 1, %s31
    $region7: #{tpu_custom_call.1} parent=1 // loop_footer_branch
      %30 = sbr.rel target = $region3
    $region8: #{tpu_custom_call.1} parent=1 // loop_exit
      _
    %2654 = vsyncpa [#allocation6], 1
    %s2655 = scalar_lea.sflag [#allocation6], 1
    %2656 = vsyncpa %s2655, 1
    %2657 = vsyncpa [#allocation7], 1
    %s2658 = scalar_lea.sflag [#allocation7], 1
    %2659 = vsyncpa %s2658, 1
    %2660 = vsyncpa [#allocation12], 1
    %s2661 = scalar_lea.sflag [#allocation12], 1
    %2662 = vsyncpa %s2661, 1

</llo_original>
